<compile_context>
chip_gen: v6e
topology: v6e:2x2x1
jax: 0.10.0
libtpu: 0.0.40
codegen_flags: <defaults>
</compile_context>

<pallas_src>
import functools

import jax
import jax.numpy as jnp
from jax import lax
from jax.experimental import pallas as pl
from jax.experimental.pallas import tpu as pltpu


# ----------------------------------------------------------------------------
# small helpers
# ----------------------------------------------------------------------------
def _cdiv(a, b):
    return -(-a // b)


def _detect_vmem_limit_bytes():
    """Scoped-VMEM limit for the Pallas calls, sized per generation with headroom:
    128 MiB chips (v5e/v6e) -> 64 MiB; 64 MiB chips (v7x) -> 32 MiB."""
    try:
        cap = int(pltpu.get_tpu_info().vmem_capacity_bytes)
    except Exception:
        cap = 64 * 1024 * 1024  # conservative fallback (v7x physical VMEM)
    return min(max(cap // 2, 32 * 1024 * 1024), 96 * 1024 * 1024)


_VMEM_LIMIT_BYTES = _detect_vmem_limit_bytes()
_BLOCK_BUDGET_BYTES = _VMEM_LIMIT_BYTES - 2 * 1024 * 1024  # headroom for misc scratch


def _choose_task_block(T, per_task_bytes, budget_bytes=_BLOCK_BUDGET_BYTES,
                       target_steps=2):
    """Tasks per grid step: as many as the (double-buffered) VMEM budget allows,
    but keep ~`target_steps` grid steps for pipeline overlap.  Best-effort even
    step count so v7x's two TensorCores both get work."""
    cap = max(1, budget_bytes // (2 * max(per_task_bytes, 1)))
    tb = max(1, min(cap, T, _cdiv(T, target_steps)))
    steps = _cdiv(T, tb)
    if steps > 1 and steps % 2 == 1:
        alt = max(1, _cdiv(T, steps + 1))
        if _cdiv(T, alt) % 2 == 0:
            tb = alt
    return tb


# ----------------------------------------------------------------------------
# Pallas kernels
# ----------------------------------------------------------------------------
def _support_gram_kernel(s_ref, o_ref):
    # s_ref: (TB, ns, d) f32  ->  o_ref: (TB, ns, ns) = S @ S^T
    # f32 operands on purpose: this Gram matrix builds Q for the QP solve.
    s = s_ref[...]
    o_ref[...] = lax.dot_general(
        s, s,
        dimension_numbers=(((2,), (2,)), ((0,), (0,))),
        preferred_element_type=jnp.float32,
    )


def _fused_logits_kernel(q_ref, s_ref, qp_ref, o_ref):
    # Cast features to bf16 in-kernel (HBM traffic stays a single f32 read).
    q = q_ref[...].astype(jnp.bfloat16)   # (TB, nq, d)
    s = s_ref[...].astype(jnp.bfloat16)   # (TB, ns, d)
    # compat_T[b] = support[b] @ query[b]^T  (contract feature dim d; VMEM only)
    compat_t = lax.dot_general(
        s, q,
        dimension_numbers=(((2,), (2,)), ((0,), (0,))),
        preferred_element_type=jnp.float32,
    )  # (TB, ns, nq) f32, never written to HBM
    # logits_T[b] = qp_T[b] @ compat_T[b]    (contract n_support)
    o_ref[...] = lax.dot_general(
        qp_ref[...], compat_t,
        dimension_numbers=(((2,), (1,)), ((0,), (0,))),
        preferred_element_type=jnp.float32,
    )  # (TB, n_way, nq)


def compute_support_gram(support):
    """support: (T, ns, d) f32 -> (T, ns, ns) f32 Gram matrix (batched S @ S^T)."""
    T, ns, d = support.shape
    per_task = ns * d * 4 + ns * ns * 4
    TB = _choose_task_block(T, per_task)
    return pl.pallas_call(
        _support_gram_kernel,
        out_shape=jax.ShapeDtypeStruct((T, ns, ns), jnp.float32),
        grid=(_cdiv(T, TB),),
        in_specs=[pl.BlockSpec((TB, ns, d), lambda t: (t, 0, 0))],
        out_specs=pl.BlockSpec((TB, ns, ns), lambda t: (t, 0, 0)),
        compiler_params=pltpu.CompilerParams(
            dimension_semantics=("parallel",),
            vmem_limit_bytes=_VMEM_LIMIT_BYTES,
        ),
    )(support)


def compute_logits_fused(query, support, qp_sol_t):
    """query: (T, nq, d) f32, support: (T, ns, d) f32, qp_sol_t: (T, n_way, ns) f32
       -> logits (T, nq, n_way) f32, logits[t,q,w] = sum_s <q_q, s_s> * qp[t,s,w]."""
    T, nq, d = query.shape
    ns = support.shape[1]
    n_way = qp_sol_t.shape[1]
    per_task = ((nq + ns) * d * 4      # f32 feature inputs
                + n_way * ns * 4       # qp_sol (f32)
                + n_way * nq * 4       # output (f32)
                + ns * nq * 4)         # in-VMEM compat intermediate
    TB = _choose_task_block(T, per_task)
    logits_t = pl.pallas_call(
        _fused_logits_kernel,
        out_shape=jax.ShapeDtypeStruct((T, n_way, nq), jnp.float32),
        grid=(_cdiv(T, TB),),
        in_specs=[
            pl.BlockSpec((TB, nq, d), lambda t: (t, 0, 0)),
            pl.BlockSpec((TB, ns, d), lambda t: (t, 0, 0)),
            pl.BlockSpec((TB, n_way, ns), lambda t: (t, 0, 0)),
        ],
        out_specs=pl.BlockSpec((TB, n_way, nq), lambda t: (t, 0, 0)),
        compiler_params=pltpu.CompilerParams(
            dimension_semantics=("parallel",),
            vmem_limit_bytes=_VMEM_LIMIT_BYTES,
        ),
    )(query, support, qp_sol_t)
    return jnp.swapaxes(logits_t, 1, 2)  # (T, nq, n_way)


# ----------------------------------------------------------------------------
# Batched primal-dual interior-point QP solver (qpth QPFunction forward, JAX),
# specialized to an identity inequality matrix:
#   minimize 0.5 z^T Q z + p^T z   s.t.   z <= h,   A z = b
# ----------------------------------------------------------------------------
_EPS = 1e-12


def _batch_diag(v):  # (B, n) -> (B, n, n)
    return jax.vmap(jnp.diag)(v)


def _get_step(v, dv):
    safe_dv = jnp.where(dv < 0, dv, -1.0)
    a = jnp.where(dv < 0, -v / safe_dv, jnp.inf)
    return jnp.min(a, axis=1)


def _cho_solve(L, B):
    """Solve (L L^T) X = B for batched lower-Cholesky L: (B,n,n), B: (B,n,k)."""
    y = lax.linalg.triangular_solve(L, B, left_side=True, lower=True)
    return lax.linalg.triangular_solve(L, y, left_side=True, lower=True,
                                       transpose_a=True)


def _cho_solve_vec(L, v):  # v: (B, n)
    return _cho_solve(L, v[..., None])[..., 0]


def qp_solve_pdipm(Q, p, h, A2d, b, max_iter=3):
    """Q: (B, nz, nz) SPD; p, h: (B, nz); A2d: (neq, nz) shared; b: (B, neq).
    Returns the primal solution z, shape (B, nz)."""
    nB, nz, _ = Q.shape
    neq = A2d.shape[0]
    nineq = nz

    # Q is constant across iterations and SPD -> Cholesky once, reuse everywhere.
    L_Q = jnp.linalg.cholesky(Q)                                        # (B, nz, nz)
    eye_nz = jnp.broadcast_to(jnp.eye(nz, dtype=Q.dtype), (nB, nz, nz))
    Qinv = _cho_solve(L_Q, eye_nz)                                      # dense, for S22
    AT_b = jnp.broadcast_to(A2d.T, (nB, nz, neq))
    QinvAT = _cho_solve(L_Q, AT_b)                                      # (B, nz, neq)
    S11 = jnp.einsum("ij,bjk->bik", A2d, QinvAT)                        # A Qinv A^T
    S12 = jnp.swapaxes(QinvAT, 1, 2)                                    # A Qinv

    def build_S_chol(d):
        # Schur complement of the KKT system with Gi = I (never materialized).
        # S is SPD -> factor ONCE per call; shared by affine + corrector solves.
        S22 = Qinv + _batch_diag(1.0 / jnp.maximum(d, _EPS))
        top = jnp.concatenate([S11, S12], axis=2)
        bot = jnp.concatenate([QinvAT, S22], axis=2)
        S = jnp.concatenate([top, bot], axis=1)
        return jnp.linalg.cholesky(S)

    def kkt_solve(L_S, d, rx, rs, rz, ry):
        invQ_rx = _cho_solve_vec(L_Q, rx)
        h_top = jnp.einsum("ij,bj->bi", A2d, invQ_rx) - ry
        h_bot = invQ_rx + rs / d - rz                   # Gi @ invQ_rx == invQ_rx
        hv = jnp.concatenate([h_top, h_bot], axis=1)
        w = -_cho_solve_vec(L_S, hv)
        w_y = w[:, :neq]
        w_z = w[:, neq:]
        g1 = -rx - w_z - jnp.einsum("bi,ij->bj", w_y, A2d)   # Gi^T w_z == w_z
        g2 = -rs - w_z
        dx = _cho_solve_vec(L_Q, g1)
        ds = g2 / d
        return dx, ds, w_z, w_y

    d0 = jnp.ones((nB, nineq), Q.dtype)
    L_S0 = build_S_chol(d0)
    x, s, z, y = kkt_solve(L_S0, d0, p, jnp.zeros((nB, nineq), Q.dtype), -h, -b)

    # Shift slacks / inequality duals to be >= 1 where their minimum is negative.
    Ms = jnp.min(s, axis=1, keepdims=True)
    s = jnp.where(Ms < 0, s - Ms + 1.0, s)
    Mz = jnp.min(z, axis=1, keepdims=True)
    z = jnp.where(Mz < 0, z - Mz + 1.0, z)

    def body(_, carry):
        x, s, z, y = carry
        rx = (jnp.einsum("bi,ij->bj", y, A2d) + z
              + jnp.einsum("bij,bj->bi", Q, x) + p)
        rs = z
        rz = x + s - h                               # Gi @ x == x
        ry = jnp.einsum("ij,bj->bi", A2d, x) - b
        mu = jnp.abs(jnp.sum(s * z, axis=1) / nineq)
        d = jnp.maximum(z / jnp.maximum(s, _EPS), _EPS)
        L_S = build_S_chol(d)                        # shared by affine + corrector

        dx_a, ds_a, dz_a, dy_a = kkt_solve(L_S, d, rx, rs, rz, ry)
        alpha = jnp.minimum(jnp.minimum(_get_step(z, dz_a), _get_step(s, ds_a)), 1.0)
        a = alpha[:, None]
        t1 = s + a * ds_a
        t2 = z + a * dz_a
        sig = (jnp.sum(t1 * t2, axis=1)
               / jnp.maximum(jnp.sum(s * z, axis=1), _EPS)) ** 3

        rs_cor = ((-mu * sig)[:, None] + ds_a * dz_a) / jnp.maximum(s, _EPS)
        dx_c, ds_c, dz_c, dy_c = kkt_solve(
            L_S, d, jnp.zeros_like(x), rs_cor, jnp.zeros_like(z), jnp.zeros_like(y))
        dx = dx_a + dx_c
        ds = ds_a + ds_c
        dz = dz_a + dz_c
        dy = dy_a + dy_c
        alpha = jnp.minimum(0.999 * jnp.minimum(_get_step(z, dz), _get_step(s, ds)), 1.0)
        a = alpha[:, None]
        return (x + a * dx, s + a * ds, z + a * dz, y + a * dy)

    x, s, z, y = lax.fori_loop(0, max_iter, body, (x, s, z, y))
    return x  # primal solution zhat, shape (B, n_way * n_support)


# ----------------------------------------------------------------------------
# MetaoptHead forward
# ----------------------------------------------------------------------------
@functools.partial(jax.jit, static_argnames=("n_way", "n_shot", "max_iter"))
def metaopt_head_forward(query, support, n_way, n_shot, C_reg=0.1, max_iter=3):
    if support.ndim == 5:  # (T, n, C, H, W) -> adaptive_avg_pool2d(1) + squeeze
        support = jnp.mean(support, axis=(-2, -1))
        query = jnp.mean(query, axis=(-2, -1))

    query = query.astype(jnp.float32)
    support = support.astype(jnp.float32)

    T, n_support, _ = support.shape
    n_query = query.shape[1]
    assert n_support == n_way * n_shot
    nz = n_way * n_support

    # --- Gram matrix of the support set (Pallas, f32 operands / f32 acc) ---
    kernel_matrix = compute_support_gram(support)  # (T, ns, ns) f32

    # --- Q = kron(K, I_nway) + I ---
    eye_w = jnp.eye(n_way, dtype=jnp.float32)
    block_kernel = (
        kernel_matrix[:, :, None, :, None] * eye_w[None, None, :, None, :]
    ).reshape(T, nz, nz)
    Q = block_kernel + jnp.eye(nz, dtype=jnp.float32)[None]

    # --- one-hot support labels (module hard-codes class = s % n_way) ---
    onehot = jnp.tile(jnp.eye(n_way, dtype=jnp.float32), (n_shot, 1))  # (ns, n_way)
    y_flat = jnp.broadcast_to(onehot.reshape(-1), (T, nz))             # (T, nz)

    p = -1.0 * y_flat
    h = C_reg * y_flat
    # Equality constraint A, shared across tasks (2-D, never broadcast);
    # the inequality matrix is the identity and is exploited analytically.
    A2d = jnp.kron(
        jnp.eye(n_support, dtype=jnp.float32), jnp.ones((1, n_way), jnp.float32)
    )  # (ns, nz)
    b = jnp.zeros((T, n_support), jnp.float32)

    # --- QP solve (qpth QPFunction forward, plain JAX / batched Cholesky) ---
    qp_sol = qp_solve_pdipm(Q, p, h, A2d, b, max_iter=max_iter)   # (T, nz)
    # Transposed (n_way-major) layout for the lane-dense fused-logits kernel.
    qp_sol_t = qp_sol.reshape(T, n_support, n_way).transpose(0, 2, 1)  # (T, n_way, ns)

    # --- fused compatibility + logits contraction (single Pallas call) ---
    logits = compute_logits_fused(query, support, qp_sol_t)  # (T, nq, n_way)
    return logits


if __name__ == "__main__":
    key = jax.random.PRNGKey(0)
    tasks_per_batch = 2
    n_way, n_shot = 3, 2
    n_support = n_way * n_shot      # 6
    n_query = 8
    d = 16

    kq, ks = jax.random.split(key)
    query = jax.random.normal(kq, (tasks_per_batch, n_query, d), jnp.float32)
    support = jax.random.normal(ks, (tasks_per_batch, n_support, d), jnp.float32)

    logits = metaopt_head_forward(query, support, n_way, n_shot)
    logits = jax.block_until_ready(logits)
    assert logits.shape == (tasks_per_batch, n_query, n_way)
    assert logits.dtype == jnp.float32
    print("KERNEL_OK")
</pallas_src>

<mosaic_0001>
module attributes {stable_mosaic.version = 11 : i64} {
  func.func @_support_gram_kernel(%arg0: i32, %arg1: memref<1x6x16xf32, #tpu.memory_space<vmem>>, %arg2: memref<1x6x6xf32, #tpu.memory_space<vmem>>) attributes {dimension_semantics = [#tpu.dimension_semantics<parallel>], iteration_bounds = array<i64: 2>, scalar_prefetch = 0 : i64, scratch_operands = 0 : i64, tpu.core_type = #tpu.core_type<tc>, window_params = [{transform_indices = @transform_0, window_bounds = array<i64: 1, 6, 16>}, {transform_indices = @transform_1, window_bounds = array<i64: 1, 6, 6>}]} {
    %c0 = arith.constant 0 : index
    %c0_0 = arith.constant 0 : index
    %c0_1 = arith.constant 0 : index
    %0 = vector.load %arg1[%c0, %c0_0, %c0_1] : memref<1x6x16xf32, #tpu.memory_space<vmem>>, vector<1x6x16xf32>
    %cst = arith.constant dense<0.000000e+00> : vector<1x6x6xf32>
    %1 = tpu.matmul %0, %0, %cst {dimension_numbers = #tpu.dot_dimension_numbers<[2], [2], [1], [1], [0, 0, 0, 1, 1, 1], [0], [0]>} : vector<1x6x16xf32>, vector<1x6x16xf32>, vector<1x6x6xf32> -> vector<1x6x6xf32>
    %c0_2 = arith.constant 0 : index
    %c0_3 = arith.constant 0 : index
    %c0_4 = arith.constant 0 : index
    %2 = vector.load %arg2[%c0_2, %c0_3, %c0_4] : memref<1x6x6xf32, #tpu.memory_space<vmem>>, vector<1x6x6xf32>
    tpu.vector_store %arg2[%c0_2, %c0_3, %c0_4], %1 {strides = array<i32>} : memref<1x6x6xf32, #tpu.memory_space<vmem>>, vector<1x6x6xf32>,
    return
  }
  func.func @transform_0(%arg0: i32) -> (i32, i32, i32) {
    %c0_i32 = arith.constant 0 : i32
    %c0_i32_0 = arith.constant 0 : i32
    %c0_i32_1 = arith.constant 0 : i32
    return %arg0, %c0_i32, %c0_i32_0 : i32, i32, i32
  }
  func.func @transform_1(%arg0: i32) -> (i32, i32, i32) {
    %c0_i32 = arith.constant 0 : i32
    %c0_i32_0 = arith.constant 0 : i32
    %c0_i32_1 = arith.constant 0 : i32
    return %arg0, %c0_i32, %c0_i32_0 : i32, i32, i32
  }
}

module attributes {stable_mosaic.version = 11 : i64} {
  func.func @_fused_logits_kernel(%arg0: i32, %arg1: memref<1x8x16xf32, #tpu.memory_space<vmem>>, %arg2: memref<1x6x16xf32, #tpu.memory_space<vmem>>, %arg3: memref<1x3x6xf32, #tpu.memory_space<vmem>>, %arg4: memref<1x3x8xf32, #tpu.memory_space<vmem>>) attributes {dimension_semantics = [#tpu.dimension_semantics<parallel>], iteration_bounds = array<i64: 2>, scalar_prefetch = 0 : i64, scratch_operands = 0 : i64, tpu.core_type = #tpu.core_type<tc>, window_params = [{transform_indices = @transform_0, window_bounds = array<i64: 1, 8, 16>}, {transform_indices = @transform_1, window_bounds = array<i64: 1, 6, 16>}, {transform_indices = @transform_2, window_bounds = array<i64: 1, 3, 6>}, {transform_indices = @transform_3, window_bounds = array<i64: 1, 3, 8>}]} {
    %c0 = arith.constant 0 : index
    %c0_0 = arith.constant 0 : index
    %c0_1 = arith.constant 0 : index
    %0 = vector.load %arg1[%c0, %c0_0, %c0_1] : memref<1x8x16xf32, #tpu.memory_space<vmem>>, vector<1x8x16xf32>
    %1 = arith.truncf %0 : vector<1x8x16xf32> to vector<1x8x16xbf16>
    %c0_2 = arith.constant 0 : index
    %c0_3 = arith.constant 0 : index
    %c0_4 = arith.constant 0 : index
    %2 = vector.load %arg2[%c0_2, %c0_3, %c0_4] : memref<1x6x16xf32, #tpu.memory_space<vmem>>, vector<1x6x16xf32>
    %3 = arith.truncf %2 : vector<1x6x16xf32> to vector<1x6x16xbf16>
    %cst = arith.constant dense<0.000000e+00> : vector<1x6x8xf32>
    %4 = tpu.matmul %3, %1, %cst {dimension_numbers = #tpu.dot_dimension_numbers<[2], [2], [1], [1], [0, 0, 0, 1, 1, 1], [0], [0]>} : vector<1x6x16xbf16>, vector<1x8x16xbf16>, vector<1x6x8xf32> -> vector<1x6x8xf32>
    %c0_5 = arith.constant 0 : index
    %c0_6 = arith.constant 0 : index
    %c0_7 = arith.constant 0 : index
    %5 = vector.load %arg3[%c0_5, %c0_6, %c0_7] : memref<1x3x6xf32, #tpu.memory_space<vmem>>, vector<1x3x6xf32>
    %cst_8 = arith.constant dense<0.000000e+00> : vector<1x3x8xf32>
    %6 = tpu.matmul %5, %4, %cst_8 {dimension_numbers = #tpu.dot_dimension_numbers<[2], [1], [1], [2], [0, 0, 0, 1, 1, 2], [0], [0]>} : vector<1x3x6xf32>, vector<1x6x8xf32>, vector<1x3x8xf32> -> vector<1x3x8xf32>
    %c0_9 = arith.constant 0 : index
    %c0_10 = arith.constant 0 : index
    %c0_11 = arith.constant 0 : index
    %7 = vector.load %arg4[%c0_9, %c0_10, %c0_11] : memref<1x3x8xf32, #tpu.memory_space<vmem>>, vector<1x3x8xf32>
    tpu.vector_store %arg4[%c0_9, %c0_10, %c0_11], %6 {strides = array<i32>} : memref<1x3x8xf32, #tpu.memory_space<vmem>>, vector<1x3x8xf32>,
    return
  }
  func.func @transform_0(%arg0: i32) -> (i32, i32, i32) {
    %c0_i32 = arith.constant 0 : i32
    %c0_i32_0 = arith.constant 0 : i32
    %c0_i32_1 = arith.constant 0 : i32
    return %arg0, %c0_i32, %c0_i32_0 : i32, i32, i32
  }
  func.func @transform_1(%arg0: i32) -> (i32, i32, i32) {
    %c0_i32 = arith.constant 0 : i32
    %c0_i32_0 = arith.constant 0 : i32
    %c0_i32_1 = arith.constant 0 : i32
    return %arg0, %c0_i32, %c0_i32_0 : i32, i32, i32
  }
  func.func @transform_2(%arg0: i32) -> (i32, i32, i32) {
    %c0_i32 = arith.constant 0 : i32
    %c0_i32_0 = arith.constant 0 : i32
    %c0_i32_1 = arith.constant 0 : i32
    return %arg0, %c0_i32, %c0_i32_0 : i32, i32, i32
  }
  func.func @transform_3(%arg0: i32) -> (i32, i32, i32) {
    %c0_i32 = arith.constant 0 : i32
    %c0_i32_0 = arith.constant 0 : i32
    %c0_i32_1 = arith.constant 0 : i32
    return %arg0, %c0_i32, %c0_i32_0 : i32, i32, i32
  }
}

</mosaic_0001>

<llo_original>
// kernel: custom-call.12
$region0: #{custom-call.12}
  %s0 = inlined_call_operand.vmem [shape: f32[2,18,18], index: 0, kind: input, shape index: {}]
  %s1 = inlined_call_operand.vmem [shape: f32[2,18,18], index: 1, kind: output, shape index: {}]
  $region1: #{custom-call.12} parent=0
    #allocation0 [shape = 'u8[24576]{0}', space=vmem, size = 0x6000, scoped, tag = 'operand span for operand 0']
    #allocation1 [shape = 'u8[24576]{0}', space=vmem, size = 0x6000, scoped, tag = 'operand span for operand 1']
    loop: start=0, step=1, limit=4
    $region2: #{custom-call.12} parent=1 // loop_pre_header
      _
    $region3: #{custom-call.12} parent=1 // loop_header
      %s3 = sphi 0, %s7
      %p4 = scmp.ge.s32.totalorder %s3, 4
      %s10 = sphi 0, %s29
      %s11 = sphi 0, %s25
      %s12 = sphi 0, %s21
      %s13 = sphi 0, %s10
      %s14 = sphi 0, %s11
      %s15 = sphi 0, %s12
      %s16 = sphi 0, %s13
      %s17 = sphi 0, %s14
      %s18 = sphi 0, %s15
    $region4: #{custom-call.12} parent=1 // loop_header_branch
      %6 = sbr.rel (%p4) target = $region8
    $region5: #{custom-call.12} parent=1 // loop_body
      %s8 = ssub.s32 %s3, 1
      %s9 = ssub.s32 %s3, 2
      %s19 = sadd.s32 1, %s12
      %p20 = scmp.ge.s32.totalorder %s19, 1
      %s21 = scalar_select %p20, 0, %s19
      %s22 = sadd.s32 1, %s11
      %s23 = scalar_select %p20, %s22, %s11
      %p24 = scmp.ge.s32.totalorder %s23, 1
      %s25 = scalar_select %p24, 0, %s23
      %s26 = sadd.s32 1, %s10
      %s27 = scalar_select %p24, %s26, %s10
      %p28 = scmp.ge.s32.totalorder %s27, 2
      %s29 = scalar_select %p28, 0, %s27
      %p30 = scmp.le.s32.totalorder 1, %s3
      %p31 = scmp.lt.s32.totalorder %s3, 3
      %p32 = pnand %p30, %p31
      %p33 = pneg %p32
      // Predicated region
      $region9: #{custom-call.12} parent=5 // pred_check
        _
      $region10: #{custom-call.12} parent=5 // pred_check_branch
        %35 = sbr.rel (%p32) target = $region12
      $region11: #{custom-call.12} parent=5 // pred_region
        %s36 = ssub.s32 %s3, 1
      $region12: #{custom-call.12} parent=5 // pred_fallthru
        _
      %p37 = scmp.lt.s32.totalorder %s3, 2
      // Predicated region
      $region13: #{custom-call.12} parent=5 // pred_check
        %p38 = pneg %p37
      $region14: #{custom-call.12} parent=5 // pred_check_branch
        %40 = sbr.rel (%p38) target = $region16
      $region15: #{custom-call.12} parent=5 // pred_region
        %s41 = sand.u32 %s3, 1
        %s42 = sand.u32 %s3, 1
        %s43 = smul.addr %s42, 24
        %s44 = scalar_lea.vmem [#allocation0], %s43
        %s45 = sadd.s32 %s12, %s11
        %s46 = smul.addr %s10, 3
        %s47 = sadd.s32 %s45, %s46
        %s48 = smul.addr %s47, 8
        %s49 = scalar_lea.vmem %s0, %s48
        // Predicated region
        $region17: #{custom-call.12} parent=15 // pred_check
          _
        $region18: #{custom-call.12} parent=15 // pred_check_branch
          %51 = sbr.rel (0) target = $region20
        $region19: #{custom-call.12} parent=15 // pred_region
          // Predicated region
          $region21: #{custom-call.12} parent=19 // pred_check
            _
          $region22: #{custom-call.12} parent=19 // pred_check_branch
            %53 = sbr.rel (0) target = $region24
          $region23: #{custom-call.12} parent=19 // pred_region
            // Predicated region
            $region36: #{custom-call.12} parent=23 // pred_check
              _
            $region37: #{custom-call.12} parent=23 // pred_check_branch
              %73 = sbr.rel (0) target = $region39
            $region38: #{custom-call.12} parent=23 // pred_region
              loop: start=0, step=1, limit=1
              $region40: #{custom-call.12} parent=38 // loop_pre_header
                _
              $region41: #{custom-call.12} parent=38 // loop_header
                %s75 = sphi 0, %s79
                %p76 = scmp.ge.s32.totalorder %s75, 1
                %s80 = sphi %s49, %s49
                %s81 = sphi %s44, %s44
              $region42: #{custom-call.12} parent=38 // loop_header_branch
                %78 = sbr.rel (%p76) target = $region46
              $region43: #{custom-call.12} parent=38 // loop_body
                %v82 = vld [vmem:[%s80] sm:$0xff]
                %83 = vst [vmem:[%s81] sm:$0xff] %v82
                %v84 = vld [vmem:[%s80 + $0x8] sm:$0xff]
                %85 = vst [vmem:[%s81 + $0x8] sm:$0xff] %v84
                %v86 = vld [vmem:[%s80 + $0x10] sm:$0xff]
                %87 = vst [vmem:[%s81 + $0x10] sm:$0xff] %v86
              $region44: #{custom-call.12} parent=38 // loop_footer
                %s79 = sadd.s32 1, %s75
              $region45: #{custom-call.12} parent=38 // loop_footer_branch
                %74 = sbr.rel target = $region41
              $region46: #{custom-call.12} parent=38 // loop_exit
                _
            $region39: #{custom-call.12} parent=23 // pred_fallthru
              _
            // Predicated region
            $region47: #{custom-call.12} parent=23 // pred_check
              _
            $region48: #{custom-call.12} parent=23 // pred_check_branch
              %89 = sbr.rel target = $region50
            $region49: #{custom-call.12} parent=23 // pred_region
              _
            $region50: #{custom-call.12} parent=23 // pred_fallthru
              _
          $region24: #{custom-call.12} parent=19 // pred_fallthru
            _
          // Predicated region
          $region25: #{custom-call.12} parent=19 // pred_check
            _
          $region26: #{custom-call.12} parent=19 // pred_check_branch
            %55 = sbr.rel target = $region28
          $region27: #{custom-call.12} parent=19 // pred_region
            %s57 = ssub.s32 256, 1
            loop: start=0, step=1, limit=1
            $region29: #{custom-call.12} parent=27 // loop_pre_header
              _
            $region30: #{custom-call.12} parent=27 // loop_header
              %s59 = sphi 0, %s63
              %p60 = scmp.ge.s32.totalorder %s59, 1
              %s64 = sphi %s49, %s49
              %s65 = sphi %s44, %s44
            $region31: #{custom-call.12} parent=27 // loop_header_branch
              %62 = sbr.rel (%p60) target = $region35
            $region32: #{custom-call.12} parent=27 // loop_body
              %v66 = vld [vmem:[%s64] sm:%s57]
              %67 = vst [vmem:[%s65] sm:%s57] %v66
              %v68 = vld [vmem:[%s64 + $0x8] sm:%s57]
              %69 = vst [vmem:[%s65 + $0x8] sm:%s57] %v68
              %v70 = vld [vmem:[%s64 + $0x10] sm:%s57]
              %71 = vst [vmem:[%s65 + $0x10] sm:%s57] %v70
            $region33: #{custom-call.12} parent=27 // loop_footer
              %s63 = sadd.s32 1, %s59
            $region34: #{custom-call.12} parent=27 // loop_footer_branch
              %58 = sbr.rel target = $region30
            $region35: #{custom-call.12} parent=27 // loop_exit
              _
          $region28: #{custom-call.12} parent=19 // pred_fallthru
            _
        $region20: #{custom-call.12} parent=15 // pred_fallthru
          _
        %90 = vnop
      $region16: #{custom-call.12} parent=5 // pred_fallthru
        _
      %p91 = scmp.le.s32.totalorder 1, %s3
      %p92 = scmp.lt.s32.totalorder %s3, 3
      %p93 = pnand %p91, %p92
      %p94 = pneg %p93
      // Predicated region
      $region51: #{custom-call.12} parent=5 // pred_check
        _
      $region52: #{custom-call.12} parent=5 // pred_check_branch
        %96 = sbr.rel (%p93) target = $region54
      $region53: #{custom-call.12} parent=5 // pred_region
        %s97 = ssub.s32 %s3, 1
        %s98 = sand.u32 %s8, 1
        %s99 = sand.u32 %s8, 1
        %s100 = smul.addr %s99, 24
        %s101 = scalar_lea.vmem [#allocation0], %s100
        %s102 = sand.u32 %s8, 1
        %s103 = sand.u32 %s8, 1
        %s104 = smul.addr %s103, 24
        %s105 = scalar_lea.vmem [#allocation0], %s104
        %s106 = sand.u32 %s8, 1
        %s107 = sand.u32 %s8, 1
        %s108 = smul.addr %s107, 24
        %s109 = scalar_lea.vmem [#allocation1], %s108
        %110 = vst [vmem:[%s109] sm:$0xff] 0.0
        %s111 = scalar_lea.vmem %s109, 8 [#allocation1]
        %112 = vst [vmem:[%s111] sm:$0xff] 0.0
        %s113 = scalar_lea.vmem %s109, 16 [#allocation1]
        %114 = vst [vmem:[%s113] sm:$0xff] 0.0
        %vm115 = vcmask 7168
        %v116 = vld [vmem:[%s109] ss:$0 sm:$0xff]
        %v117 = vld [vmem:[%s101] ss:$0 sm:$0xff]
        %v118 = vmul.f32 %v116, %v116
        %119 = vadd.xlane.f32.xlu0 %v118
        %v120 = vpop.xlane.xlu0 %119
        %v121 = vsub.f32 %v117, %v120
        %v122 = vrsqrt.pop %v121
        %v123 = vld [vmem:[%s101] sm:$0xff]
        %v124 = vld [vmem:[%s109] sm:$0xff]
        %v125 = vmul.f32 %v124, %v116
        %126 = vadd.xlane.f32.xlu0 %v125
        %v127 = vpop.xlane.xlu0 %126
        %v128 = vsub.f32 %v123, %v127
        %v129 = vmul.f32 %v128, %v122
        %v130 = vsel %vm115, %v129, 0.0
        %v131 = vadd.f32 %v124, %v130
        %132 = vst [vmem:[%s109] sm:$0xff] %v131
        %s133 = scalar_lea.vmem %s101, 8 [#allocation0]
        %v134 = vld [vmem:[%s133] sm:$0xff]
        %s135 = scalar_lea.vmem %s109, 8 [#allocation1]
        %v136 = vld [vmem:[%s135] sm:$0xff]
        %v137 = vmul.f32 %v136, %v116
        %138 = vadd.xlane.f32.xlu0 %v137
        %v139 = vpop.xlane.xlu0 %138
        %v140 = vsub.f32 %v134, %v139
        %v141 = vmul.f32 %v140, %v122
        %v142 = vsel %vm115, %v141, 0.0
        %v143 = vadd.f32 %v136, %v142
        %s144 = scalar_lea.vmem %s109, 8 [#allocation1]
        %145 = vst [vmem:[%s144] sm:$0xff] %v143
        %s146 = scalar_lea.vmem %s101, 16 [#allocation0]
        %v147 = vld [vmem:[%s146] sm:$0xff]
        %s148 = scalar_lea.vmem %s109, 16 [#allocation1]
        %v149 = vld [vmem:[%s148] sm:$0xff]
        %v150 = vmul.f32 %v149, %v116
        %151 = vadd.xlane.f32.xlu0 %v150
        %v152 = vpop.xlane.xlu0 %151
        %v153 = vsub.f32 %v147, %v152
        %v154 = vmul.f32 %v153, %v122
        %v155 = vsel %vm115, %v154, 0.0
        %v156 = vadd.f32 %v149, %v155
        %s157 = scalar_lea.vmem %s109, 16 [#allocation1]
        %158 = vst [vmem:[%s157] sm:$0xff] %v156
        %vm159 = vcmask 15368
        %s160 = scalar_lea.vmem %s109, 1 [#allocation1]
        %v161 = vld [vmem:[%s160] ss:$0 sm:$0xff]
        %s162 = scalar_lea.vmem %s101, 1 [#allocation0]
        %v163 = vld [vmem:[%s162] ss:$0 sm:$0xff]
        %v164 = vmul.f32 %v161, %v161
        %165 = vadd.xlane.f32.xlu0 %v164
        %v166 = vpop.xlane.xlu0 %165
        %v167 = vsub.f32 %v163, %v166
        %v168 = vrsqrt.pop %v167
        %v169 = vld [vmem:[%s101] sm:$0xff]
        %v170 = vld [vmem:[%s109] sm:$0xff]
        %v171 = vmul.f32 %v170, %v161
        %172 = vadd.xlane.f32.xlu0 %v171
        %v173 = vpop.xlane.xlu0 %172
        %v174 = vsub.f32 %v169, %v173
        %v175 = vmul.f32 %v174, %v168
        %vm176 = vcmask 1047553
        %vm177 = vmand %vm159, %vm176
        %v178 = vsel %vm177, %v175, 0.0
        %v179 = vadd.f32 %v170, %v178
        %180 = vst [vmem:[%s109] sm:$0xff] %v179
        %s181 = scalar_lea.vmem %s101, 8 [#allocation0]
        %v182 = vld [vmem:[%s181] sm:$0xff]
        %s183 = scalar_lea.vmem %s109, 8 [#allocation1]
        %v184 = vld [vmem:[%s183] sm:$0xff]
        %v185 = vmul.f32 %v184, %v161
        %186 = vadd.xlane.f32.xlu0 %v185
        %v187 = vpop.xlane.xlu0 %186
        %v188 = vsub.f32 %v182, %v187
        %v189 = vmul.f32 %v188, %v168
        %v190 = vsel %vm159, %v189, 0.0
        %v191 = vadd.f32 %v184, %v190
        %s192 = scalar_lea.vmem %s109, 8 [#allocation1]
        %193 = vst [vmem:[%s192] sm:$0xff] %v191
        %s194 = scalar_lea.vmem %s101, 16 [#allocation0]
        %v195 = vld [vmem:[%s194] sm:$0xff]
        %s196 = scalar_lea.vmem %s109, 16 [#allocation1]
        %v197 = vld [vmem:[%s196] sm:$0xff]
        %v198 = vmul.f32 %v197, %v161
        %199 = vadd.xlane.f32.xlu0 %v198
        %v200 = vpop.xlane.xlu0 %199
        %v201 = vsub.f32 %v195, %v200
        %v202 = vmul.f32 %v201, %v168
        %v203 = vsel %vm159, %v202, 0.0
        %v204 = vadd.f32 %v197, %v203
        %s205 = scalar_lea.vmem %s109, 16 [#allocation1]
        %206 = vst [vmem:[%s205] sm:$0xff] %v204
        %vm207 = vcmask 23568
        %s208 = scalar_lea.vmem %s109, 2 [#allocation1]
        %v209 = vld [vmem:[%s208] ss:$0 sm:$0xff]
        %s210 = scalar_lea.vmem %s101, 2 [#allocation0]
        %v211 = vld [vmem:[%s210] ss:$0 sm:$0xff]
        %v212 = vmul.f32 %v209, %v209
        %213 = vadd.xlane.f32.xlu0 %v212
        %v214 = vpop.xlane.xlu0 %213
        %v215 = vsub.f32 %v211, %v214
        %v216 = vrsqrt.pop %v215
        %v217 = vld [vmem:[%s101] sm:$0xff]
        %v218 = vld [vmem:[%s109] sm:$0xff]
        %v219 = vmul.f32 %v218, %v209
        %220 = vadd.xlane.f32.xlu0 %v219
        %v221 = vpop.xlane.xlu0 %220
        %v222 = vsub.f32 %v217, %v221
        %v223 = vmul.f32 %v222, %v216
        %vm224 = vcmask 1047554
        %vm225 = vmand %vm207, %vm224
        %v226 = vsel %vm225, %v223, 0.0
        %v227 = vadd.f32 %v218, %v226
        %228 = vst [vmem:[%s109] sm:$0xff] %v227
        %s229 = scalar_lea.vmem %s101, 8 [#allocation0]
        %v230 = vld [vmem:[%s229] sm:$0xff]
        %s231 = scalar_lea.vmem %s109, 8 [#allocation1]
        %v232 = vld [vmem:[%s231] sm:$0xff]
        %v233 = vmul.f32 %v232, %v209
        %234 = vadd.xlane.f32.xlu0 %v233
        %v235 = vpop.xlane.xlu0 %234
        %v236 = vsub.f32 %v230, %v235
        %v237 = vmul.f32 %v236, %v216
        %v238 = vsel %vm207, %v237, 0.0
        %v239 = vadd.f32 %v232, %v238
        %s240 = scalar_lea.vmem %s109, 8 [#allocation1]
        %241 = vst [vmem:[%s240] sm:$0xff] %v239
        %s242 = scalar_lea.vmem %s101, 16 [#allocation0]
        %v243 = vld [vmem:[%s242] sm:$0xff]
        %s244 = scalar_lea.vmem %s109, 16 [#allocation1]
        %v245 = vld [vmem:[%s244] sm:$0xff]
        %v246 = vmul.f32 %v245, %v209
        %247 = vadd.xlane.f32.xlu0 %v246
        %v248 = vpop.xlane.xlu0 %247
        %v249 = vsub.f32 %v243, %v248
        %v250 = vmul.f32 %v249, %v216
        %v251 = vsel %vm207, %v250, 0.0
        %v252 = vadd.f32 %v245, %v251
        %s253 = scalar_lea.vmem %s109, 16 [#allocation1]
        %254 = vst [vmem:[%s253] sm:$0xff] %v252
        %vm255 = vcmask 31768
        %s256 = scalar_lea.vmem %s109, 3 [#allocation1]
        %v257 = vld [vmem:[%s256] ss:$0 sm:$0xff]
        %s258 = scalar_lea.vmem %s101, 3 [#allocation0]
        %v259 = vld [vmem:[%s258] ss:$0 sm:$0xff]
        %v260 = vmul.f32 %v257, %v257
        %261 = vadd.xlane.f32.xlu0 %v260
        %v262 = vpop.xlane.xlu0 %261
        %v263 = vsub.f32 %v259, %v262
        %v264 = vrsqrt.pop %v263
        %v265 = vld [vmem:[%s101] sm:$0xff]
        %v266 = vld [vmem:[%s109] sm:$0xff]
        %v267 = vmul.f32 %v266, %v257
        %268 = vadd.xlane.f32.xlu0 %v267
        %v269 = vpop.xlane.xlu0 %268
        %v270 = vsub.f32 %v265, %v269
        %v271 = vmul.f32 %v270, %v264
        %vm272 = vcmask 1047555
        %vm273 = vmand %vm255, %vm272
        %v274 = vsel %vm273, %v271, 0.0
        %v275 = vadd.f32 %v266, %v274
        %276 = vst [vmem:[%s109] sm:$0xff] %v275
        %s277 = scalar_lea.vmem %s101, 8 [#allocation0]
        %v278 = vld [vmem:[%s277] sm:$0xff]
        %s279 = scalar_lea.vmem %s109, 8 [#allocation1]
        %v280 = vld [vmem:[%s279] sm:$0xff]
        %v281 = vmul.f32 %v280, %v257
        %282 = vadd.xlane.f32.xlu0 %v281
        %v283 = vpop.xlane.xlu0 %282
        %v284 = vsub.f32 %v278, %v283
        %v285 = vmul.f32 %v284, %v264
        %v286 = vsel %vm255, %v285, 0.0
        %v287 = vadd.f32 %v280, %v286
        %s288 = scalar_lea.vmem %s109, 8 [#allocation1]
        %289 = vst [vmem:[%s288] sm:$0xff] %v287
        %s290 = scalar_lea.vmem %s101, 16 [#allocation0]
        %v291 = vld [vmem:[%s290] sm:$0xff]
        %s292 = scalar_lea.vmem %s109, 16 [#allocation1]
        %v293 = vld [vmem:[%s292] sm:$0xff]
        %v294 = vmul.f32 %v293, %v257
        %295 = vadd.xlane.f32.xlu0 %v294
        %v296 = vpop.xlane.xlu0 %295
        %v297 = vsub.f32 %v291, %v296
        %v298 = vmul.f32 %v297, %v264
        %v299 = vsel %vm255, %v298, 0.0
        %v300 = vadd.f32 %v293, %v299
        %s301 = scalar_lea.vmem %s109, 16 [#allocation1]
        %302 = vst [vmem:[%s301] sm:$0xff] %v300
        %vm303 = vcmask 39968
        %s304 = scalar_lea.vmem %s109, 4 [#allocation1]
        %v305 = vld [vmem:[%s304] ss:$0 sm:$0xff]
        %s306 = scalar_lea.vmem %s101, 4 [#allocation0]
        %v307 = vld [vmem:[%s306] ss:$0 sm:$0xff]
        %v308 = vmul.f32 %v305, %v305
        %309 = vadd.xlane.f32.xlu0 %v308
        %v310 = vpop.xlane.xlu0 %309
        %v311 = vsub.f32 %v307, %v310
        %v312 = vrsqrt.pop %v311
        %v313 = vld [vmem:[%s101] sm:$0xff]
        %v314 = vld [vmem:[%s109] sm:$0xff]
        %v315 = vmul.f32 %v314, %v305
        %316 = vadd.xlane.f32.xlu0 %v315
        %v317 = vpop.xlane.xlu0 %316
        %v318 = vsub.f32 %v313, %v317
        %v319 = vmul.f32 %v318, %v312
        %vm320 = vcmask 1047556
        %vm321 = vmand %vm303, %vm320
        %v322 = vsel %vm321, %v319, 0.0
        %v323 = vadd.f32 %v314, %v322
        %324 = vst [vmem:[%s109] sm:$0xff] %v323
        %s325 = scalar_lea.vmem %s101, 8 [#allocation0]
        %v326 = vld [vmem:[%s325] sm:$0xff]
        %s327 = scalar_lea.vmem %s109, 8 [#allocation1]
        %v328 = vld [vmem:[%s327] sm:$0xff]
        %v329 = vmul.f32 %v328, %v305
        %330 = vadd.xlane.f32.xlu0 %v329
        %v331 = vpop.xlane.xlu0 %330
        %v332 = vsub.f32 %v326, %v331
        %v333 = vmul.f32 %v332, %v312
        %v334 = vsel %vm303, %v333, 0.0
        %v335 = vadd.f32 %v328, %v334
        %s336 = scalar_lea.vmem %s109, 8 [#allocation1]
        %337 = vst [vmem:[%s336] sm:$0xff] %v335
        %s338 = scalar_lea.vmem %s101, 16 [#allocation0]
        %v339 = vld [vmem:[%s338] sm:$0xff]
        %s340 = scalar_lea.vmem %s109, 16 [#allocation1]
        %v341 = vld [vmem:[%s340] sm:$0xff]
        %v342 = vmul.f32 %v341, %v305
        %343 = vadd.xlane.f32.xlu0 %v342
        %v344 = vpop.xlane.xlu0 %343
        %v345 = vsub.f32 %v339, %v344
        %v346 = vmul.f32 %v345, %v312
        %v347 = vsel %vm303, %v346, 0.0
        %v348 = vadd.f32 %v341, %v347
        %s349 = scalar_lea.vmem %s109, 16 [#allocation1]
        %350 = vst [vmem:[%s349] sm:$0xff] %v348
        %vm351 = vcmask 48168
        %s352 = scalar_lea.vmem %s109, 5 [#allocation1]
        %v353 = vld [vmem:[%s352] ss:$0 sm:$0xff]
        %s354 = scalar_lea.vmem %s101, 5 [#allocation0]
        %v355 = vld [vmem:[%s354] ss:$0 sm:$0xff]
        %v356 = vmul.f32 %v353, %v353
        %357 = vadd.xlane.f32.xlu0 %v356
        %v358 = vpop.xlane.xlu0 %357
        %v359 = vsub.f32 %v355, %v358
        %v360 = vrsqrt.pop %v359
        %v361 = vld [vmem:[%s101] sm:$0xff]
        %v362 = vld [vmem:[%s109] sm:$0xff]
        %v363 = vmul.f32 %v362, %v353
        %364 = vadd.xlane.f32.xlu0 %v363
        %v365 = vpop.xlane.xlu0 %364
        %v366 = vsub.f32 %v361, %v365
        %v367 = vmul.f32 %v366, %v360
        %vm368 = vcmask 1047557
        %vm369 = vmand %vm351, %vm368
        %v370 = vsel %vm369, %v367, 0.0
        %v371 = vadd.f32 %v362, %v370
        %372 = vst [vmem:[%s109] sm:$0xff] %v371
        %s373 = scalar_lea.vmem %s101, 8 [#allocation0]
        %v374 = vld [vmem:[%s373] sm:$0xff]
        %s375 = scalar_lea.vmem %s109, 8 [#allocation1]
        %v376 = vld [vmem:[%s375] sm:$0xff]
        %v377 = vmul.f32 %v376, %v353
        %378 = vadd.xlane.f32.xlu0 %v377
        %v379 = vpop.xlane.xlu0 %378
        %v380 = vsub.f32 %v374, %v379
        %v381 = vmul.f32 %v380, %v360
        %v382 = vsel %vm351, %v381, 0.0
        %v383 = vadd.f32 %v376, %v382
        %s384 = scalar_lea.vmem %s109, 8 [#allocation1]
        %385 = vst [vmem:[%s384] sm:$0xff] %v383
        %s386 = scalar_lea.vmem %s101, 16 [#allocation0]
        %v387 = vld [vmem:[%s386] sm:$0xff]
        %s388 = scalar_lea.vmem %s109, 16 [#allocation1]
        %v389 = vld [vmem:[%s388] sm:$0xff]
        %v390 = vmul.f32 %v389, %v353
        %391 = vadd.xlane.f32.xlu0 %v390
        %v392 = vpop.xlane.xlu0 %391
        %v393 = vsub.f32 %v387, %v392
        %v394 = vmul.f32 %v393, %v360
        %v395 = vsel %vm351, %v394, 0.0
        %v396 = vadd.f32 %v389, %v395
        %s397 = scalar_lea.vmem %s109, 16 [#allocation1]
        %398 = vst [vmem:[%s397] sm:$0xff] %v396
        %vm399 = vcmask 56368
        %s400 = scalar_lea.vmem %s109, 6 [#allocation1]
        %v401 = vld [vmem:[%s400] ss:$0 sm:$0xff]
        %s402 = scalar_lea.vmem %s101, 6 [#allocation0]
        %v403 = vld [vmem:[%s402] ss:$0 sm:$0xff]
        %v404 = vmul.f32 %v401, %v401
        %405 = vadd.xlane.f32.xlu0 %v404
        %v406 = vpop.xlane.xlu0 %405
        %v407 = vsub.f32 %v403, %v406
        %v408 = vrsqrt.pop %v407
        %v409 = vld [vmem:[%s101] sm:$0xff]
        %v410 = vld [vmem:[%s109] sm:$0xff]
        %v411 = vmul.f32 %v410, %v401
        %412 = vadd.xlane.f32.xlu0 %v411
        %v413 = vpop.xlane.xlu0 %412
        %v414 = vsub.f32 %v409, %v413
        %v415 = vmul.f32 %v414, %v408
        %vm416 = vcmask 1047558
        %vm417 = vmand %vm399, %vm416
        %v418 = vsel %vm417, %v415, 0.0
        %v419 = vadd.f32 %v410, %v418
        %420 = vst [vmem:[%s109] sm:$0xff] %v419
        %s421 = scalar_lea.vmem %s101, 8 [#allocation0]
        %v422 = vld [vmem:[%s421] sm:$0xff]
        %s423 = scalar_lea.vmem %s109, 8 [#allocation1]
        %v424 = vld [vmem:[%s423] sm:$0xff]
        %v425 = vmul.f32 %v424, %v401
        %426 = vadd.xlane.f32.xlu0 %v425
        %v427 = vpop.xlane.xlu0 %426
        %v428 = vsub.f32 %v422, %v427
        %v429 = vmul.f32 %v428, %v408
        %v430 = vsel %vm399, %v429, 0.0
        %v431 = vadd.f32 %v424, %v430
        %s432 = scalar_lea.vmem %s109, 8 [#allocation1]
        %433 = vst [vmem:[%s432] sm:$0xff] %v431
        %s434 = scalar_lea.vmem %s101, 16 [#allocation0]
        %v435 = vld [vmem:[%s434] sm:$0xff]
        %s436 = scalar_lea.vmem %s109, 16 [#allocation1]
        %v437 = vld [vmem:[%s436] sm:$0xff]
        %v438 = vmul.f32 %v437, %v401
        %439 = vadd.xlane.f32.xlu0 %v438
        %v440 = vpop.xlane.xlu0 %439
        %v441 = vsub.f32 %v435, %v440
        %v442 = vmul.f32 %v441, %v408
        %v443 = vsel %vm399, %v442, 0.0
        %v444 = vadd.f32 %v437, %v443
        %s445 = scalar_lea.vmem %s109, 16 [#allocation1]
        %446 = vst [vmem:[%s445] sm:$0xff] %v444
        %vm447 = vcmask 64568
        %s448 = scalar_lea.vmem %s109, 7 [#allocation1]
        %v449 = vld [vmem:[%s448] ss:$0 sm:$0xff]
        %s450 = scalar_lea.vmem %s101, 7 [#allocation0]
        %v451 = vld [vmem:[%s450] ss:$0 sm:$0xff]
        %v452 = vmul.f32 %v449, %v449
        %453 = vadd.xlane.f32.xlu0 %v452
        %v454 = vpop.xlane.xlu0 %453
        %v455 = vsub.f32 %v451, %v454
        %v456 = vrsqrt.pop %v455
        %v457 = vld [vmem:[%s101] sm:$0xff]
        %v458 = vld [vmem:[%s109] sm:$0xff]
        %v459 = vmul.f32 %v458, %v449
        %460 = vadd.xlane.f32.xlu0 %v459
        %v461 = vpop.xlane.xlu0 %460
        %v462 = vsub.f32 %v457, %v461
        %v463 = vmul.f32 %v462, %v456
        %vm464 = vcmask 1047559
        %vm465 = vmand %vm447, %vm464
        %v466 = vsel %vm465, %v463, 0.0
        %v467 = vadd.f32 %v458, %v466
        %468 = vst [vmem:[%s109] sm:$0xff] %v467
        %s469 = scalar_lea.vmem %s101, 8 [#allocation0]
        %v470 = vld [vmem:[%s469] sm:$0xff]
        %s471 = scalar_lea.vmem %s109, 8 [#allocation1]
        %v472 = vld [vmem:[%s471] sm:$0xff]
        %v473 = vmul.f32 %v472, %v449
        %474 = vadd.xlane.f32.xlu0 %v473
        %v475 = vpop.xlane.xlu0 %474
        %v476 = vsub.f32 %v470, %v475
        %v477 = vmul.f32 %v476, %v456
        %v478 = vsel %vm447, %v477, 0.0
        %v479 = vadd.f32 %v472, %v478
        %s480 = scalar_lea.vmem %s109, 8 [#allocation1]
        %481 = vst [vmem:[%s480] sm:$0xff] %v479
        %s482 = scalar_lea.vmem %s101, 16 [#allocation0]
        %v483 = vld [vmem:[%s482] sm:$0xff]
        %s484 = scalar_lea.vmem %s109, 16 [#allocation1]
        %v485 = vld [vmem:[%s484] sm:$0xff]
        %v486 = vmul.f32 %v485, %v449
        %487 = vadd.xlane.f32.xlu0 %v486
        %v488 = vpop.xlane.xlu0 %487
        %v489 = vsub.f32 %v483, %v488
        %v490 = vmul.f32 %v489, %v456
        %v491 = vsel %vm447, %v490, 0.0
        %v492 = vadd.f32 %v485, %v491
        %s493 = scalar_lea.vmem %s109, 16 [#allocation1]
        %494 = vst [vmem:[%s493] sm:$0xff] %v492
        %vm495 = vcmask 72768
        %s496 = scalar_lea.vmem %s109, 8 [#allocation1]
        %v497 = vld [vmem:[%s496] ss:$0 sm:$0xff]
        %s498 = scalar_lea.vmem %s101, 8 [#allocation0]
        %v499 = vld [vmem:[%s498] ss:$0 sm:$0xff]
        %v500 = vmul.f32 %v497, %v497
        %501 = vadd.xlane.f32.xlu0 %v500
        %v502 = vpop.xlane.xlu0 %501
        %v503 = vsub.f32 %v499, %v502
        %v504 = vrsqrt.pop %v503
        %s505 = scalar_lea.vmem %s101, 8 [#allocation0]
        %v506 = vld [vmem:[%s505] sm:$0xff]
        %s507 = scalar_lea.vmem %s109, 8 [#allocation1]
        %v508 = vld [vmem:[%s507] sm:$0xff]
        %v509 = vmul.f32 %v508, %v497
        %510 = vadd.xlane.f32.xlu0 %v509
        %v511 = vpop.xlane.xlu0 %510
        %v512 = vsub.f32 %v506, %v511
        %v513 = vmul.f32 %v512, %v504
        %v514 = vsel %vm495, %v513, 0.0
        %v515 = vadd.f32 %v508, %v514
        %s516 = scalar_lea.vmem %s109, 8 [#allocation1]
        %517 = vst [vmem:[%s516] sm:$0xff] %v515
        %s518 = scalar_lea.vmem %s101, 16 [#allocation0]
        %v519 = vld [vmem:[%s518] sm:$0xff]
        %s520 = scalar_lea.vmem %s109, 16 [#allocation1]
        %v521 = vld [vmem:[%s520] sm:$0xff]
        %v522 = vmul.f32 %v521, %v497
        %523 = vadd.xlane.f32.xlu0 %v522
        %v524 = vpop.xlane.xlu0 %523
        %v525 = vsub.f32 %v519, %v524
        %v526 = vmul.f32 %v525, %v504
        %v527 = vsel %vm495, %v526, 0.0
        %v528 = vadd.f32 %v521, %v527
        %s529 = scalar_lea.vmem %s109, 16 [#allocation1]
        %530 = vst [vmem:[%s529] sm:$0xff] %v528
        %vm531 = vcmask 80968
        %s532 = scalar_lea.vmem %s109, 9 [#allocation1]
        %v533 = vld [vmem:[%s532] ss:$0 sm:$0xff]
        %s534 = scalar_lea.vmem %s101, 9 [#allocation0]
        %v535 = vld [vmem:[%s534] ss:$0 sm:$0xff]
        %v536 = vmul.f32 %v533, %v533
        %537 = vadd.xlane.f32.xlu0 %v536
        %v538 = vpop.xlane.xlu0 %537
        %v539 = vsub.f32 %v535, %v538
        %v540 = vrsqrt.pop %v539
        %s541 = scalar_lea.vmem %s101, 8 [#allocation0]
        %v542 = vld [vmem:[%s541] sm:$0xff]
        %s543 = scalar_lea.vmem %s109, 8 [#allocation1]
        %v544 = vld [vmem:[%s543] sm:$0xff]
        %v545 = vmul.f32 %v544, %v533
        %546 = vadd.xlane.f32.xlu0 %v545
        %v547 = vpop.xlane.xlu0 %546
        %v548 = vsub.f32 %v542, %v547
        %v549 = vmul.f32 %v548, %v540
        %vm550 = vcmask 1047553
        %vm551 = vmand %vm531, %vm550
        %v552 = vsel %vm551, %v549, 0.0
        %v553 = vadd.f32 %v544, %v552
        %s554 = scalar_lea.vmem %s109, 8 [#allocation1]
        %555 = vst [vmem:[%s554] sm:$0xff] %v553
        %s556 = scalar_lea.vmem %s101, 16 [#allocation0]
        %v557 = vld [vmem:[%s556] sm:$0xff]
        %s558 = scalar_lea.vmem %s109, 16 [#allocation1]
        %v559 = vld [vmem:[%s558] sm:$0xff]
        %v560 = vmul.f32 %v559, %v533
        %561 = vadd.xlane.f32.xlu0 %v560
        %v562 = vpop.xlane.xlu0 %561
        %v563 = vsub.f32 %v557, %v562
        %v564 = vmul.f32 %v563, %v540
        %v565 = vsel %vm531, %v564, 0.0
        %v566 = vadd.f32 %v559, %v565
        %s567 = scalar_lea.vmem %s109, 16 [#allocation1]
        %568 = vst [vmem:[%s567] sm:$0xff] %v566
        %vm569 = vcmask 89168
        %s570 = scalar_lea.vmem %s109, 10 [#allocation1]
        %v571 = vld [vmem:[%s570] ss:$0 sm:$0xff]
        %s572 = scalar_lea.vmem %s101, 10 [#allocation0]
        %v573 = vld [vmem:[%s572] ss:$0 sm:$0xff]
        %v574 = vmul.f32 %v571, %v571
        %575 = vadd.xlane.f32.xlu0 %v574
        %v576 = vpop.xlane.xlu0 %575
        %v577 = vsub.f32 %v573, %v576
        %v578 = vrsqrt.pop %v577
        %s579 = scalar_lea.vmem %s101, 8 [#allocation0]
        %v580 = vld [vmem:[%s579] sm:$0xff]
        %s581 = scalar_lea.vmem %s109, 8 [#allocation1]
        %v582 = vld [vmem:[%s581] sm:$0xff]
        %v583 = vmul.f32 %v582, %v571
        %584 = vadd.xlane.f32.xlu0 %v583
        %v585 = vpop.xlane.xlu0 %584
        %v586 = vsub.f32 %v580, %v585
        %v587 = vmul.f32 %v586, %v578
        %vm588 = vcmask 1047554
        %vm589 = vmand %vm569, %vm588
        %v590 = vsel %vm589, %v587, 0.0
        %v591 = vadd.f32 %v582, %v590
        %s592 = scalar_lea.vmem %s109, 8 [#allocation1]
        %593 = vst [vmem:[%s592] sm:$0xff] %v591
        %s594 = scalar_lea.vmem %s101, 16 [#allocation0]
        %v595 = vld [vmem:[%s594] sm:$0xff]
        %s596 = scalar_lea.vmem %s109, 16 [#allocation1]
        %v597 = vld [vmem:[%s596] sm:$0xff]
        %v598 = vmul.f32 %v597, %v571
        %599 = vadd.xlane.f32.xlu0 %v598
        %v600 = vpop.xlane.xlu0 %599
        %v601 = vsub.f32 %v595, %v600
        %v602 = vmul.f32 %v601, %v578
        %v603 = vsel %vm569, %v602, 0.0
        %v604 = vadd.f32 %v597, %v603
        %s605 = scalar_lea.vmem %s109, 16 [#allocation1]
        %606 = vst [vmem:[%s605] sm:$0xff] %v604
        %vm607 = vcmask 97368
        %s608 = scalar_lea.vmem %s109, 11 [#allocation1]
        %v609 = vld [vmem:[%s608] ss:$0 sm:$0xff]
        %s610 = scalar_lea.vmem %s101, 11 [#allocation0]
        %v611 = vld [vmem:[%s610] ss:$0 sm:$0xff]
        %v612 = vmul.f32 %v609, %v609
        %613 = vadd.xlane.f32.xlu0 %v612
        %v614 = vpop.xlane.xlu0 %613
        %v615 = vsub.f32 %v611, %v614
        %v616 = vrsqrt.pop %v615
        %s617 = scalar_lea.vmem %s101, 8 [#allocation0]
        %v618 = vld [vmem:[%s617] sm:$0xff]
        %s619 = scalar_lea.vmem %s109, 8 [#allocation1]
        %v620 = vld [vmem:[%s619] sm:$0xff]
        %v621 = vmul.f32 %v620, %v609
        %622 = vadd.xlane.f32.xlu0 %v621
        %v623 = vpop.xlane.xlu0 %622
        %v624 = vsub.f32 %v618, %v623
        %v625 = vmul.f32 %v624, %v616
        %vm626 = vcmask 1047555
        %vm627 = vmand %vm607, %vm626
        %v628 = vsel %vm627, %v625, 0.0
        %v629 = vadd.f32 %v620, %v628
        %s630 = scalar_lea.vmem %s109, 8 [#allocation1]
        %631 = vst [vmem:[%s630] sm:$0xff] %v629
        %s632 = scalar_lea.vmem %s101, 16 [#allocation0]
        %v633 = vld [vmem:[%s632] sm:$0xff]
        %s634 = scalar_lea.vmem %s109, 16 [#allocation1]
        %v635 = vld [vmem:[%s634] sm:$0xff]
        %v636 = vmul.f32 %v635, %v609
        %637 = vadd.xlane.f32.xlu0 %v636
        %v638 = vpop.xlane.xlu0 %637
        %v639 = vsub.f32 %v633, %v638
        %v640 = vmul.f32 %v639, %v616
        %v641 = vsel %vm607, %v640, 0.0
        %v642 = vadd.f32 %v635, %v641
        %s643 = scalar_lea.vmem %s109, 16 [#allocation1]
        %644 = vst [vmem:[%s643] sm:$0xff] %v642
        %vm645 = vcmask 105568
        %s646 = scalar_lea.vmem %s109, 12 [#allocation1]
        %v647 = vld [vmem:[%s646] ss:$0 sm:$0xff]
        %s648 = scalar_lea.vmem %s101, 12 [#allocation0]
        %v649 = vld [vmem:[%s648] ss:$0 sm:$0xff]
        %v650 = vmul.f32 %v647, %v647
        %651 = vadd.xlane.f32.xlu0 %v650
        %v652 = vpop.xlane.xlu0 %651
        %v653 = vsub.f32 %v649, %v652
        %v654 = vrsqrt.pop %v653
        %s655 = scalar_lea.vmem %s101, 8 [#allocation0]
        %v656 = vld [vmem:[%s655] sm:$0xff]
        %s657 = scalar_lea.vmem %s109, 8 [#allocation1]
        %v658 = vld [vmem:[%s657] sm:$0xff]
        %v659 = vmul.f32 %v658, %v647
        %660 = vadd.xlane.f32.xlu0 %v659
        %v661 = vpop.xlane.xlu0 %660
        %v662 = vsub.f32 %v656, %v661
        %v663 = vmul.f32 %v662, %v654
        %vm664 = vcmask 1047556
        %vm665 = vmand %vm645, %vm664
        %v666 = vsel %vm665, %v663, 0.0
        %v667 = vadd.f32 %v658, %v666
        %s668 = scalar_lea.vmem %s109, 8 [#allocation1]
        %669 = vst [vmem:[%s668] sm:$0xff] %v667
        %s670 = scalar_lea.vmem %s101, 16 [#allocation0]
        %v671 = vld [vmem:[%s670] sm:$0xff]
        %s672 = scalar_lea.vmem %s109, 16 [#allocation1]
        %v673 = vld [vmem:[%s672] sm:$0xff]
        %v674 = vmul.f32 %v673, %v647
        %675 = vadd.xlane.f32.xlu0 %v674
        %v676 = vpop.xlane.xlu0 %675
        %v677 = vsub.f32 %v671, %v676
        %v678 = vmul.f32 %v677, %v654
        %v679 = vsel %vm645, %v678, 0.0
        %v680 = vadd.f32 %v673, %v679
        %s681 = scalar_lea.vmem %s109, 16 [#allocation1]
        %682 = vst [vmem:[%s681] sm:$0xff] %v680
        %vm683 = vcmask 113768
        %s684 = scalar_lea.vmem %s109, 13 [#allocation1]
        %v685 = vld [vmem:[%s684] ss:$0 sm:$0xff]
        %s686 = scalar_lea.vmem %s101, 13 [#allocation0]
        %v687 = vld [vmem:[%s686] ss:$0 sm:$0xff]
        %v688 = vmul.f32 %v685, %v685
        %689 = vadd.xlane.f32.xlu0 %v688
        %v690 = vpop.xlane.xlu0 %689
        %v691 = vsub.f32 %v687, %v690
        %v692 = vrsqrt.pop %v691
        %s693 = scalar_lea.vmem %s101, 8 [#allocation0]
        %v694 = vld [vmem:[%s693] sm:$0xff]
        %s695 = scalar_lea.vmem %s109, 8 [#allocation1]
        %v696 = vld [vmem:[%s695] sm:$0xff]
        %v697 = vmul.f32 %v696, %v685
        %698 = vadd.xlane.f32.xlu0 %v697
        %v699 = vpop.xlane.xlu0 %698
        %v700 = vsub.f32 %v694, %v699
        %v701 = vmul.f32 %v700, %v692
        %vm702 = vcmask 1047557
        %vm703 = vmand %vm683, %vm702
        %v704 = vsel %vm703, %v701, 0.0
        %v705 = vadd.f32 %v696, %v704
        %s706 = scalar_lea.vmem %s109, 8 [#allocation1]
        %707 = vst [vmem:[%s706] sm:$0xff] %v705
        %s708 = scalar_lea.vmem %s101, 16 [#allocation0]
        %v709 = vld [vmem:[%s708] sm:$0xff]
        %s710 = scalar_lea.vmem %s109, 16 [#allocation1]
        %v711 = vld [vmem:[%s710] sm:$0xff]
        %v712 = vmul.f32 %v711, %v685
        %713 = vadd.xlane.f32.xlu0 %v712
        %v714 = vpop.xlane.xlu0 %713
        %v715 = vsub.f32 %v709, %v714
        %v716 = vmul.f32 %v715, %v692
        %v717 = vsel %vm683, %v716, 0.0
        %v718 = vadd.f32 %v711, %v717
        %s719 = scalar_lea.vmem %s109, 16 [#allocation1]
        %720 = vst [vmem:[%s719] sm:$0xff] %v718
        %vm721 = vcmask 121968
        %s722 = scalar_lea.vmem %s109, 14 [#allocation1]
        %v723 = vld [vmem:[%s722] ss:$0 sm:$0xff]
        %s724 = scalar_lea.vmem %s101, 14 [#allocation0]
        %v725 = vld [vmem:[%s724] ss:$0 sm:$0xff]
        %v726 = vmul.f32 %v723, %v723
        %727 = vadd.xlane.f32.xlu0 %v726
        %v728 = vpop.xlane.xlu0 %727
        %v729 = vsub.f32 %v725, %v728
        %v730 = vrsqrt.pop %v729
        %s731 = scalar_lea.vmem %s101, 8 [#allocation0]
        %v732 = vld [vmem:[%s731] sm:$0xff]
        %s733 = scalar_lea.vmem %s109, 8 [#allocation1]
        %v734 = vld [vmem:[%s733] sm:$0xff]
        %v735 = vmul.f32 %v734, %v723
        %736 = vadd.xlane.f32.xlu0 %v735
        %v737 = vpop.xlane.xlu0 %736
        %v738 = vsub.f32 %v732, %v737
        %v739 = vmul.f32 %v738, %v730
        %vm740 = vcmask 1047558
        %vm741 = vmand %vm721, %vm740
        %v742 = vsel %vm741, %v739, 0.0
        %v743 = vadd.f32 %v734, %v742
        %s744 = scalar_lea.vmem %s109, 8 [#allocation1]
        %745 = vst [vmem:[%s744] sm:$0xff] %v743
        %s746 = scalar_lea.vmem %s101, 16 [#allocation0]
        %v747 = vld [vmem:[%s746] sm:$0xff]
        %s748 = scalar_lea.vmem %s109, 16 [#allocation1]
        %v749 = vld [vmem:[%s748] sm:$0xff]
        %v750 = vmul.f32 %v749, %v723
        %751 = vadd.xlane.f32.xlu0 %v750
        %v752 = vpop.xlane.xlu0 %751
        %v753 = vsub.f32 %v747, %v752
        %v754 = vmul.f32 %v753, %v730
        %v755 = vsel %vm721, %v754, 0.0
        %v756 = vadd.f32 %v749, %v755
        %s757 = scalar_lea.vmem %s109, 16 [#allocation1]
        %758 = vst [vmem:[%s757] sm:$0xff] %v756
        %vm759 = vcmask 130168
        %s760 = scalar_lea.vmem %s109, 15 [#allocation1]
        %v761 = vld [vmem:[%s760] ss:$0 sm:$0xff]
        %s762 = scalar_lea.vmem %s101, 15 [#allocation0]
        %v763 = vld [vmem:[%s762] ss:$0 sm:$0xff]
        %v764 = vmul.f32 %v761, %v761
        %765 = vadd.xlane.f32.xlu0 %v764
        %v766 = vpop.xlane.xlu0 %765
        %v767 = vsub.f32 %v763, %v766
        %v768 = vrsqrt.pop %v767
        %s769 = scalar_lea.vmem %s101, 8 [#allocation0]
        %v770 = vld [vmem:[%s769] sm:$0xff]
        %s771 = scalar_lea.vmem %s109, 8 [#allocation1]
        %v772 = vld [vmem:[%s771] sm:$0xff]
        %v773 = vmul.f32 %v772, %v761
        %774 = vadd.xlane.f32.xlu0 %v773
        %v775 = vpop.xlane.xlu0 %774
        %v776 = vsub.f32 %v770, %v775
        %v777 = vmul.f32 %v776, %v768
        %vm778 = vcmask 1047559
        %vm779 = vmand %vm759, %vm778
        %v780 = vsel %vm779, %v777, 0.0
        %v781 = vadd.f32 %v772, %v780
        %s782 = scalar_lea.vmem %s109, 8 [#allocation1]
        %783 = vst [vmem:[%s782] sm:$0xff] %v781
        %s784 = scalar_lea.vmem %s101, 16 [#allocation0]
        %v785 = vld [vmem:[%s784] sm:$0xff]
        %s786 = scalar_lea.vmem %s109, 16 [#allocation1]
        %v787 = vld [vmem:[%s786] sm:$0xff]
        %v788 = vmul.f32 %v787, %v761
        %789 = vadd.xlane.f32.xlu0 %v788
        %v790 = vpop.xlane.xlu0 %789
        %v791 = vsub.f32 %v785, %v790
        %v792 = vmul.f32 %v791, %v768
        %v793 = vsel %vm759, %v792, 0.0
        %v794 = vadd.f32 %v787, %v793
        %s795 = scalar_lea.vmem %s109, 16 [#allocation1]
        %796 = vst [vmem:[%s795] sm:$0xff] %v794
        %vm797 = vcmask 138368
        %s798 = scalar_lea.vmem %s109, 16 [#allocation1]
        %v799 = vld [vmem:[%s798] ss:$0 sm:$0xff]
        %s800 = scalar_lea.vmem %s101, 16 [#allocation0]
        %v801 = vld [vmem:[%s800] ss:$0 sm:$0xff]
        %v802 = vmul.f32 %v799, %v799
        %803 = vadd.xlane.f32.xlu0 %v802
        %v804 = vpop.xlane.xlu0 %803
        %v805 = vsub.f32 %v801, %v804
        %v806 = vrsqrt.pop %v805
        %s807 = scalar_lea.vmem %s101, 16 [#allocation0]
        %v808 = vld [vmem:[%s807] sm:$0xff]
        %s809 = scalar_lea.vmem %s109, 16 [#allocation1]
        %v810 = vld [vmem:[%s809] sm:$0xff]
        %v811 = vmul.f32 %v810, %v799
        %812 = vadd.xlane.f32.xlu0 %v811
        %v813 = vpop.xlane.xlu0 %812
        %v814 = vsub.f32 %v808, %v813
        %v815 = vmul.f32 %v814, %v806
        %v816 = vsel %vm797, %v815, 0.0
        %v817 = vadd.f32 %v810, %v816
        %s818 = scalar_lea.vmem %s109, 16 [#allocation1]
        %819 = vst [vmem:[%s818] sm:$0xff] %v817
        %vm820 = vcmask 146568
        %s821 = scalar_lea.vmem %s109, 17 [#allocation1]
        %v822 = vld [vmem:[%s821] ss:$0 sm:$0xff]
        %s823 = scalar_lea.vmem %s101, 17 [#allocation0]
        %v824 = vld [vmem:[%s823] ss:$0 sm:$0xff]
        %v825 = vmul.f32 %v822, %v822
        %826 = vadd.xlane.f32.xlu0 %v825
        %v827 = vpop.xlane.xlu0 %826
        %v828 = vsub.f32 %v824, %v827
        %v829 = vrsqrt.pop %v828
        %s830 = scalar_lea.vmem %s101, 16 [#allocation0]
        %v831 = vld [vmem:[%s830] sm:$0xff]
        %s832 = scalar_lea.vmem %s109, 16 [#allocation1]
        %v833 = vld [vmem:[%s832] sm:$0xff]
        %v834 = vmul.f32 %v833, %v822
        %835 = vadd.xlane.f32.xlu0 %v834
        %v836 = vpop.xlane.xlu0 %835
        %v837 = vsub.f32 %v831, %v836
        %v838 = vmul.f32 %v837, %v829
        %vm839 = vcmask 1047553
        %vm840 = vmand %vm820, %vm839
        %v841 = vsel %vm840, %v838, 0.0
        %v842 = vadd.f32 %v833, %v841
        %s843 = scalar_lea.vmem %s109, 16 [#allocation1]
        %844 = vst [vmem:[%s843] sm:$0xff] %v842
        %s845 = sand.u32 %s8, 1
        %s846 = sand.u32 %s8, 1
        %s847 = smul.addr %s846, 24
        %s848 = scalar_lea.vmem [#allocation1], %s847
        %s849 = sadd.s32 %s15, %s14
        %s850 = smul.addr %s13, 3
        %s851 = sadd.s32 %s849, %s850
        %s852 = smul.addr %s851, 8
        %s853 = scalar_lea.vmem %s1, %s852
        // Predicated region
        $region55: #{custom-call.12} parent=53 // pred_check
          _
        $region56: #{custom-call.12} parent=53 // pred_check_branch
          %855 = sbr.rel (0) target = $region58
        $region57: #{custom-call.12} parent=53 // pred_region
          // Predicated region
          $region59: #{custom-call.12} parent=57 // pred_check
            _
          $region60: #{custom-call.12} parent=57 // pred_check_branch
            %857 = sbr.rel (0) target = $region62
          $region61: #{custom-call.12} parent=57 // pred_region
            // Predicated region
            $region74: #{custom-call.12} parent=61 // pred_check
              _
            $region75: #{custom-call.12} parent=61 // pred_check_branch
              %877 = sbr.rel (0) target = $region77
            $region76: #{custom-call.12} parent=61 // pred_region
              loop: start=0, step=1, limit=1
              $region78: #{custom-call.12} parent=76 // loop_pre_header
                _
              $region79: #{custom-call.12} parent=76 // loop_header
                %s879 = sphi 0, %s883
                %p880 = scmp.ge.s32.totalorder %s879, 1
                %s884 = sphi %s848, %s848
                %s885 = sphi %s853, %s853
              $region80: #{custom-call.12} parent=76 // loop_header_branch
                %882 = sbr.rel (%p880) target = $region84
              $region81: #{custom-call.12} parent=76 // loop_body
                %v886 = vld [vmem:[%s884] sm:$0xff]
                %887 = vst [vmem:[%s885] sm:$0xff] %v886
                %v888 = vld [vmem:[%s884 + $0x8] sm:$0xff]
                %889 = vst [vmem:[%s885 + $0x8] sm:$0xff] %v888
                %v890 = vld [vmem:[%s884 + $0x10] sm:$0xff]
                %891 = vst [vmem:[%s885 + $0x10] sm:$0xff] %v890
              $region82: #{custom-call.12} parent=76 // loop_footer
                %s883 = sadd.s32 1, %s879
              $region83: #{custom-call.12} parent=76 // loop_footer_branch
                %878 = sbr.rel target = $region79
              $region84: #{custom-call.12} parent=76 // loop_exit
                _
            $region77: #{custom-call.12} parent=61 // pred_fallthru
              _
            // Predicated region
            $region85: #{custom-call.12} parent=61 // pred_check
              _
            $region86: #{custom-call.12} parent=61 // pred_check_branch
              %893 = sbr.rel target = $region88
            $region87: #{custom-call.12} parent=61 // pred_region
              _
            $region88: #{custom-call.12} parent=61 // pred_fallthru
              _
          $region62: #{custom-call.12} parent=57 // pred_fallthru
            _
          // Predicated region
          $region63: #{custom-call.12} parent=57 // pred_check
            _
          $region64: #{custom-call.12} parent=57 // pred_check_branch
            %859 = sbr.rel target = $region66
          $region65: #{custom-call.12} parent=57 // pred_region
            %s861 = ssub.s32 256, 1
            loop: start=0, step=1, limit=1
            $region67: #{custom-call.12} parent=65 // loop_pre_header
              _
            $region68: #{custom-call.12} parent=65 // loop_header
              %s863 = sphi 0, %s867
              %p864 = scmp.ge.s32.totalorder %s863, 1
              %s868 = sphi %s848, %s848
              %s869 = sphi %s853, %s853
            $region69: #{custom-call.12} parent=65 // loop_header_branch
              %866 = sbr.rel (%p864) target = $region73
            $region70: #{custom-call.12} parent=65 // loop_body
              %v870 = vld [vmem:[%s868] sm:%s861]
              %871 = vst [vmem:[%s869] sm:%s861] %v870
              %v872 = vld [vmem:[%s868 + $0x8] sm:%s861]
              %873 = vst [vmem:[%s869 + $0x8] sm:%s861] %v872
              %v874 = vld [vmem:[%s868 + $0x10] sm:%s861]
              %875 = vst [vmem:[%s869 + $0x10] sm:%s861] %v874
            $region71: #{custom-call.12} parent=65 // loop_footer
              %s867 = sadd.s32 1, %s863
            $region72: #{custom-call.12} parent=65 // loop_footer_branch
              %862 = sbr.rel target = $region68
            $region73: #{custom-call.12} parent=65 // loop_exit
              _
          $region66: #{custom-call.12} parent=57 // pred_fallthru
            _
        $region58: #{custom-call.12} parent=53 // pred_fallthru
          _
        %894 = vnop
      $region54: #{custom-call.12} parent=5 // pred_fallthru
        _
      %p895 = scmp.le.s32.totalorder 2, %s3
      // Predicated region
      $region89: #{custom-call.12} parent=5 // pred_check
        %p896 = pneg %p895
      $region90: #{custom-call.12} parent=5 // pred_check_branch
        %898 = sbr.rel (%p896) target = $region92
      $region91: #{custom-call.12} parent=5 // pred_region
        %s899 = ssub.s32 %s3, 2
        %s900 = sand.u32 %s9, 1
        %s901 = sand.u32 %s9, 1
        %s902 = smul.addr %s901, 24
        %s903 = scalar_lea.vmem [#allocation1], %s902
      $region92: #{custom-call.12} parent=5 // pred_fallthru
        _
    $region6: #{custom-call.12} parent=1 // loop_footer
      %s7 = sadd.s32 1, %s3
    $region7: #{custom-call.12} parent=1 // loop_footer_branch
      %2 = sbr.rel target = $region3
    $region8: #{custom-call.12} parent=1 // loop_exit
      _

// kernel: custom-call.51
$region0: #{custom-call.51}
  %s0 = inlined_call_operand.vmem [shape: f32[2,1,18,18], index: 0, kind: input, shape index: {}]
  %s1 = inlined_call_operand.vmem [shape: f32[2,1,18,18], index: 1, kind: output, shape index: {}]
  $region1: #{custom-call.51} parent=0
    #allocation0 [shape = 'u8[24576]{0}', space=vmem, size = 0x6000, scoped, tag = 'operand span for operand 0']
    #allocation1 [shape = 'u8[24576]{0}', space=vmem, size = 0x6000, scoped, tag = 'operand span for operand 1']
    loop: start=0, step=1, limit=4
    $region2: #{custom-call.51} parent=1 // loop_pre_header
      _
    $region3: #{custom-call.51} parent=1 // loop_header
      %s3 = sphi 0, %s7
      %p4 = scmp.ge.s32.totalorder %s3, 4
      %s10 = sphi 0, %s36
      %s11 = sphi 0, %s32
      %s12 = sphi 0, %s28
      %s13 = sphi 0, %s24
      %s14 = sphi 0, %s10
      %s15 = sphi 0, %s11
      %s16 = sphi 0, %s12
      %s17 = sphi 0, %s13
      %s18 = sphi 0, %s14
      %s19 = sphi 0, %s15
      %s20 = sphi 0, %s16
      %s21 = sphi 0, %s17
    $region4: #{custom-call.51} parent=1 // loop_header_branch
      %6 = sbr.rel (%p4) target = $region8
    $region5: #{custom-call.51} parent=1 // loop_body
      %s8 = ssub.s32 %s3, 1
      %s9 = ssub.s32 %s3, 2
      %s22 = sadd.s32 1, %s13
      %p23 = scmp.ge.s32.totalorder %s22, 1
      %s24 = scalar_select %p23, 0, %s22
      %s25 = sadd.s32 1, %s12
      %s26 = scalar_select %p23, %s25, %s12
      %p27 = scmp.ge.s32.totalorder %s26, 1
      %s28 = scalar_select %p27, 0, %s26
      %s29 = sadd.s32 1, %s11
      %s30 = scalar_select %p27, %s29, %s11
      %p31 = scmp.ge.s32.totalorder %s30, 1
      %s32 = scalar_select %p31, 0, %s30
      %s33 = sadd.s32 1, %s10
      %s34 = scalar_select %p31, %s33, %s10
      %p35 = scmp.ge.s32.totalorder %s34, 2
      %s36 = scalar_select %p35, 0, %s34
      %p37 = scmp.le.s32.totalorder 1, %s3
      %p38 = scmp.lt.s32.totalorder %s3, 3
      %p39 = pnand %p37, %p38
      %p40 = pneg %p39
      // Predicated region
      $region9: #{custom-call.51} parent=5 // pred_check
        _
      $region10: #{custom-call.51} parent=5 // pred_check_branch
        %42 = sbr.rel (%p39) target = $region12
      $region11: #{custom-call.51} parent=5 // pred_region
        %s43 = ssub.s32 %s3, 1
      $region12: #{custom-call.51} parent=5 // pred_fallthru
        _
      %p44 = scmp.lt.s32.totalorder %s3, 2
      // Predicated region
      $region13: #{custom-call.51} parent=5 // pred_check
        %p45 = pneg %p44
      $region14: #{custom-call.51} parent=5 // pred_check_branch
        %47 = sbr.rel (%p45) target = $region16
      $region15: #{custom-call.51} parent=5 // pred_region
        %s48 = sand.u32 %s3, 1
        %s49 = sand.u32 %s3, 1
        %s50 = smul.addr %s49, 24
        %s51 = scalar_lea.vmem [#allocation0], %s50
        %s52 = sadd.s32 %s13, %s12
        %s53 = smul.addr %s11, 3
        %s54 = sadd.s32 %s52, %s53
        %s55 = smul.addr %s10, 3
        %s56 = sadd.s32 %s54, %s55
        %s57 = smul.addr %s56, 8
        %s58 = scalar_lea.vmem %s0, %s57
        // Predicated region
        $region17: #{custom-call.51} parent=15 // pred_check
          _
        $region18: #{custom-call.51} parent=15 // pred_check_branch
          %60 = sbr.rel (0) target = $region20
        $region19: #{custom-call.51} parent=15 // pred_region
          // Predicated region
          $region21: #{custom-call.51} parent=19 // pred_check
            _
          $region22: #{custom-call.51} parent=19 // pred_check_branch
            %62 = sbr.rel (0) target = $region24
          $region23: #{custom-call.51} parent=19 // pred_region
            // Predicated region
            $region36: #{custom-call.51} parent=23 // pred_check
              _
            $region37: #{custom-call.51} parent=23 // pred_check_branch
              %82 = sbr.rel (0) target = $region39
            $region38: #{custom-call.51} parent=23 // pred_region
              loop: start=0, step=1, limit=1
              $region40: #{custom-call.51} parent=38 // loop_pre_header
                _
              $region41: #{custom-call.51} parent=38 // loop_header
                %s84 = sphi 0, %s88
                %p85 = scmp.ge.s32.totalorder %s84, 1
                %s89 = sphi %s58, %s58
                %s90 = sphi %s51, %s51
              $region42: #{custom-call.51} parent=38 // loop_header_branch
                %87 = sbr.rel (%p85) target = $region46
              $region43: #{custom-call.51} parent=38 // loop_body
                %v91 = vld [vmem:[%s89] sm:$0xff]
                %92 = vst [vmem:[%s90] sm:$0xff] %v91
                %v93 = vld [vmem:[%s89 + $0x8] sm:$0xff]
                %94 = vst [vmem:[%s90 + $0x8] sm:$0xff] %v93
                %v95 = vld [vmem:[%s89 + $0x10] sm:$0xff]
                %96 = vst [vmem:[%s90 + $0x10] sm:$0xff] %v95
              $region44: #{custom-call.51} parent=38 // loop_footer
                %s88 = sadd.s32 1, %s84
              $region45: #{custom-call.51} parent=38 // loop_footer_branch
                %83 = sbr.rel target = $region41
              $region46: #{custom-call.51} parent=38 // loop_exit
                _
            $region39: #{custom-call.51} parent=23 // pred_fallthru
              _
            // Predicated region
            $region47: #{custom-call.51} parent=23 // pred_check
              _
            $region48: #{custom-call.51} parent=23 // pred_check_branch
              %98 = sbr.rel target = $region50
            $region49: #{custom-call.51} parent=23 // pred_region
              _
            $region50: #{custom-call.51} parent=23 // pred_fallthru
              _
          $region24: #{custom-call.51} parent=19 // pred_fallthru
            _
          // Predicated region
          $region25: #{custom-call.51} parent=19 // pred_check
            _
          $region26: #{custom-call.51} parent=19 // pred_check_branch
            %64 = sbr.rel target = $region28
          $region27: #{custom-call.51} parent=19 // pred_region
            %s66 = ssub.s32 256, 1
            loop: start=0, step=1, limit=1
            $region29: #{custom-call.51} parent=27 // loop_pre_header
              _
            $region30: #{custom-call.51} parent=27 // loop_header
              %s68 = sphi 0, %s72
              %p69 = scmp.ge.s32.totalorder %s68, 1
              %s73 = sphi %s58, %s58
              %s74 = sphi %s51, %s51
            $region31: #{custom-call.51} parent=27 // loop_header_branch
              %71 = sbr.rel (%p69) target = $region35
            $region32: #{custom-call.51} parent=27 // loop_body
              %v75 = vld [vmem:[%s73] sm:%s66]
              %76 = vst [vmem:[%s74] sm:%s66] %v75
              %v77 = vld [vmem:[%s73 + $0x8] sm:%s66]
              %78 = vst [vmem:[%s74 + $0x8] sm:%s66] %v77
              %v79 = vld [vmem:[%s73 + $0x10] sm:%s66]
              %80 = vst [vmem:[%s74 + $0x10] sm:%s66] %v79
            $region33: #{custom-call.51} parent=27 // loop_footer
              %s72 = sadd.s32 1, %s68
            $region34: #{custom-call.51} parent=27 // loop_footer_branch
              %67 = sbr.rel target = $region30
            $region35: #{custom-call.51} parent=27 // loop_exit
              _
          $region28: #{custom-call.51} parent=19 // pred_fallthru
            _
        $region20: #{custom-call.51} parent=15 // pred_fallthru
          _
        %99 = vnop
      $region16: #{custom-call.51} parent=5 // pred_fallthru
        _
      %p100 = scmp.le.s32.totalorder 1, %s3
      %p101 = scmp.lt.s32.totalorder %s3, 3
      %p102 = pnand %p100, %p101
      %p103 = pneg %p102
      // Predicated region
      $region51: #{custom-call.51} parent=5 // pred_check
        _
      $region52: #{custom-call.51} parent=5 // pred_check_branch
        %105 = sbr.rel (%p102) target = $region54
      $region53: #{custom-call.51} parent=5 // pred_region
        #allocation2 [shape = 'f32[18,18]{1,0}', space=vmem, size = 0x3000, scoped, tag = 'rescaled input a']
        %s106 = ssub.s32 %s3, 1
        %s107 = sand.u32 %s8, 1
        %s108 = sand.u32 %s8, 1
        %s109 = smul.addr %s108, 24
        %s110 = scalar_lea.vmem [#allocation0], %s109
        %s111 = sand.u32 %s8, 1
        %s112 = sand.u32 %s8, 1
        %s113 = smul.addr %s112, 24
        %s114 = scalar_lea.vmem [#allocation0], %s113
        %s115 = sand.u32 %s8, 1
        %s116 = sand.u32 %s8, 1
        %s117 = smul.addr %s116, 24
        %s118 = scalar_lea.vmem [#allocation1], %s117
        %v119 = vlaneseq
        %v120 = vand.u32 %v119, 127
        %vm121 = vcmp.lt.s32.totalorder %v120, 18
        %v122 = vlaneseq
        %v123 = vshrl.u32 %v122, 7
        %vm125 = vcmp.eq.s32.totalorder %v123, %v120
        %v126 = vld [vmem:[%s110] sm:$0xff]
        %v127 = vsel %vm125, %v126, 0.0
        %128 = vadd.xlane.f32.xlu0 %v127
        %v129 = vpop.xlane.xlu0 %128
        %vm130 = vcmp.ge.s32.totalorder %v123, %v120
        %vm131 = vmand %vm130, %vm121
        %v132 = vsel %vm131, %v126, 0.0
        %v133 = vrcp.pop %v129
        %v134 = vmul.f32 %v132, %v133
        %135 = vst [vmem:[#allocation2] sm:$0xff] %v134
        %s136 = scalar_lea.vmem %s110, 8 [#allocation0]
        %s137 = scalar_lea.vmem [#allocation2], 8
        %v138 = vlaneseq
        %v139 = vshrl.u32 %v138, 7
        %v140 = vadd.s32 %v139, 8
        %vm141 = vcmp.eq.s32.totalorder %v140, %v120
        %v142 = vld [vmem:[%s136] sm:$0xff]
        %v143 = vsel %vm141, %v142, 0.0
        %144 = vadd.xlane.f32.xlu0 %v143
        %v145 = vpop.xlane.xlu0 %144
        %vm146 = vcmp.ge.s32.totalorder %v140, %v120
        %vm147 = vmand %vm146, %vm121
        %v148 = vsel %vm147, %v142, 0.0
        %v149 = vrcp.pop %v145
        %v150 = vmul.f32 %v148, %v149
        %151 = vst [vmem:[%s137] sm:$0xff] %v150
        %s152 = scalar_lea.vmem %s110, 16 [#allocation0]
        %s153 = scalar_lea.vmem [#allocation2], 16
        %v154 = vlaneseq
        %v155 = vshrl.u32 %v154, 7
        %v156 = vadd.s32 %v155, 16
        %vm157 = vcmp.eq.s32.totalorder %v156, %v120
        %v158 = vld [vmem:[%s152] sm:$0xff]
        %v159 = vsel %vm157, %v158, 0.0
        %160 = vadd.xlane.f32.xlu0 %v159
        %v161 = vpop.xlane.xlu0 %160
        %vm162 = vcmp.ge.s32.totalorder %v156, %v120
        %vm163 = vmand %vm162, %vm121
        %v164 = vsel %vm163, %v158, 0.0
        %v165 = vrcp.pop %v161
        %v166 = vmul.f32 %v164, %v165
        %167 = vst [vmem:[%s153] sm:$0xff] %v166
        %v168 = vlaneseq
        %v169 = vand.u32 %v168, 127
        %v170 = vlaneseq
        %v171 = vshrl.u32 %v170, 7
        %vm173 = vcmp.eq.s32.totalorder %v169, %v171
        %v174 = vlaneseq
        %v175 = vand.u32 %v174, 127
        %vm176 = vcmp.eq.s32.totalorder %v175, 0
        %v177 = vsel %vm176, 1.0, -1.0
        %v178 = vsel %vm173, %v177, 0.0
        %v179 = vlaneseq
        %v180 = vand.u32 %v179, 127
        %v181 = vlaneseq
        %v182 = vshrl.u32 %v181, 7
        %v183 = vadd.s32 %v182, 8
        %vm184 = vcmp.eq.s32.totalorder %v180, %v183
        %v185 = vsel %vm184, -1.0, 0.0
        %v186 = vlaneseq
        %v187 = vand.u32 %v186, 127
        %v188 = vlaneseq
        %v189 = vshrl.u32 %v188, 7
        %v190 = vadd.s32 %v189, 16
        %vm191 = vcmp.eq.s32.totalorder %v187, %v190
        %v192 = vsel %vm191, -1.0, 0.0
        %s193 = scalar_lea.vmem [#allocation2], 1
        %v194 = vld [vmem:[%s193] ss:$0 sm:$0xff]
        %v195 = vxor.u32 %v194, 2147483648
        %v196 = vlaneseq
        %v197 = vand.u32 %v196, 127
        %vm198 = vcmp.eq.s32.totalorder %v197, 1
        %v199 = vmul.f32 %v195, %v178
        %200 = vadd.xlane.f32.xlu0 %v199
        %v201 = vpop.xlane.xlu0 %200
        %v202 = vsel %vm198, %v201, %v178
        %s203 = scalar_lea.vmem [#allocation2], 2
        %v204 = vld [vmem:[%s203] ss:$0 sm:$0xff]
        %v205 = vxor.u32 %v204, 2147483648
        %v206 = vlaneseq
        %v207 = vand.u32 %v206, 127
        %vm208 = vcmp.eq.s32.totalorder %v207, 2
        %v209 = vmul.f32 %v205, %v202
        %210 = vadd.xlane.f32.xlu0 %v209
        %v211 = vpop.xlane.xlu0 %210
        %v212 = vsel %vm208, %v211, %v202
        %s213 = scalar_lea.vmem [#allocation2], 3
        %v214 = vld [vmem:[%s213] ss:$0 sm:$0xff]
        %v215 = vxor.u32 %v214, 2147483648
        %v216 = vlaneseq
        %v217 = vand.u32 %v216, 127
        %vm218 = vcmp.eq.s32.totalorder %v217, 3
        %v219 = vmul.f32 %v215, %v212
        %220 = vadd.xlane.f32.xlu0 %v219
        %v221 = vpop.xlane.xlu0 %220
        %v222 = vsel %vm218, %v221, %v212
        %s223 = scalar_lea.vmem [#allocation2], 4
        %v224 = vld [vmem:[%s223] ss:$0 sm:$0xff]
        %v225 = vxor.u32 %v224, 2147483648
        %v226 = vlaneseq
        %v227 = vand.u32 %v226, 127
        %vm228 = vcmp.eq.s32.totalorder %v227, 4
        %v229 = vmul.f32 %v225, %v222
        %230 = vadd.xlane.f32.xlu0 %v229
        %v231 = vpop.xlane.xlu0 %230
        %v232 = vsel %vm228, %v231, %v222
        %s233 = scalar_lea.vmem [#allocation2], 5
        %v234 = vld [vmem:[%s233] ss:$0 sm:$0xff]
        %v235 = vxor.u32 %v234, 2147483648
        %v236 = vlaneseq
        %v237 = vand.u32 %v236, 127
        %vm238 = vcmp.eq.s32.totalorder %v237, 5
        %v239 = vmul.f32 %v235, %v232
        %240 = vadd.xlane.f32.xlu0 %v239
        %v241 = vpop.xlane.xlu0 %240
        %v242 = vsel %vm238, %v241, %v232
        %s243 = scalar_lea.vmem [#allocation2], 6
        %v244 = vld [vmem:[%s243] ss:$0 sm:$0xff]
        %v245 = vxor.u32 %v244, 2147483648
        %v246 = vlaneseq
        %v247 = vand.u32 %v246, 127
        %vm248 = vcmp.eq.s32.totalorder %v247, 6
        %v249 = vmul.f32 %v245, %v242
        %250 = vadd.xlane.f32.xlu0 %v249
        %v251 = vpop.xlane.xlu0 %250
        %v252 = vsel %vm248, %v251, %v242
        %s253 = scalar_lea.vmem [#allocation2], 7
        %v254 = vld [vmem:[%s253] ss:$0 sm:$0xff]
        %v255 = vxor.u32 %v254, 2147483648
        %v256 = vlaneseq
        %v257 = vand.u32 %v256, 127
        %vm258 = vcmp.eq.s32.totalorder %v257, 7
        %v259 = vmul.f32 %v255, %v252
        %260 = vadd.xlane.f32.xlu0 %v259
        %v261 = vpop.xlane.xlu0 %260
        %v262 = vsel %vm258, %v261, %v252
        %s263 = scalar_lea.vmem [#allocation2], 8
        %v264 = vld [vmem:[%s263] ss:$0 sm:$0xff]
        %v265 = vxor.u32 %v264, 2147483648
        %v266 = vlaneseq
        %v267 = vand.u32 %v266, 127
        %vm268 = vcmp.eq.s32.totalorder %v267, 8
        %v269 = vmul.f32 %v265, %v262
        %270 = vadd.xlane.f32.xlu0 %v269
        %v271 = vpop.xlane.xlu0 %270
        %v272 = vsel %vm268, %v271, %v262
        %v273 = vmul.f32 %v265, %v185
        %274 = vadd.xlane.f32.xlu0 %v273
        %v275 = vpop.xlane.xlu0 %274
        %v276 = vsel %vm268, %v275, %v185
        %s277 = scalar_lea.vmem [#allocation2], 9
        %v278 = vld [vmem:[%s277] ss:$0 sm:$0xff]
        %v279 = vxor.u32 %v278, 2147483648
        %v280 = vlaneseq
        %v281 = vand.u32 %v280, 127
        %vm282 = vcmp.eq.s32.totalorder %v281, 9
        %v283 = vmul.f32 %v279, %v272
        %284 = vadd.xlane.f32.xlu0 %v283
        %v285 = vpop.xlane.xlu0 %284
        %v286 = vsel %vm282, %v285, %v272
        %v287 = vmul.f32 %v279, %v276
        %288 = vadd.xlane.f32.xlu0 %v287
        %v289 = vpop.xlane.xlu0 %288
        %v290 = vsel %vm282, %v289, %v276
        %s291 = scalar_lea.vmem [#allocation2], 10
        %v292 = vld [vmem:[%s291] ss:$0 sm:$0xff]
        %v293 = vxor.u32 %v292, 2147483648
        %v294 = vlaneseq
        %v295 = vand.u32 %v294, 127
        %vm296 = vcmp.eq.s32.totalorder %v295, 10
        %v297 = vmul.f32 %v293, %v286
        %298 = vadd.xlane.f32.xlu0 %v297
        %v299 = vpop.xlane.xlu0 %298
        %v300 = vsel %vm296, %v299, %v286
        %v301 = vmul.f32 %v293, %v290
        %302 = vadd.xlane.f32.xlu0 %v301
        %v303 = vpop.xlane.xlu0 %302
        %v304 = vsel %vm296, %v303, %v290
        %s305 = scalar_lea.vmem [#allocation2], 11
        %v306 = vld [vmem:[%s305] ss:$0 sm:$0xff]
        %v307 = vxor.u32 %v306, 2147483648
        %v308 = vlaneseq
        %v309 = vand.u32 %v308, 127
        %vm310 = vcmp.eq.s32.totalorder %v309, 11
        %v311 = vmul.f32 %v307, %v300
        %312 = vadd.xlane.f32.xlu0 %v311
        %v313 = vpop.xlane.xlu0 %312
        %v314 = vsel %vm310, %v313, %v300
        %v315 = vmul.f32 %v307, %v304
        %316 = vadd.xlane.f32.xlu0 %v315
        %v317 = vpop.xlane.xlu0 %316
        %v318 = vsel %vm310, %v317, %v304
        %s319 = scalar_lea.vmem [#allocation2], 12
        %v320 = vld [vmem:[%s319] ss:$0 sm:$0xff]
        %v321 = vxor.u32 %v320, 2147483648
        %v322 = vlaneseq
        %v323 = vand.u32 %v322, 127
        %vm324 = vcmp.eq.s32.totalorder %v323, 12
        %v325 = vmul.f32 %v321, %v314
        %326 = vadd.xlane.f32.xlu0 %v325
        %v327 = vpop.xlane.xlu0 %326
        %v328 = vsel %vm324, %v327, %v314
        %v329 = vmul.f32 %v321, %v318
        %330 = vadd.xlane.f32.xlu0 %v329
        %v331 = vpop.xlane.xlu0 %330
        %v332 = vsel %vm324, %v331, %v318
        %s333 = scalar_lea.vmem [#allocation2], 13
        %v334 = vld [vmem:[%s333] ss:$0 sm:$0xff]
        %v335 = vxor.u32 %v334, 2147483648
        %v336 = vlaneseq
        %v337 = vand.u32 %v336, 127
        %vm338 = vcmp.eq.s32.totalorder %v337, 13
        %v339 = vmul.f32 %v335, %v328
        %340 = vadd.xlane.f32.xlu0 %v339
        %v341 = vpop.xlane.xlu0 %340
        %v342 = vsel %vm338, %v341, %v328
        %v343 = vmul.f32 %v335, %v332
        %344 = vadd.xlane.f32.xlu0 %v343
        %v345 = vpop.xlane.xlu0 %344
        %v346 = vsel %vm338, %v345, %v332
        %s347 = scalar_lea.vmem [#allocation2], 14
        %v348 = vld [vmem:[%s347] ss:$0 sm:$0xff]
        %v349 = vxor.u32 %v348, 2147483648
        %v350 = vlaneseq
        %v351 = vand.u32 %v350, 127
        %vm352 = vcmp.eq.s32.totalorder %v351, 14
        %v353 = vmul.f32 %v349, %v342
        %354 = vadd.xlane.f32.xlu0 %v353
        %v355 = vpop.xlane.xlu0 %354
        %v356 = vsel %vm352, %v355, %v342
        %v357 = vmul.f32 %v349, %v346
        %358 = vadd.xlane.f32.xlu0 %v357
        %v359 = vpop.xlane.xlu0 %358
        %v360 = vsel %vm352, %v359, %v346
        %s361 = scalar_lea.vmem [#allocation2], 15
        %v362 = vld [vmem:[%s361] ss:$0 sm:$0xff]
        %v363 = vxor.u32 %v362, 2147483648
        %v364 = vlaneseq
        %v365 = vand.u32 %v364, 127
        %vm366 = vcmp.eq.s32.totalorder %v365, 15
        %v367 = vmul.f32 %v363, %v356
        %368 = vadd.xlane.f32.xlu0 %v367
        %v369 = vpop.xlane.xlu0 %368
        %v370 = vsel %vm366, %v369, %v356
        %v371 = vmul.f32 %v363, %v360
        %372 = vadd.xlane.f32.xlu0 %v371
        %v373 = vpop.xlane.xlu0 %372
        %v374 = vsel %vm366, %v373, %v360
        %s375 = scalar_lea.vmem [#allocation2], 16
        %v376 = vld [vmem:[%s375] ss:$0 sm:$0xff]
        %v377 = vxor.u32 %v376, 2147483648
        %v378 = vlaneseq
        %v379 = vand.u32 %v378, 127
        %vm380 = vcmp.eq.s32.totalorder %v379, 16
        %v381 = vmul.f32 %v377, %v370
        %382 = vadd.xlane.f32.xlu0 %v381
        %v383 = vpop.xlane.xlu0 %382
        %v384 = vsel %vm380, %v383, %v370
        %v385 = vmul.f32 %v377, %v374
        %386 = vadd.xlane.f32.xlu0 %v385
        %v387 = vpop.xlane.xlu0 %386
        %v388 = vsel %vm380, %v387, %v374
        %v389 = vmul.f32 %v377, %v192
        %390 = vadd.xlane.f32.xlu0 %v389
        %v391 = vpop.xlane.xlu0 %390
        %v392 = vsel %vm380, %v391, %v192
        %s393 = scalar_lea.vmem [#allocation2], 17
        %v394 = vld [vmem:[%s393] ss:$0 sm:$0xff]
        %v395 = vxor.u32 %v394, 2147483648
        %v396 = vlaneseq
        %v397 = vand.u32 %v396, 127
        %vm398 = vcmp.eq.s32.totalorder %v397, 17
        %v399 = vmul.f32 %v395, %v384
        %400 = vadd.xlane.f32.xlu0 %v399
        %v401 = vpop.xlane.xlu0 %400
        %v402 = vsel %vm398, %v401, %v384
        %v403 = vmul.f32 %v395, %v388
        %404 = vadd.xlane.f32.xlu0 %v403
        %v405 = vpop.xlane.xlu0 %404
        %v406 = vsel %vm398, %v405, %v388
        %v407 = vmul.f32 %v395, %v392
        %408 = vadd.xlane.f32.xlu0 %v407
        %v409 = vpop.xlane.xlu0 %408
        %v410 = vsel %vm398, %v409, %v392
        %v411 = vrcp.pop %v129
        %v412 = vmul.f32 %v402, %v411
        %vm413 = vweird.f32 %v129
        %v414 = vsel %vm413, %v402, %v412
        %415 = vst [vmem:[%s118] sm:$0xff] %v414
        %v416 = vrcp.pop %v145
        %v417 = vmul.f32 %v406, %v416
        %vm418 = vweird.f32 %v145
        %v419 = vsel %vm418, %v406, %v417
        %s420 = scalar_lea.vmem %s118, 8 [#allocation1]
        %421 = vst [vmem:[%s420] sm:$0xff] %v419
        %v422 = vrcp.pop %v161
        %v423 = vmul.f32 %v410, %v422
        %vm424 = vweird.f32 %v161
        %v425 = vsel %vm424, %v410, %v423
        %s426 = scalar_lea.vmem %s118, 16 [#allocation1]
        %427 = vst [vmem:[%s426] sm:$0xff] %v425
        %s428 = sand.u32 %s8, 1
        %s429 = sand.u32 %s8, 1
        %s430 = smul.addr %s429, 24
        %s431 = scalar_lea.vmem [#allocation1], %s430
        %s432 = sadd.s32 %s17, %s16
        %s433 = smul.addr %s15, 3
        %s434 = sadd.s32 %s432, %s433
        %s435 = smul.addr %s14, 3
        %s436 = sadd.s32 %s434, %s435
        %s437 = smul.addr %s436, 8
        %s438 = scalar_lea.vmem %s1, %s437
        // Predicated region
        $region55: #{custom-call.51} parent=53 // pred_check
          _
        $region56: #{custom-call.51} parent=53 // pred_check_branch
          %440 = sbr.rel (0) target = $region58
        $region57: #{custom-call.51} parent=53 // pred_region
          // Predicated region
          $region59: #{custom-call.51} parent=57 // pred_check
            _
          $region60: #{custom-call.51} parent=57 // pred_check_branch
            %442 = sbr.rel (0) target = $region62
          $region61: #{custom-call.51} parent=57 // pred_region
            // Predicated region
            $region74: #{custom-call.51} parent=61 // pred_check
              _
            $region75: #{custom-call.51} parent=61 // pred_check_branch
              %462 = sbr.rel (0) target = $region77
            $region76: #{custom-call.51} parent=61 // pred_region
              loop: start=0, step=1, limit=1
              $region78: #{custom-call.51} parent=76 // loop_pre_header
                _
              $region79: #{custom-call.51} parent=76 // loop_header
                %s464 = sphi 0, %s468
                %p465 = scmp.ge.s32.totalorder %s464, 1
                %s469 = sphi %s431, %s431
                %s470 = sphi %s438, %s438
              $region80: #{custom-call.51} parent=76 // loop_header_branch
                %467 = sbr.rel (%p465) target = $region84
              $region81: #{custom-call.51} parent=76 // loop_body
                %v471 = vld [vmem:[%s469] sm:$0xff]
                %472 = vst [vmem:[%s470] sm:$0xff] %v471
                %v473 = vld [vmem:[%s469 + $0x8] sm:$0xff]
                %474 = vst [vmem:[%s470 + $0x8] sm:$0xff] %v473
                %v475 = vld [vmem:[%s469 + $0x10] sm:$0xff]
                %476 = vst [vmem:[%s470 + $0x10] sm:$0xff] %v475
              $region82: #{custom-call.51} parent=76 // loop_footer
                %s468 = sadd.s32 1, %s464
              $region83: #{custom-call.51} parent=76 // loop_footer_branch
                %463 = sbr.rel target = $region79
              $region84: #{custom-call.51} parent=76 // loop_exit
                _
            $region77: #{custom-call.51} parent=61 // pred_fallthru
              _
            // Predicated region
            $region85: #{custom-call.51} parent=61 // pred_check
              _
            $region86: #{custom-call.51} parent=61 // pred_check_branch
              %478 = sbr.rel target = $region88
            $region87: #{custom-call.51} parent=61 // pred_region
              _
            $region88: #{custom-call.51} parent=61 // pred_fallthru
              _
          $region62: #{custom-call.51} parent=57 // pred_fallthru
            _
          // Predicated region
          $region63: #{custom-call.51} parent=57 // pred_check
            _
          $region64: #{custom-call.51} parent=57 // pred_check_branch
            %444 = sbr.rel target = $region66
          $region65: #{custom-call.51} parent=57 // pred_region
            %s446 = ssub.s32 256, 1
            loop: start=0, step=1, limit=1
            $region67: #{custom-call.51} parent=65 // loop_pre_header
              _
            $region68: #{custom-call.51} parent=65 // loop_header
              %s448 = sphi 0, %s452
              %p449 = scmp.ge.s32.totalorder %s448, 1
              %s453 = sphi %s431, %s431
              %s454 = sphi %s438, %s438
            $region69: #{custom-call.51} parent=65 // loop_header_branch
              %451 = sbr.rel (%p449) target = $region73
            $region70: #{custom-call.51} parent=65 // loop_body
              %v455 = vld [vmem:[%s453] sm:%s446]
              %456 = vst [vmem:[%s454] sm:%s446] %v455
              %v457 = vld [vmem:[%s453 + $0x8] sm:%s446]
              %458 = vst [vmem:[%s454 + $0x8] sm:%s446] %v457
              %v459 = vld [vmem:[%s453 + $0x10] sm:%s446]
              %460 = vst [vmem:[%s454 + $0x10] sm:%s446] %v459
            $region71: #{custom-call.51} parent=65 // loop_footer
              %s452 = sadd.s32 1, %s448
            $region72: #{custom-call.51} parent=65 // loop_footer_branch
              %447 = sbr.rel target = $region68
            $region73: #{custom-call.51} parent=65 // loop_exit
              _
          $region66: #{custom-call.51} parent=57 // pred_fallthru
            _
        $region58: #{custom-call.51} parent=53 // pred_fallthru
          _
        %479 = vnop
      $region54: #{custom-call.51} parent=5 // pred_fallthru
        _
      %p480 = scmp.le.s32.totalorder 2, %s3
      // Predicated region
      $region89: #{custom-call.51} parent=5 // pred_check
        %p481 = pneg %p480
      $region90: #{custom-call.51} parent=5 // pred_check_branch
        %483 = sbr.rel (%p481) target = $region92
      $region91: #{custom-call.51} parent=5 // pred_region
        %s484 = ssub.s32 %s3, 2
        %s485 = sand.u32 %s9, 1
        %s486 = sand.u32 %s9, 1
        %s487 = smul.addr %s486, 24
        %s488 = scalar_lea.vmem [#allocation1], %s487
      $region92: #{custom-call.51} parent=5 // pred_fallthru
        _
    $region6: #{custom-call.51} parent=1 // loop_footer
      %s7 = sadd.s32 1, %s3
    $region7: #{custom-call.51} parent=1 // loop_footer_branch
      %2 = sbr.rel target = $region3
    $region8: #{custom-call.51} parent=1 // loop_exit
      _

// kernel: metaopt_head_forward.2
$region0: #{metaopt_head_forward.2}
  #allocation0 [shape = 'u32[]', space=smem, size = 0x4, offset = 0x4, fixed_abs, tag = 'smem constant byte address 0x4 - core index']
  #allocation1 [shape = 'u32[144,128]{1,0:T(1,128)}', space=vmem, size = 0x12000, scoped, tag = 'internal scratch']
  %s0 = inlined_call_operand.vmem [shape: f32[2,6,16], index: 0, kind: input, shape index: {}]
  %s1 = inlined_call_operand.vmem [shape: f32[2,6,6], index: 1, kind: output, shape index: {}]
  %s2 = sld [smem:[#allocation0]]
  $region37: #{metaopt_head_forward.2} parent=0
    _
  %s4 = ssub.s32 1, %s2
  %s5 = scalar_select 0, %s4, %s2
  loop: start=0, step=1, limit=4
  $region2: #{metaopt_head_forward.2} parent=0 // loop_pre_header
    _
  $region3: #{metaopt_head_forward.2} parent=0 // loop_header
    %s7 = sphi 0, %s11
    %p8 = scmp.ge.s32.totalorder %s7, 4
    %s17 = sphi 0, %s19
    %s20 = sphi 0, %s17
    %s21 = sphi 0, %s20
    %s37 = sphi 0, %s21
    %s43 = sphi 0, %s45
    %s46 = sphi 0, %s43
    %s47 = sphi 0, %s46
    %s63 = sphi 0, %s47
  $region4: #{metaopt_head_forward.2} parent=0 // loop_header_branch
    %10 = sbr.rel (%p8) target = $region8
  $region5: #{metaopt_head_forward.2} parent=0 // loop_body
    %s12 = ssub.s32 %s7, 1
    %s13 = ssub.s32 %s7, 2
    %s14 = sadd.s32 %s7, 1
    %s15 = ssub.s32 %s7, %s14
    %p16 = scmp.eq.s32.totalorder %s15, 0
    %s18 = sadd.s32 %s17, 1
    %s19 = scalar_select %p16, %s17, %s18
    %p22 = pneg %p16
    %p23 = scmp.eq.s32.totalorder %s7, 1
    %p24 = por %p22, %p23
    %p25 = scmp.ne.s32.totalorder %s17, %s20
    %p26 = scmp.eq.s32.totalorder %s7, 0
    %p27 = por %p25, %p26
    %p28 = scmp.ne.s32.totalorder %s17, %s20
    %p29 = scmp.eq.s32.totalorder %s12, 1
    %p30 = por %p28, %p29
    %p31 = scmp.ne.s32.totalorder %s20, %s21
    %p32 = scmp.eq.s32.totalorder %s12, 0
    %p33 = por %p31, %p32
    %p34 = scmp.ne.s32.totalorder %s20, %s21
    %p35 = scmp.eq.s32.totalorder %s13, 1
    %p36 = por %p34, %p35
    %p38 = scmp.ne.s32.totalorder %s21, %s37
    %p39 = scmp.eq.s32.totalorder %s13, 0
    %p40 = por %p38, %p39
    %s41 = ssub.s32 %s7, %s14
    %p42 = scmp.eq.s32.totalorder %s41, 0
    %s44 = sadd.s32 %s43, 1
    %s45 = scalar_select %p42, %s43, %s44
    %p48 = pneg %p42
    %p49 = scmp.eq.s32.totalorder %s7, 1
    %p50 = por %p48, %p49
    %p51 = scmp.ne.s32.totalorder %s43, %s46
    %p52 = scmp.eq.s32.totalorder %s7, 0
    %p53 = por %p51, %p52
    %p54 = scmp.ne.s32.totalorder %s43, %s46
    %p55 = scmp.eq.s32.totalorder %s12, 1
    %p56 = por %p54, %p55
    %p57 = scmp.ne.s32.totalorder %s46, %s47
    %p58 = scmp.eq.s32.totalorder %s12, 0
    %p59 = por %p57, %p58
    %p60 = scmp.ne.s32.totalorder %s46, %s47
    %p61 = scmp.eq.s32.totalorder %s13, 1
    %p62 = por %p60, %p61
    %p64 = scmp.ne.s32.totalorder %s47, %s63
    %p65 = scmp.eq.s32.totalorder %s13, 0
    %p66 = por %p64, %p65
    %p67 = scmp.le.s32.totalorder 1, %s7
    %p68 = scmp.lt.s32.totalorder %s7, 3
    %p69 = pnand %p67, %p68
    %p70 = pneg %p69
    // Predicated region
    $region9: #{metaopt_head_forward.2} parent=5 // pred_check
      _
    $region10: #{metaopt_head_forward.2} parent=5 // pred_check_branch
      %72 = sbr.rel (%p69) target = $region12
    $region11: #{metaopt_head_forward.2} parent=5 // pred_region
      %s73 = ssub.s32 %s7, 1
    $region12: #{metaopt_head_forward.2} parent=5 // pred_fallthru
      _
    %p74 = scmp.lt.s32.totalorder %s7, 2
    // Predicated region
    $region13: #{metaopt_head_forward.2} parent=5 // pred_check
      %p75 = pneg %p74
    $region14: #{metaopt_head_forward.2} parent=5 // pred_check_branch
      %77 = sbr.rel (%p75) target = $region16
    $region15: #{metaopt_head_forward.2} parent=5 // pred_region
      // Predicated region
      $region17: #{metaopt_head_forward.2} parent=15 // pred_check
        %p78 = pneg %p27
      $region18: #{metaopt_head_forward.2} parent=15 // pred_check_branch
        %80 = sbr.rel (%p78) target = $region20
      $region19: #{metaopt_head_forward.2} parent=15 // pred_region
        %p81 = scmp.lt.s32.totalorder %s7, 1
        %s82 = scalar_select %p81, %s7, 1
        %s83 = smul.addr %s82, 8
        %s84 = scalar_lea.vmem %s0, %s83
      $region20: #{metaopt_head_forward.2} parent=15 // pred_fallthru
        _
    $region16: #{metaopt_head_forward.2} parent=5 // pred_fallthru
      _
    %p85 = scmp.le.s32.totalorder 1, %s7
    %p86 = scmp.lt.s32.totalorder %s7, 3
    %p87 = pnand %p85, %p86
    %p88 = pneg %p87
    // Predicated region
    $region21: #{metaopt_head_forward.2} parent=5 // pred_check
      _
    $region22: #{metaopt_head_forward.2} parent=5 // pred_check_branch
      %90 = sbr.rel (%p87) target = $region24
    $region23: #{metaopt_head_forward.2} parent=5 // pred_region
      %s91 = ssub.s32 %s7, 1
      %p92 = scmp.lt.s32.totalorder %s12, 1
      %s93 = scalar_select %p92, %s12, 1
      %s94 = smul.addr %s93, 8
      %s95 = scalar_lea.vmem %s0, %s94
      %p96 = pneg %p33
      %p97 = pneg %p30
      %p98 = pneg %p59
      %p99 = pneg %p56
      %p100 = scmp.lt.s32.totalorder %s12, 1
      %s101 = scalar_select %p100, %s12, 1
      %s102 = smul.addr %s101, 8
      %s103 = scalar_lea.vmem %s1, %s102
      %p104 = scmp.lt.s32.totalorder %s12, 1
      %s105 = scalar_select %p104, %s12, 1
      %s106 = smul.addr %s105, 8
      %s107 = scalar_lea.vmem %s0, %s106
      %p108 = scmp.lt.s32.totalorder %s12, 1
      %s109 = scalar_select %p108, %s12, 1
      %s110 = smul.addr %s109, 8
      %s111 = scalar_lea.vmem %s1, %s110
      %v112 = vld [vmem:[%s107] sm:$0x3f]
      %vm113 = vcmask 130048
      %v115 = vsel %vm113, %v112, 0
      %117 = vmatprep.subr.mxu0 0.0
      %118 = vmatpush1.xpose.msra.mxu0 0.0
      %119 = vmatprep.subr.mxu0 0.0
      %120 = vmatpush1.xpose.msra.mxu0 0.0
      %121 = vmatprep.subr.mxu0 0.0
      %122 = vmatpush1.xpose.msra.mxu0 0.0
      %123 = vmatprep.subr.mxu0 0.0
      %124 = vmatpush1.xpose.msra.mxu0 0.0
      %125 = vmatprep.subr.mxu0 0.0
      %126 = vmatpush1.xpose.msra.mxu0 0.0
      %127 = vmatprep.subr.mxu0 0.0
      %128 = vmatpush1.xpose.msra.mxu0 0.0
      %129 = vmatprep.subr.mxu0 0.0
      %130 = vmatpush1.xpose.msra.mxu0 0.0
      %131 = vmatprep.subr.mxu0 0.0
      %132 = vmatpush1.xpose.msra.mxu0 0.0
      %133 = vmatprep.subr.mxu0 0.0
      %134 = vmatpush1.xpose.msra.mxu0 0.0
      %135 = vmatprep.subr.mxu0 0.0
      %136 = vmatpush1.xpose.msra.mxu0 0.0
      %137 = vmatprep.subr.mxu0 0.0
      %138 = vmatpush1.xpose.msra.mxu0 0.0
      %139 = vmatprep.subr.mxu0 0.0
      %140 = vmatpush1.xpose.msra.mxu0 0.0
      %141 = vmatprep.subr.mxu0 0.0
      %142 = vmatpush1.xpose.msra.mxu0 0.0
      %143 = vmatprep.subr.mxu0 0.0
      %144 = vmatpush1.xpose.msra.mxu0 0.0
      %145 = vmatprep.subr.mxu0 0.0
      %146 = vmatpush1.xpose.msra.mxu0 0.0
      %147 = vmatprep.subr.mxu0 0.0
      %148 = vmatpush1.xpose.msra.mxu0 %v115
      %149 = vmatprep.subr.mxu0 0.0
      %150 = vmatpush2.xpose.msra.mxu0 0.0
      %151 = vmatprep.subr.mxu0 0.0
      %152 = vmatpush2.xpose.msra.mxu0 0.0
      %153 = vmatprep.subr.mxu0 0.0
      %154 = vmatpush2.xpose.msra.mxu0 0.0
      %155 = vmatprep.subr.mxu0 0.0
      %156 = vmatpush2.xpose.msra.mxu0 0.0
      %157 = vmatprep.subr.mxu0 0.0
      %158 = vmatpush2.xpose.msra.mxu0 0.0
      %159 = vmatprep.subr.mxu0 0.0
      %160 = vmatpush2.xpose.msra.mxu0 0.0
      %161 = vmatprep.subr.mxu0 0.0
      %162 = vmatpush2.xpose.msra.mxu0 0.0
      %163 = vmatprep.subr.mxu0 0.0
      %164 = vmatpush2.xpose.msra.mxu0 0.0
      %165 = vmatprep.subr.mxu0 0.0
      %166 = vmatpush2.xpose.msra.mxu0 0.0
      %167 = vmatprep.subr.mxu0 0.0
      %168 = vmatpush2.xpose.msra.mxu0 0.0
      %169 = vmatprep.subr.mxu0 0.0
      %170 = vmatpush2.xpose.msra.mxu0 0.0
      %171 = vmatprep.subr.mxu0 0.0
      %172 = vmatpush2.xpose.msra.mxu0 0.0
      %173 = vmatprep.subr.mxu0 0.0
      %174 = vmatpush2.xpose.msra.mxu0 0.0
      %175 = vmatprep.subr.mxu0 0.0
      %176 = vmatpush2.xpose.msra.mxu0 0.0
      %177 = vmatprep.subr.mxu0 0.0
      %178 = vmatpush2.xpose.msra.mxu0 0.0
      %179 = vmatprep.subr.mxu0 0.0
      %180 = vmatpush2.xpose.msra.mxu0 0.0
      %181 = vmatprep.mubr.f32.mxu0 0.0
      %182 = vmatmul.mubr.f32.gmra.mxu0 %v115
      %v183 = vpop.f32.mrf.mxu0
      %v184 = vadd.f32 0.0, %v183
      %v185 = vpop.f32.mrf.mxu0
      %186 = vdwg.mxu0
      %vm187 = vcmask 46080
      %188 = vst.msk [vmem:[%s111] sm:$0x3f] %vm187, %v184
      %p189 = scmp.lt.s32.totalorder %s12, 1
      %s190 = scalar_select %p189, %s12, 1
      %s191 = smul.addr %s190, 8
      %s192 = scalar_lea.vmem %s1, %s191
      // Predicated region
      $region25: #{metaopt_head_forward.2} parent=23 // pred_check
        %p193 = pneg %p56
      $region26: #{metaopt_head_forward.2} parent=23 // pred_check_branch
        %195 = sbr.rel (%p193) target = $region28
      $region27: #{metaopt_head_forward.2} parent=23 // pred_region
        _
      $region28: #{metaopt_head_forward.2} parent=23 // pred_fallthru
        _
    $region24: #{metaopt_head_forward.2} parent=5 // pred_fallthru
      _
    %p196 = scmp.le.s32.totalorder 2, %s7
    // Predicated region
    $region29: #{metaopt_head_forward.2} parent=5 // pred_check
      %p197 = pneg %p196
    $region30: #{metaopt_head_forward.2} parent=5 // pred_check_branch
      %199 = sbr.rel (%p197) target = $region32
    $region31: #{metaopt_head_forward.2} parent=5 // pred_region
      %s200 = ssub.s32 %s7, 2
      // Predicated region
      $region33: #{metaopt_head_forward.2} parent=31 // pred_check
        %p201 = pneg %p62
      $region34: #{metaopt_head_forward.2} parent=31 // pred_check_branch
        %203 = sbr.rel (%p201) target = $region36
      $region35: #{metaopt_head_forward.2} parent=31 // pred_region
        %p204 = scmp.lt.s32.totalorder %s13, 1
        %s205 = scalar_select %p204, %s13, 1
        %s206 = smul.addr %s205, 8
        %s207 = scalar_lea.vmem %s1, %s206
      $region36: #{metaopt_head_forward.2} parent=31 // pred_fallthru
        _
    $region32: #{metaopt_head_forward.2} parent=5 // pred_fallthru
      _
  $region6: #{metaopt_head_forward.2} parent=0 // loop_footer
    %s11 = sadd.s32 1, %s7
  $region7: #{metaopt_head_forward.2} parent=0 // loop_footer_branch
    %6 = sbr.rel target = $region3
  $region8: #{metaopt_head_forward.2} parent=0 // loop_exit
    _

// kernel: neg.12
$region0: #{neg.12}
  #allocation0 [shape = 's32[1]{0}', space=sflag, size = 0x4, scoped, tag = 'scoped memory for neg.12']
  %s0 = inlined_call_operand.vmem [shape: f32[18], index: 0, kind: input, shape index: {}]
  %s1 = inlined_call_operand.vmem [shape: f32[18], index: 1, kind: output, shape index: {}]
  %v2 = vld [vmem:[%s0] sm:$0x1]
  %3 = xla_tuple %v2
  %4 = xla_tuple %3
  %v5 = vxor.u32 %v2, 2147483648
  %6 = xla_tuple %v5
  %7 = vst [vmem:[%s1] sm:$0x1] %v5

// kernel: custom-call.45
$region0: #{custom-call.45}
  %s0 = inlined_call_operand.vmem [shape: f32[2,24,24], index: 0, kind: input, shape index: {}]
  %s1 = inlined_call_operand.vmem [shape: f32[2,24,24], index: 1, kind: output, shape index: {}]
  $region1: #{custom-call.45} parent=0
    #allocation0 [shape = 'u8[24576]{0}', space=vmem, size = 0x6000, scoped, tag = 'operand span for operand 0']
    #allocation1 [shape = 'u8[24576]{0}', space=vmem, size = 0x6000, scoped, tag = 'operand span for operand 1']
    loop: start=0, step=1, limit=4
    $region2: #{custom-call.45} parent=1 // loop_pre_header
      _
    $region3: #{custom-call.45} parent=1 // loop_header
      %s3 = sphi 0, %s7
      %p4 = scmp.ge.s32.totalorder %s3, 4
      %s10 = sphi 0, %s29
      %s11 = sphi 0, %s25
      %s12 = sphi 0, %s21
      %s13 = sphi 0, %s10
      %s14 = sphi 0, %s11
      %s15 = sphi 0, %s12
      %s16 = sphi 0, %s13
      %s17 = sphi 0, %s14
      %s18 = sphi 0, %s15
    $region4: #{custom-call.45} parent=1 // loop_header_branch
      %6 = sbr.rel (%p4) target = $region8
    $region5: #{custom-call.45} parent=1 // loop_body
      %s8 = ssub.s32 %s3, 1
      %s9 = ssub.s32 %s3, 2
      %s19 = sadd.s32 1, %s12
      %p20 = scmp.ge.s32.totalorder %s19, 1
      %s21 = scalar_select %p20, 0, %s19
      %s22 = sadd.s32 1, %s11
      %s23 = scalar_select %p20, %s22, %s11
      %p24 = scmp.ge.s32.totalorder %s23, 1
      %s25 = scalar_select %p24, 0, %s23
      %s26 = sadd.s32 1, %s10
      %s27 = scalar_select %p24, %s26, %s10
      %p28 = scmp.ge.s32.totalorder %s27, 2
      %s29 = scalar_select %p28, 0, %s27
      %p30 = scmp.le.s32.totalorder 1, %s3
      %p31 = scmp.lt.s32.totalorder %s3, 3
      %p32 = pnand %p30, %p31
      %p33 = pneg %p32
      // Predicated region
      $region9: #{custom-call.45} parent=5 // pred_check
        _
      $region10: #{custom-call.45} parent=5 // pred_check_branch
        %35 = sbr.rel (%p32) target = $region12
      $region11: #{custom-call.45} parent=5 // pred_region
        %s36 = ssub.s32 %s3, 1
      $region12: #{custom-call.45} parent=5 // pred_fallthru
        _
      %p37 = scmp.lt.s32.totalorder %s3, 2
      // Predicated region
      $region13: #{custom-call.45} parent=5 // pred_check
        %p38 = pneg %p37
      $region14: #{custom-call.45} parent=5 // pred_check_branch
        %40 = sbr.rel (%p38) target = $region16
      $region15: #{custom-call.45} parent=5 // pred_region
        %s41 = sand.u32 %s3, 1
        %s42 = sand.u32 %s3, 1
        %s43 = smul.addr %s42, 24
        %s44 = scalar_lea.vmem [#allocation0], %s43
        %s45 = sadd.s32 %s12, %s11
        %s46 = smul.addr %s10, 3
        %s47 = sadd.s32 %s45, %s46
        %s48 = smul.addr %s47, 8
        %s49 = scalar_lea.vmem %s0, %s48
        // Predicated region
        $region17: #{custom-call.45} parent=15 // pred_check
          _
        $region18: #{custom-call.45} parent=15 // pred_check_branch
          %51 = sbr.rel (0) target = $region20
        $region19: #{custom-call.45} parent=15 // pred_region
          // Predicated region
          $region21: #{custom-call.45} parent=19 // pred_check
            _
          $region22: #{custom-call.45} parent=19 // pred_check_branch
            %53 = sbr.rel (0) target = $region24
          $region23: #{custom-call.45} parent=19 // pred_region
            // Predicated region
            $region36: #{custom-call.45} parent=23 // pred_check
              _
            $region37: #{custom-call.45} parent=23 // pred_check_branch
              %73 = sbr.rel (0) target = $region39
            $region38: #{custom-call.45} parent=23 // pred_region
              loop: start=0, step=1, limit=1
              $region40: #{custom-call.45} parent=38 // loop_pre_header
                _
              $region41: #{custom-call.45} parent=38 // loop_header
                %s75 = sphi 0, %s79
                %p76 = scmp.ge.s32.totalorder %s75, 1
                %s80 = sphi %s49, %s49
                %s81 = sphi %s44, %s44
              $region42: #{custom-call.45} parent=38 // loop_header_branch
                %78 = sbr.rel (%p76) target = $region46
              $region43: #{custom-call.45} parent=38 // loop_body
                %v82 = vld [vmem:[%s80] sm:$0xff]
                %83 = vst [vmem:[%s81] sm:$0xff] %v82
                %v84 = vld [vmem:[%s80 + $0x8] sm:$0xff]
                %85 = vst [vmem:[%s81 + $0x8] sm:$0xff] %v84
                %v86 = vld [vmem:[%s80 + $0x10] sm:$0xff]
                %87 = vst [vmem:[%s81 + $0x10] sm:$0xff] %v86
              $region44: #{custom-call.45} parent=38 // loop_footer
                %s79 = sadd.s32 1, %s75
              $region45: #{custom-call.45} parent=38 // loop_footer_branch
                %74 = sbr.rel target = $region41
              $region46: #{custom-call.45} parent=38 // loop_exit
                _
            $region39: #{custom-call.45} parent=23 // pred_fallthru
              _
            // Predicated region
            $region47: #{custom-call.45} parent=23 // pred_check
              _
            $region48: #{custom-call.45} parent=23 // pred_check_branch
              %89 = sbr.rel target = $region50
            $region49: #{custom-call.45} parent=23 // pred_region
              _
            $region50: #{custom-call.45} parent=23 // pred_fallthru
              _
          $region24: #{custom-call.45} parent=19 // pred_fallthru
            _
          // Predicated region
          $region25: #{custom-call.45} parent=19 // pred_check
            _
          $region26: #{custom-call.45} parent=19 // pred_check_branch
            %55 = sbr.rel target = $region28
          $region27: #{custom-call.45} parent=19 // pred_region
            %s57 = ssub.s32 256, 1
            loop: start=0, step=1, limit=1
            $region29: #{custom-call.45} parent=27 // loop_pre_header
              _
            $region30: #{custom-call.45} parent=27 // loop_header
              %s59 = sphi 0, %s63
              %p60 = scmp.ge.s32.totalorder %s59, 1
              %s64 = sphi %s49, %s49
              %s65 = sphi %s44, %s44
            $region31: #{custom-call.45} parent=27 // loop_header_branch
              %62 = sbr.rel (%p60) target = $region35
            $region32: #{custom-call.45} parent=27 // loop_body
              %v66 = vld [vmem:[%s64] sm:%s57]
              %67 = vst [vmem:[%s65] sm:%s57] %v66
              %v68 = vld [vmem:[%s64 + $0x8] sm:%s57]
              %69 = vst [vmem:[%s65 + $0x8] sm:%s57] %v68
              %v70 = vld [vmem:[%s64 + $0x10] sm:%s57]
              %71 = vst [vmem:[%s65 + $0x10] sm:%s57] %v70
            $region33: #{custom-call.45} parent=27 // loop_footer
              %s63 = sadd.s32 1, %s59
            $region34: #{custom-call.45} parent=27 // loop_footer_branch
              %58 = sbr.rel target = $region30
            $region35: #{custom-call.45} parent=27 // loop_exit
              _
          $region28: #{custom-call.45} parent=19 // pred_fallthru
            _
        $region20: #{custom-call.45} parent=15 // pred_fallthru
          _
        %90 = vnop
      $region16: #{custom-call.45} parent=5 // pred_fallthru
        _
      %p91 = scmp.le.s32.totalorder 1, %s3
      %p92 = scmp.lt.s32.totalorder %s3, 3
      %p93 = pnand %p91, %p92
      %p94 = pneg %p93
      // Predicated region
      $region51: #{custom-call.45} parent=5 // pred_check
        _
      $region52: #{custom-call.45} parent=5 // pred_check_branch
        %96 = sbr.rel (%p93) target = $region54
      $region53: #{custom-call.45} parent=5 // pred_region
        %s97 = ssub.s32 %s3, 1
        %s98 = sand.u32 %s8, 1
        %s99 = sand.u32 %s8, 1
        %s100 = smul.addr %s99, 24
        %s101 = scalar_lea.vmem [#allocation0], %s100
        %s102 = sand.u32 %s8, 1
        %s103 = sand.u32 %s8, 1
        %s104 = smul.addr %s103, 24
        %s105 = scalar_lea.vmem [#allocation0], %s104
        %s106 = sand.u32 %s8, 1
        %s107 = sand.u32 %s8, 1
        %s108 = smul.addr %s107, 24
        %s109 = scalar_lea.vmem [#allocation1], %s108
        %110 = vst [vmem:[%s109] sm:$0xff] 0.0
        %s111 = scalar_lea.vmem %s109, 8 [#allocation1]
        %112 = vst [vmem:[%s111] sm:$0xff] 0.0
        %s113 = scalar_lea.vmem %s109, 16 [#allocation1]
        %114 = vst [vmem:[%s113] sm:$0xff] 0.0
        %vm115 = vcmask 7168
        %v116 = vld [vmem:[%s109] ss:$0 sm:$0xff]
        %v117 = vld [vmem:[%s101] ss:$0 sm:$0xff]
        %v118 = vmul.f32 %v116, %v116
        %119 = vadd.xlane.f32.xlu0 %v118
        %v120 = vpop.xlane.xlu0 %119
        %v121 = vsub.f32 %v117, %v120
        %v122 = vrsqrt.pop %v121
        %v123 = vld [vmem:[%s101] sm:$0xff]
        %v124 = vld [vmem:[%s109] sm:$0xff]
        %v125 = vmul.f32 %v124, %v116
        %126 = vadd.xlane.f32.xlu0 %v125
        %v127 = vpop.xlane.xlu0 %126
        %v128 = vsub.f32 %v123, %v127
        %v129 = vmul.f32 %v128, %v122
        %v130 = vsel %vm115, %v129, 0.0
        %v131 = vadd.f32 %v124, %v130
        %132 = vst [vmem:[%s109] sm:$0xff] %v131
        %s133 = scalar_lea.vmem %s101, 8 [#allocation0]
        %v134 = vld [vmem:[%s133] sm:$0xff]
        %s135 = scalar_lea.vmem %s109, 8 [#allocation1]
        %v136 = vld [vmem:[%s135] sm:$0xff]
        %v137 = vmul.f32 %v136, %v116
        %138 = vadd.xlane.f32.xlu0 %v137
        %v139 = vpop.xlane.xlu0 %138
        %v140 = vsub.f32 %v134, %v139
        %v141 = vmul.f32 %v140, %v122
        %v142 = vsel %vm115, %v141, 0.0
        %v143 = vadd.f32 %v136, %v142
        %s144 = scalar_lea.vmem %s109, 8 [#allocation1]
        %145 = vst [vmem:[%s144] sm:$0xff] %v143
        %s146 = scalar_lea.vmem %s101, 16 [#allocation0]
        %v147 = vld [vmem:[%s146] sm:$0xff]
        %s148 = scalar_lea.vmem %s109, 16 [#allocation1]
        %v149 = vld [vmem:[%s148] sm:$0xff]
        %v150 = vmul.f32 %v149, %v116
        %151 = vadd.xlane.f32.xlu0 %v150
        %v152 = vpop.xlane.xlu0 %151
        %v153 = vsub.f32 %v147, %v152
        %v154 = vmul.f32 %v153, %v122
        %v155 = vsel %vm115, %v154, 0.0
        %v156 = vadd.f32 %v149, %v155
        %s157 = scalar_lea.vmem %s109, 16 [#allocation1]
        %158 = vst [vmem:[%s157] sm:$0xff] %v156
        %vm159 = vcmask 15368
        %s160 = scalar_lea.vmem %s109, 1 [#allocation1]
        %v161 = vld [vmem:[%s160] ss:$0 sm:$0xff]
        %s162 = scalar_lea.vmem %s101, 1 [#allocation0]
        %v163 = vld [vmem:[%s162] ss:$0 sm:$0xff]
        %v164 = vmul.f32 %v161, %v161
        %165 = vadd.xlane.f32.xlu0 %v164
        %v166 = vpop.xlane.xlu0 %165
        %v167 = vsub.f32 %v163, %v166
        %v168 = vrsqrt.pop %v167
        %v169 = vld [vmem:[%s101] sm:$0xff]
        %v170 = vld [vmem:[%s109] sm:$0xff]
        %v171 = vmul.f32 %v170, %v161
        %172 = vadd.xlane.f32.xlu0 %v171
        %v173 = vpop.xlane.xlu0 %172
        %v174 = vsub.f32 %v169, %v173
        %v175 = vmul.f32 %v174, %v168
        %vm176 = vcmask 1047553
        %vm177 = vmand %vm159, %vm176
        %v178 = vsel %vm177, %v175, 0.0
        %v179 = vadd.f32 %v170, %v178
        %180 = vst [vmem:[%s109] sm:$0xff] %v179
        %s181 = scalar_lea.vmem %s101, 8 [#allocation0]
        %v182 = vld [vmem:[%s181] sm:$0xff]
        %s183 = scalar_lea.vmem %s109, 8 [#allocation1]
        %v184 = vld [vmem:[%s183] sm:$0xff]
        %v185 = vmul.f32 %v184, %v161
        %186 = vadd.xlane.f32.xlu0 %v185
        %v187 = vpop.xlane.xlu0 %186
        %v188 = vsub.f32 %v182, %v187
        %v189 = vmul.f32 %v188, %v168
        %v190 = vsel %vm159, %v189, 0.0
        %v191 = vadd.f32 %v184, %v190
        %s192 = scalar_lea.vmem %s109, 8 [#allocation1]
        %193 = vst [vmem:[%s192] sm:$0xff] %v191
        %s194 = scalar_lea.vmem %s101, 16 [#allocation0]
        %v195 = vld [vmem:[%s194] sm:$0xff]
        %s196 = scalar_lea.vmem %s109, 16 [#allocation1]
        %v197 = vld [vmem:[%s196] sm:$0xff]
        %v198 = vmul.f32 %v197, %v161
        %199 = vadd.xlane.f32.xlu0 %v198
        %v200 = vpop.xlane.xlu0 %199
        %v201 = vsub.f32 %v195, %v200
        %v202 = vmul.f32 %v201, %v168
        %v203 = vsel %vm159, %v202, 0.0
        %v204 = vadd.f32 %v197, %v203
        %s205 = scalar_lea.vmem %s109, 16 [#allocation1]
        %206 = vst [vmem:[%s205] sm:$0xff] %v204
        %vm207 = vcmask 23568
        %s208 = scalar_lea.vmem %s109, 2 [#allocation1]
        %v209 = vld [vmem:[%s208] ss:$0 sm:$0xff]
        %s210 = scalar_lea.vmem %s101, 2 [#allocation0]
        %v211 = vld [vmem:[%s210] ss:$0 sm:$0xff]
        %v212 = vmul.f32 %v209, %v209
        %213 = vadd.xlane.f32.xlu0 %v212
        %v214 = vpop.xlane.xlu0 %213
        %v215 = vsub.f32 %v211, %v214
        %v216 = vrsqrt.pop %v215
        %v217 = vld [vmem:[%s101] sm:$0xff]
        %v218 = vld [vmem:[%s109] sm:$0xff]
        %v219 = vmul.f32 %v218, %v209
        %220 = vadd.xlane.f32.xlu0 %v219
        %v221 = vpop.xlane.xlu0 %220
        %v222 = vsub.f32 %v217, %v221
        %v223 = vmul.f32 %v222, %v216
        %vm224 = vcmask 1047554
        %vm225 = vmand %vm207, %vm224
        %v226 = vsel %vm225, %v223, 0.0
        %v227 = vadd.f32 %v218, %v226
        %228 = vst [vmem:[%s109] sm:$0xff] %v227
        %s229 = scalar_lea.vmem %s101, 8 [#allocation0]
        %v230 = vld [vmem:[%s229] sm:$0xff]
        %s231 = scalar_lea.vmem %s109, 8 [#allocation1]
        %v232 = vld [vmem:[%s231] sm:$0xff]
        %v233 = vmul.f32 %v232, %v209
        %234 = vadd.xlane.f32.xlu0 %v233
        %v235 = vpop.xlane.xlu0 %234
        %v236 = vsub.f32 %v230, %v235
        %v237 = vmul.f32 %v236, %v216
        %v238 = vsel %vm207, %v237, 0.0
        %v239 = vadd.f32 %v232, %v238
        %s240 = scalar_lea.vmem %s109, 8 [#allocation1]
        %241 = vst [vmem:[%s240] sm:$0xff] %v239
        %s242 = scalar_lea.vmem %s101, 16 [#allocation0]
        %v243 = vld [vmem:[%s242] sm:$0xff]
        %s244 = scalar_lea.vmem %s109, 16 [#allocation1]
        %v245 = vld [vmem:[%s244] sm:$0xff]
        %v246 = vmul.f32 %v245, %v209
        %247 = vadd.xlane.f32.xlu0 %v246
        %v248 = vpop.xlane.xlu0 %247
        %v249 = vsub.f32 %v243, %v248
        %v250 = vmul.f32 %v249, %v216
        %v251 = vsel %vm207, %v250, 0.0
        %v252 = vadd.f32 %v245, %v251
        %s253 = scalar_lea.vmem %s109, 16 [#allocation1]
        %254 = vst [vmem:[%s253] sm:$0xff] %v252
        %vm255 = vcmask 31768
        %s256 = scalar_lea.vmem %s109, 3 [#allocation1]
        %v257 = vld [vmem:[%s256] ss:$0 sm:$0xff]
        %s258 = scalar_lea.vmem %s101, 3 [#allocation0]
        %v259 = vld [vmem:[%s258] ss:$0 sm:$0xff]
        %v260 = vmul.f32 %v257, %v257
        %261 = vadd.xlane.f32.xlu0 %v260
        %v262 = vpop.xlane.xlu0 %261
        %v263 = vsub.f32 %v259, %v262
        %v264 = vrsqrt.pop %v263
        %v265 = vld [vmem:[%s101] sm:$0xff]
        %v266 = vld [vmem:[%s109] sm:$0xff]
        %v267 = vmul.f32 %v266, %v257
        %268 = vadd.xlane.f32.xlu0 %v267
        %v269 = vpop.xlane.xlu0 %268
        %v270 = vsub.f32 %v265, %v269
        %v271 = vmul.f32 %v270, %v264
        %vm272 = vcmask 1047555
        %vm273 = vmand %vm255, %vm272
        %v274 = vsel %vm273, %v271, 0.0
        %v275 = vadd.f32 %v266, %v274
        %276 = vst [vmem:[%s109] sm:$0xff] %v275
        %s277 = scalar_lea.vmem %s101, 8 [#allocation0]
        %v278 = vld [vmem:[%s277] sm:$0xff]
        %s279 = scalar_lea.vmem %s109, 8 [#allocation1]
        %v280 = vld [vmem:[%s279] sm:$0xff]
        %v281 = vmul.f32 %v280, %v257
        %282 = vadd.xlane.f32.xlu0 %v281
        %v283 = vpop.xlane.xlu0 %282
        %v284 = vsub.f32 %v278, %v283
        %v285 = vmul.f32 %v284, %v264
        %v286 = vsel %vm255, %v285, 0.0
        %v287 = vadd.f32 %v280, %v286
        %s288 = scalar_lea.vmem %s109, 8 [#allocation1]
        %289 = vst [vmem:[%s288] sm:$0xff] %v287
        %s290 = scalar_lea.vmem %s101, 16 [#allocation0]
        %v291 = vld [vmem:[%s290] sm:$0xff]
        %s292 = scalar_lea.vmem %s109, 16 [#allocation1]
        %v293 = vld [vmem:[%s292] sm:$0xff]
        %v294 = vmul.f32 %v293, %v257
        %295 = vadd.xlane.f32.xlu0 %v294
        %v296 = vpop.xlane.xlu0 %295
        %v297 = vsub.f32 %v291, %v296
        %v298 = vmul.f32 %v297, %v264
        %v299 = vsel %vm255, %v298, 0.0
        %v300 = vadd.f32 %v293, %v299
        %s301 = scalar_lea.vmem %s109, 16 [#allocation1]
        %302 = vst [vmem:[%s301] sm:$0xff] %v300
        %vm303 = vcmask 39968
        %s304 = scalar_lea.vmem %s109, 4 [#allocation1]
        %v305 = vld [vmem:[%s304] ss:$0 sm:$0xff]
        %s306 = scalar_lea.vmem %s101, 4 [#allocation0]
        %v307 = vld [vmem:[%s306] ss:$0 sm:$0xff]
        %v308 = vmul.f32 %v305, %v305
        %309 = vadd.xlane.f32.xlu0 %v308
        %v310 = vpop.xlane.xlu0 %309
        %v311 = vsub.f32 %v307, %v310
        %v312 = vrsqrt.pop %v311
        %v313 = vld [vmem:[%s101] sm:$0xff]
        %v314 = vld [vmem:[%s109] sm:$0xff]
        %v315 = vmul.f32 %v314, %v305
        %316 = vadd.xlane.f32.xlu0 %v315
        %v317 = vpop.xlane.xlu0 %316
        %v318 = vsub.f32 %v313, %v317
        %v319 = vmul.f32 %v318, %v312
        %vm320 = vcmask 1047556
        %vm321 = vmand %vm303, %vm320
        %v322 = vsel %vm321, %v319, 0.0
        %v323 = vadd.f32 %v314, %v322
        %324 = vst [vmem:[%s109] sm:$0xff] %v323
        %s325 = scalar_lea.vmem %s101, 8 [#allocation0]
        %v326 = vld [vmem:[%s325] sm:$0xff]
        %s327 = scalar_lea.vmem %s109, 8 [#allocation1]
        %v328 = vld [vmem:[%s327] sm:$0xff]
        %v329 = vmul.f32 %v328, %v305
        %330 = vadd.xlane.f32.xlu0 %v329
        %v331 = vpop.xlane.xlu0 %330
        %v332 = vsub.f32 %v326, %v331
        %v333 = vmul.f32 %v332, %v312
        %v334 = vsel %vm303, %v333, 0.0
        %v335 = vadd.f32 %v328, %v334
        %s336 = scalar_lea.vmem %s109, 8 [#allocation1]
        %337 = vst [vmem:[%s336] sm:$0xff] %v335
        %s338 = scalar_lea.vmem %s101, 16 [#allocation0]
        %v339 = vld [vmem:[%s338] sm:$0xff]
        %s340 = scalar_lea.vmem %s109, 16 [#allocation1]
        %v341 = vld [vmem:[%s340] sm:$0xff]
        %v342 = vmul.f32 %v341, %v305
        %343 = vadd.xlane.f32.xlu0 %v342
        %v344 = vpop.xlane.xlu0 %343
        %v345 = vsub.f32 %v339, %v344
        %v346 = vmul.f32 %v345, %v312
        %v347 = vsel %vm303, %v346, 0.0
        %v348 = vadd.f32 %v341, %v347
        %s349 = scalar_lea.vmem %s109, 16 [#allocation1]
        %350 = vst [vmem:[%s349] sm:$0xff] %v348
        %vm351 = vcmask 48168
        %s352 = scalar_lea.vmem %s109, 5 [#allocation1]
        %v353 = vld [vmem:[%s352] ss:$0 sm:$0xff]
        %s354 = scalar_lea.vmem %s101, 5 [#allocation0]
        %v355 = vld [vmem:[%s354] ss:$0 sm:$0xff]
        %v356 = vmul.f32 %v353, %v353
        %357 = vadd.xlane.f32.xlu0 %v356
        %v358 = vpop.xlane.xlu0 %357
        %v359 = vsub.f32 %v355, %v358
        %v360 = vrsqrt.pop %v359
        %v361 = vld [vmem:[%s101] sm:$0xff]
        %v362 = vld [vmem:[%s109] sm:$0xff]
        %v363 = vmul.f32 %v362, %v353
        %364 = vadd.xlane.f32.xlu0 %v363
        %v365 = vpop.xlane.xlu0 %364
        %v366 = vsub.f32 %v361, %v365
        %v367 = vmul.f32 %v366, %v360
        %vm368 = vcmask 1047557
        %vm369 = vmand %vm351, %vm368
        %v370 = vsel %vm369, %v367, 0.0
        %v371 = vadd.f32 %v362, %v370
        %372 = vst [vmem:[%s109] sm:$0xff] %v371
        %s373 = scalar_lea.vmem %s101, 8 [#allocation0]
        %v374 = vld [vmem:[%s373] sm:$0xff]
        %s375 = scalar_lea.vmem %s109, 8 [#allocation1]
        %v376 = vld [vmem:[%s375] sm:$0xff]
        %v377 = vmul.f32 %v376, %v353
        %378 = vadd.xlane.f32.xlu0 %v377
        %v379 = vpop.xlane.xlu0 %378
        %v380 = vsub.f32 %v374, %v379
        %v381 = vmul.f32 %v380, %v360
        %v382 = vsel %vm351, %v381, 0.0
        %v383 = vadd.f32 %v376, %v382
        %s384 = scalar_lea.vmem %s109, 8 [#allocation1]
        %385 = vst [vmem:[%s384] sm:$0xff] %v383
        %s386 = scalar_lea.vmem %s101, 16 [#allocation0]
        %v387 = vld [vmem:[%s386] sm:$0xff]
        %s388 = scalar_lea.vmem %s109, 16 [#allocation1]
        %v389 = vld [vmem:[%s388] sm:$0xff]
        %v390 = vmul.f32 %v389, %v353
        %391 = vadd.xlane.f32.xlu0 %v390
        %v392 = vpop.xlane.xlu0 %391
        %v393 = vsub.f32 %v387, %v392
        %v394 = vmul.f32 %v393, %v360
        %v395 = vsel %vm351, %v394, 0.0
        %v396 = vadd.f32 %v389, %v395
        %s397 = scalar_lea.vmem %s109, 16 [#allocation1]
        %398 = vst [vmem:[%s397] sm:$0xff] %v396
        %vm399 = vcmask 56368
        %s400 = scalar_lea.vmem %s109, 6 [#allocation1]
        %v401 = vld [vmem:[%s400] ss:$0 sm:$0xff]
        %s402 = scalar_lea.vmem %s101, 6 [#allocation0]
        %v403 = vld [vmem:[%s402] ss:$0 sm:$0xff]
        %v404 = vmul.f32 %v401, %v401
        %405 = vadd.xlane.f32.xlu0 %v404
        %v406 = vpop.xlane.xlu0 %405
        %v407 = vsub.f32 %v403, %v406
        %v408 = vrsqrt.pop %v407
        %v409 = vld [vmem:[%s101] sm:$0xff]
        %v410 = vld [vmem:[%s109] sm:$0xff]
        %v411 = vmul.f32 %v410, %v401
        %412 = vadd.xlane.f32.xlu0 %v411
        %v413 = vpop.xlane.xlu0 %412
        %v414 = vsub.f32 %v409, %v413
        %v415 = vmul.f32 %v414, %v408
        %vm416 = vcmask 1047558
        %vm417 = vmand %vm399, %vm416
        %v418 = vsel %vm417, %v415, 0.0
        %v419 = vadd.f32 %v410, %v418
        %420 = vst [vmem:[%s109] sm:$0xff] %v419
        %s421 = scalar_lea.vmem %s101, 8 [#allocation0]
        %v422 = vld [vmem:[%s421] sm:$0xff]
        %s423 = scalar_lea.vmem %s109, 8 [#allocation1]
        %v424 = vld [vmem:[%s423] sm:$0xff]
        %v425 = vmul.f32 %v424, %v401
        %426 = vadd.xlane.f32.xlu0 %v425
        %v427 = vpop.xlane.xlu0 %426
        %v428 = vsub.f32 %v422, %v427
        %v429 = vmul.f32 %v428, %v408
        %v430 = vsel %vm399, %v429, 0.0
        %v431 = vadd.f32 %v424, %v430
        %s432 = scalar_lea.vmem %s109, 8 [#allocation1]
        %433 = vst [vmem:[%s432] sm:$0xff] %v431
        %s434 = scalar_lea.vmem %s101, 16 [#allocation0]
        %v435 = vld [vmem:[%s434] sm:$0xff]
        %s436 = scalar_lea.vmem %s109, 16 [#allocation1]
        %v437 = vld [vmem:[%s436] sm:$0xff]
        %v438 = vmul.f32 %v437, %v401
        %439 = vadd.xlane.f32.xlu0 %v438
        %v440 = vpop.xlane.xlu0 %439
        %v441 = vsub.f32 %v435, %v440
        %v442 = vmul.f32 %v441, %v408
        %v443 = vsel %vm399, %v442, 0.0
        %v444 = vadd.f32 %v437, %v443
        %s445 = scalar_lea.vmem %s109, 16 [#allocation1]
        %446 = vst [vmem:[%s445] sm:$0xff] %v444
        %vm447 = vcmask 64568
        %s448 = scalar_lea.vmem %s109, 7 [#allocation1]
        %v449 = vld [vmem:[%s448] ss:$0 sm:$0xff]
        %s450 = scalar_lea.vmem %s101, 7 [#allocation0]
        %v451 = vld [vmem:[%s450] ss:$0 sm:$0xff]
        %v452 = vmul.f32 %v449, %v449
        %453 = vadd.xlane.f32.xlu0 %v452
        %v454 = vpop.xlane.xlu0 %453
        %v455 = vsub.f32 %v451, %v454
        %v456 = vrsqrt.pop %v455
        %v457 = vld [vmem:[%s101] sm:$0xff]
        %v458 = vld [vmem:[%s109] sm:$0xff]
        %v459 = vmul.f32 %v458, %v449
        %460 = vadd.xlane.f32.xlu0 %v459
        %v461 = vpop.xlane.xlu0 %460
        %v462 = vsub.f32 %v457, %v461
        %v463 = vmul.f32 %v462, %v456
        %vm464 = vcmask 1047559
        %vm465 = vmand %vm447, %vm464
        %v466 = vsel %vm465, %v463, 0.0
        %v467 = vadd.f32 %v458, %v466
        %468 = vst [vmem:[%s109] sm:$0xff] %v467
        %s469 = scalar_lea.vmem %s101, 8 [#allocation0]
        %v470 = vld [vmem:[%s469] sm:$0xff]
        %s471 = scalar_lea.vmem %s109, 8 [#allocation1]
        %v472 = vld [vmem:[%s471] sm:$0xff]
        %v473 = vmul.f32 %v472, %v449
        %474 = vadd.xlane.f32.xlu0 %v473
        %v475 = vpop.xlane.xlu0 %474
        %v476 = vsub.f32 %v470, %v475
        %v477 = vmul.f32 %v476, %v456
        %v478 = vsel %vm447, %v477, 0.0
        %v479 = vadd.f32 %v472, %v478
        %s480 = scalar_lea.vmem %s109, 8 [#allocation1]
        %481 = vst [vmem:[%s480] sm:$0xff] %v479
        %s482 = scalar_lea.vmem %s101, 16 [#allocation0]
        %v483 = vld [vmem:[%s482] sm:$0xff]
        %s484 = scalar_lea.vmem %s109, 16 [#allocation1]
        %v485 = vld [vmem:[%s484] sm:$0xff]
        %v486 = vmul.f32 %v485, %v449
        %487 = vadd.xlane.f32.xlu0 %v486
        %v488 = vpop.xlane.xlu0 %487
        %v489 = vsub.f32 %v483, %v488
        %v490 = vmul.f32 %v489, %v456
        %v491 = vsel %vm447, %v490, 0.0
        %v492 = vadd.f32 %v485, %v491
        %s493 = scalar_lea.vmem %s109, 16 [#allocation1]
        %494 = vst [vmem:[%s493] sm:$0xff] %v492
        %vm495 = vcmask 72768
        %s496 = scalar_lea.vmem %s109, 8 [#allocation1]
        %v497 = vld [vmem:[%s496] ss:$0 sm:$0xff]
        %s498 = scalar_lea.vmem %s101, 8 [#allocation0]
        %v499 = vld [vmem:[%s498] ss:$0 sm:$0xff]
        %v500 = vmul.f32 %v497, %v497
        %501 = vadd.xlane.f32.xlu0 %v500
        %v502 = vpop.xlane.xlu0 %501
        %v503 = vsub.f32 %v499, %v502
        %v504 = vrsqrt.pop %v503
        %s505 = scalar_lea.vmem %s101, 8 [#allocation0]
        %v506 = vld [vmem:[%s505] sm:$0xff]
        %s507 = scalar_lea.vmem %s109, 8 [#allocation1]
        %v508 = vld [vmem:[%s507] sm:$0xff]
        %v509 = vmul.f32 %v508, %v497
        %510 = vadd.xlane.f32.xlu0 %v509
        %v511 = vpop.xlane.xlu0 %510
        %v512 = vsub.f32 %v506, %v511
        %v513 = vmul.f32 %v512, %v504
        %v514 = vsel %vm495, %v513, 0.0
        %v515 = vadd.f32 %v508, %v514
        %s516 = scalar_lea.vmem %s109, 8 [#allocation1]
        %517 = vst [vmem:[%s516] sm:$0xff] %v515
        %s518 = scalar_lea.vmem %s101, 16 [#allocation0]
        %v519 = vld [vmem:[%s518] sm:$0xff]
        %s520 = scalar_lea.vmem %s109, 16 [#allocation1]
        %v521 = vld [vmem:[%s520] sm:$0xff]
        %v522 = vmul.f32 %v521, %v497
        %523 = vadd.xlane.f32.xlu0 %v522
        %v524 = vpop.xlane.xlu0 %523
        %v525 = vsub.f32 %v519, %v524
        %v526 = vmul.f32 %v525, %v504
        %v527 = vsel %vm495, %v526, 0.0
        %v528 = vadd.f32 %v521, %v527
        %s529 = scalar_lea.vmem %s109, 16 [#allocation1]
        %530 = vst [vmem:[%s529] sm:$0xff] %v528
        %vm531 = vcmask 80968
        %s532 = scalar_lea.vmem %s109, 9 [#allocation1]
        %v533 = vld [vmem:[%s532] ss:$0 sm:$0xff]
        %s534 = scalar_lea.vmem %s101, 9 [#allocation0]
        %v535 = vld [vmem:[%s534] ss:$0 sm:$0xff]
        %v536 = vmul.f32 %v533, %v533
        %537 = vadd.xlane.f32.xlu0 %v536
        %v538 = vpop.xlane.xlu0 %537
        %v539 = vsub.f32 %v535, %v538
        %v540 = vrsqrt.pop %v539
        %s541 = scalar_lea.vmem %s101, 8 [#allocation0]
        %v542 = vld [vmem:[%s541] sm:$0xff]
        %s543 = scalar_lea.vmem %s109, 8 [#allocation1]
        %v544 = vld [vmem:[%s543] sm:$0xff]
        %v545 = vmul.f32 %v544, %v533
        %546 = vadd.xlane.f32.xlu0 %v545
        %v547 = vpop.xlane.xlu0 %546
        %v548 = vsub.f32 %v542, %v547
        %v549 = vmul.f32 %v548, %v540
        %vm550 = vcmask 1047553
        %vm551 = vmand %vm531, %vm550
        %v552 = vsel %vm551, %v549, 0.0
        %v553 = vadd.f32 %v544, %v552
        %s554 = scalar_lea.vmem %s109, 8 [#allocation1]
        %555 = vst [vmem:[%s554] sm:$0xff] %v553
        %s556 = scalar_lea.vmem %s101, 16 [#allocation0]
        %v557 = vld [vmem:[%s556] sm:$0xff]
        %s558 = scalar_lea.vmem %s109, 16 [#allocation1]
        %v559 = vld [vmem:[%s558] sm:$0xff]
        %v560 = vmul.f32 %v559, %v533
        %561 = vadd.xlane.f32.xlu0 %v560
        %v562 = vpop.xlane.xlu0 %561
        %v563 = vsub.f32 %v557, %v562
        %v564 = vmul.f32 %v563, %v540
        %v565 = vsel %vm531, %v564, 0.0
        %v566 = vadd.f32 %v559, %v565
        %s567 = scalar_lea.vmem %s109, 16 [#allocation1]
        %568 = vst [vmem:[%s567] sm:$0xff] %v566
        %vm569 = vcmask 89168
        %s570 = scalar_lea.vmem %s109, 10 [#allocation1]
        %v571 = vld [vmem:[%s570] ss:$0 sm:$0xff]
        %s572 = scalar_lea.vmem %s101, 10 [#allocation0]
        %v573 = vld [vmem:[%s572] ss:$0 sm:$0xff]
        %v574 = vmul.f32 %v571, %v571
        %575 = vadd.xlane.f32.xlu0 %v574
        %v576 = vpop.xlane.xlu0 %575
        %v577 = vsub.f32 %v573, %v576
        %v578 = vrsqrt.pop %v577
        %s579 = scalar_lea.vmem %s101, 8 [#allocation0]
        %v580 = vld [vmem:[%s579] sm:$0xff]
        %s581 = scalar_lea.vmem %s109, 8 [#allocation1]
        %v582 = vld [vmem:[%s581] sm:$0xff]
        %v583 = vmul.f32 %v582, %v571
        %584 = vadd.xlane.f32.xlu0 %v583
        %v585 = vpop.xlane.xlu0 %584
        %v586 = vsub.f32 %v580, %v585
        %v587 = vmul.f32 %v586, %v578
        %vm588 = vcmask 1047554
        %vm589 = vmand %vm569, %vm588
        %v590 = vsel %vm589, %v587, 0.0
        %v591 = vadd.f32 %v582, %v590
        %s592 = scalar_lea.vmem %s109, 8 [#allocation1]
        %593 = vst [vmem:[%s592] sm:$0xff] %v591
        %s594 = scalar_lea.vmem %s101, 16 [#allocation0]
        %v595 = vld [vmem:[%s594] sm:$0xff]
        %s596 = scalar_lea.vmem %s109, 16 [#allocation1]
        %v597 = vld [vmem:[%s596] sm:$0xff]
        %v598 = vmul.f32 %v597, %v571
        %599 = vadd.xlane.f32.xlu0 %v598
        %v600 = vpop.xlane.xlu0 %599
        %v601 = vsub.f32 %v595, %v600
        %v602 = vmul.f32 %v601, %v578
        %v603 = vsel %vm569, %v602, 0.0
        %v604 = vadd.f32 %v597, %v603
        %s605 = scalar_lea.vmem %s109, 16 [#allocation1]
        %606 = vst [vmem:[%s605] sm:$0xff] %v604
        %vm607 = vcmask 97368
        %s608 = scalar_lea.vmem %s109, 11 [#allocation1]
        %v609 = vld [vmem:[%s608] ss:$0 sm:$0xff]
        %s610 = scalar_lea.vmem %s101, 11 [#allocation0]
        %v611 = vld [vmem:[%s610] ss:$0 sm:$0xff]
        %v612 = vmul.f32 %v609, %v609
        %613 = vadd.xlane.f32.xlu0 %v612
        %v614 = vpop.xlane.xlu0 %613
        %v615 = vsub.f32 %v611, %v614
        %v616 = vrsqrt.pop %v615
        %s617 = scalar_lea.vmem %s101, 8 [#allocation0]
        %v618 = vld [vmem:[%s617] sm:$0xff]
        %s619 = scalar_lea.vmem %s109, 8 [#allocation1]
        %v620 = vld [vmem:[%s619] sm:$0xff]
        %v621 = vmul.f32 %v620, %v609
        %622 = vadd.xlane.f32.xlu0 %v621
        %v623 = vpop.xlane.xlu0 %622
        %v624 = vsub.f32 %v618, %v623
        %v625 = vmul.f32 %v624, %v616
        %vm626 = vcmask 1047555
        %vm627 = vmand %vm607, %vm626
        %v628 = vsel %vm627, %v625, 0.0
        %v629 = vadd.f32 %v620, %v628
        %s630 = scalar_lea.vmem %s109, 8 [#allocation1]
        %631 = vst [vmem:[%s630] sm:$0xff] %v629
        %s632 = scalar_lea.vmem %s101, 16 [#allocation0]
        %v633 = vld [vmem:[%s632] sm:$0xff]
        %s634 = scalar_lea.vmem %s109, 16 [#allocation1]
        %v635 = vld [vmem:[%s634] sm:$0xff]
        %v636 = vmul.f32 %v635, %v609
        %637 = vadd.xlane.f32.xlu0 %v636
        %v638 = vpop.xlane.xlu0 %637
        %v639 = vsub.f32 %v633, %v638
        %v640 = vmul.f32 %v639, %v616
        %v641 = vsel %vm607, %v640, 0.0
        %v642 = vadd.f32 %v635, %v641
        %s643 = scalar_lea.vmem %s109, 16 [#allocation1]
        %644 = vst [vmem:[%s643] sm:$0xff] %v642
        %vm645 = vcmask 105568
        %s646 = scalar_lea.vmem %s109, 12 [#allocation1]
        %v647 = vld [vmem:[%s646] ss:$0 sm:$0xff]
        %s648 = scalar_lea.vmem %s101, 12 [#allocation0]
        %v649 = vld [vmem:[%s648] ss:$0 sm:$0xff]
        %v650 = vmul.f32 %v647, %v647
        %651 = vadd.xlane.f32.xlu0 %v650
        %v652 = vpop.xlane.xlu0 %651
        %v653 = vsub.f32 %v649, %v652
        %v654 = vrsqrt.pop %v653
        %s655 = scalar_lea.vmem %s101, 8 [#allocation0]
        %v656 = vld [vmem:[%s655] sm:$0xff]
        %s657 = scalar_lea.vmem %s109, 8 [#allocation1]
        %v658 = vld [vmem:[%s657] sm:$0xff]
        %v659 = vmul.f32 %v658, %v647
        %660 = vadd.xlane.f32.xlu0 %v659
        %v661 = vpop.xlane.xlu0 %660
        %v662 = vsub.f32 %v656, %v661
        %v663 = vmul.f32 %v662, %v654
        %vm664 = vcmask 1047556
        %vm665 = vmand %vm645, %vm664
        %v666 = vsel %vm665, %v663, 0.0
        %v667 = vadd.f32 %v658, %v666
        %s668 = scalar_lea.vmem %s109, 8 [#allocation1]
        %669 = vst [vmem:[%s668] sm:$0xff] %v667
        %s670 = scalar_lea.vmem %s101, 16 [#allocation0]
        %v671 = vld [vmem:[%s670] sm:$0xff]
        %s672 = scalar_lea.vmem %s109, 16 [#allocation1]
        %v673 = vld [vmem:[%s672] sm:$0xff]
        %v674 = vmul.f32 %v673, %v647
        %675 = vadd.xlane.f32.xlu0 %v674
        %v676 = vpop.xlane.xlu0 %675
        %v677 = vsub.f32 %v671, %v676
        %v678 = vmul.f32 %v677, %v654
        %v679 = vsel %vm645, %v678, 0.0
        %v680 = vadd.f32 %v673, %v679
        %s681 = scalar_lea.vmem %s109, 16 [#allocation1]
        %682 = vst [vmem:[%s681] sm:$0xff] %v680
        %vm683 = vcmask 113768
        %s684 = scalar_lea.vmem %s109, 13 [#allocation1]
        %v685 = vld [vmem:[%s684] ss:$0 sm:$0xff]
        %s686 = scalar_lea.vmem %s101, 13 [#allocation0]
        %v687 = vld [vmem:[%s686] ss:$0 sm:$0xff]
        %v688 = vmul.f32 %v685, %v685
        %689 = vadd.xlane.f32.xlu0 %v688
        %v690 = vpop.xlane.xlu0 %689
        %v691 = vsub.f32 %v687, %v690
        %v692 = vrsqrt.pop %v691
        %s693 = scalar_lea.vmem %s101, 8 [#allocation0]
        %v694 = vld [vmem:[%s693] sm:$0xff]
        %s695 = scalar_lea.vmem %s109, 8 [#allocation1]
        %v696 = vld [vmem:[%s695] sm:$0xff]
        %v697 = vmul.f32 %v696, %v685
        %698 = vadd.xlane.f32.xlu0 %v697
        %v699 = vpop.xlane.xlu0 %698
        %v700 = vsub.f32 %v694, %v699
        %v701 = vmul.f32 %v700, %v692
        %vm702 = vcmask 1047557
        %vm703 = vmand %vm683, %vm702
        %v704 = vsel %vm703, %v701, 0.0
        %v705 = vadd.f32 %v696, %v704
        %s706 = scalar_lea.vmem %s109, 8 [#allocation1]
        %707 = vst [vmem:[%s706] sm:$0xff] %v705
        %s708 = scalar_lea.vmem %s101, 16 [#allocation0]
        %v709 = vld [vmem:[%s708] sm:$0xff]
        %s710 = scalar_lea.vmem %s109, 16 [#allocation1]
        %v711 = vld [vmem:[%s710] sm:$0xff]
        %v712 = vmul.f32 %v711, %v685
        %713 = vadd.xlane.f32.xlu0 %v712
        %v714 = vpop.xlane.xlu0 %713
        %v715 = vsub.f32 %v709, %v714
        %v716 = vmul.f32 %v715, %v692
        %v717 = vsel %vm683, %v716, 0.0
        %v718 = vadd.f32 %v711, %v717
        %s719 = scalar_lea.vmem %s109, 16 [#allocation1]
        %720 = vst [vmem:[%s719] sm:$0xff] %v718
        %vm721 = vcmask 121968
        %s722 = scalar_lea.vmem %s109, 14 [#allocation1]
        %v723 = vld [vmem:[%s722] ss:$0 sm:$0xff]
        %s724 = scalar_lea.vmem %s101, 14 [#allocation0]
        %v725 = vld [vmem:[%s724] ss:$0 sm:$0xff]
        %v726 = vmul.f32 %v723, %v723
        %727 = vadd.xlane.f32.xlu0 %v726
        %v728 = vpop.xlane.xlu0 %727
        %v729 = vsub.f32 %v725, %v728
        %v730 = vrsqrt.pop %v729
        %s731 = scalar_lea.vmem %s101, 8 [#allocation0]
        %v732 = vld [vmem:[%s731] sm:$0xff]
        %s733 = scalar_lea.vmem %s109, 8 [#allocation1]
        %v734 = vld [vmem:[%s733] sm:$0xff]
        %v735 = vmul.f32 %v734, %v723
        %736 = vadd.xlane.f32.xlu0 %v735
        %v737 = vpop.xlane.xlu0 %736
        %v738 = vsub.f32 %v732, %v737
        %v739 = vmul.f32 %v738, %v730
        %vm740 = vcmask 1047558
        %vm741 = vmand %vm721, %vm740
        %v742 = vsel %vm741, %v739, 0.0
        %v743 = vadd.f32 %v734, %v742
        %s744 = scalar_lea.vmem %s109, 8 [#allocation1]
        %745 = vst [vmem:[%s744] sm:$0xff] %v743
        %s746 = scalar_lea.vmem %s101, 16 [#allocation0]
        %v747 = vld [vmem:[%s746] sm:$0xff]
        %s748 = scalar_lea.vmem %s109, 16 [#allocation1]
        %v749 = vld [vmem:[%s748] sm:$0xff]
        %v750 = vmul.f32 %v749, %v723
        %751 = vadd.xlane.f32.xlu0 %v750
        %v752 = vpop.xlane.xlu0 %751
        %v753 = vsub.f32 %v747, %v752
        %v754 = vmul.f32 %v753, %v730
        %v755 = vsel %vm721, %v754, 0.0
        %v756 = vadd.f32 %v749, %v755
        %s757 = scalar_lea.vmem %s109, 16 [#allocation1]
        %758 = vst [vmem:[%s757] sm:$0xff] %v756
        %vm759 = vcmask 130168
        %s760 = scalar_lea.vmem %s109, 15 [#allocation1]
        %v761 = vld [vmem:[%s760] ss:$0 sm:$0xff]
        %s762 = scalar_lea.vmem %s101, 15 [#allocation0]
        %v763 = vld [vmem:[%s762] ss:$0 sm:$0xff]
        %v764 = vmul.f32 %v761, %v761
        %765 = vadd.xlane.f32.xlu0 %v764
        %v766 = vpop.xlane.xlu0 %765
        %v767 = vsub.f32 %v763, %v766
        %v768 = vrsqrt.pop %v767
        %s769 = scalar_lea.vmem %s101, 8 [#allocation0]
        %v770 = vld [vmem:[%s769] sm:$0xff]
        %s771 = scalar_lea.vmem %s109, 8 [#allocation1]
        %v772 = vld [vmem:[%s771] sm:$0xff]
        %v773 = vmul.f32 %v772, %v761
        %774 = vadd.xlane.f32.xlu0 %v773
        %v775 = vpop.xlane.xlu0 %774
        %v776 = vsub.f32 %v770, %v775
        %v777 = vmul.f32 %v776, %v768
        %vm778 = vcmask 1047559
        %vm779 = vmand %vm759, %vm778
        %v780 = vsel %vm779, %v777, 0.0
        %v781 = vadd.f32 %v772, %v780
        %s782 = scalar_lea.vmem %s109, 8 [#allocation1]
        %783 = vst [vmem:[%s782] sm:$0xff] %v781
        %s784 = scalar_lea.vmem %s101, 16 [#allocation0]
        %v785 = vld [vmem:[%s784] sm:$0xff]
        %s786 = scalar_lea.vmem %s109, 16 [#allocation1]
        %v787 = vld [vmem:[%s786] sm:$0xff]
        %v788 = vmul.f32 %v787, %v761
        %789 = vadd.xlane.f32.xlu0 %v788
        %v790 = vpop.xlane.xlu0 %789
        %v791 = vsub.f32 %v785, %v790
        %v792 = vmul.f32 %v791, %v768
        %v793 = vsel %vm759, %v792, 0.0
        %v794 = vadd.f32 %v787, %v793
        %s795 = scalar_lea.vmem %s109, 16 [#allocation1]
        %796 = vst [vmem:[%s795] sm:$0xff] %v794
        %vm797 = vcmask 138368
        %s798 = scalar_lea.vmem %s109, 16 [#allocation1]
        %v799 = vld [vmem:[%s798] ss:$0 sm:$0xff]
        %s800 = scalar_lea.vmem %s101, 16 [#allocation0]
        %v801 = vld [vmem:[%s800] ss:$0 sm:$0xff]
        %v802 = vmul.f32 %v799, %v799
        %803 = vadd.xlane.f32.xlu0 %v802
        %v804 = vpop.xlane.xlu0 %803
        %v805 = vsub.f32 %v801, %v804
        %v806 = vrsqrt.pop %v805
        %s807 = scalar_lea.vmem %s101, 16 [#allocation0]
        %v808 = vld [vmem:[%s807] sm:$0xff]
        %s809 = scalar_lea.vmem %s109, 16 [#allocation1]
        %v810 = vld [vmem:[%s809] sm:$0xff]
        %v811 = vmul.f32 %v810, %v799
        %812 = vadd.xlane.f32.xlu0 %v811
        %v813 = vpop.xlane.xlu0 %812
        %v814 = vsub.f32 %v808, %v813
        %v815 = vmul.f32 %v814, %v806
        %v816 = vsel %vm797, %v815, 0.0
        %v817 = vadd.f32 %v810, %v816
        %s818 = scalar_lea.vmem %s109, 16 [#allocation1]
        %819 = vst [vmem:[%s818] sm:$0xff] %v817
        %vm820 = vcmask 146568
        %s821 = scalar_lea.vmem %s109, 17 [#allocation1]
        %v822 = vld [vmem:[%s821] ss:$0 sm:$0xff]
        %s823 = scalar_lea.vmem %s101, 17 [#allocation0]
        %v824 = vld [vmem:[%s823] ss:$0 sm:$0xff]
        %v825 = vmul.f32 %v822, %v822
        %826 = vadd.xlane.f32.xlu0 %v825
        %v827 = vpop.xlane.xlu0 %826
        %v828 = vsub.f32 %v824, %v827
        %v829 = vrsqrt.pop %v828
        %s830 = scalar_lea.vmem %s101, 16 [#allocation0]
        %v831 = vld [vmem:[%s830] sm:$0xff]
        %s832 = scalar_lea.vmem %s109, 16 [#allocation1]
        %v833 = vld [vmem:[%s832] sm:$0xff]
        %v834 = vmul.f32 %v833, %v822
        %835 = vadd.xlane.f32.xlu0 %v834
        %v836 = vpop.xlane.xlu0 %835
        %v837 = vsub.f32 %v831, %v836
        %v838 = vmul.f32 %v837, %v829
        %vm839 = vcmask 1047553
        %vm840 = vmand %vm820, %vm839
        %v841 = vsel %vm840, %v838, 0.0
        %v842 = vadd.f32 %v833, %v841
        %s843 = scalar_lea.vmem %s109, 16 [#allocation1]
        %844 = vst [vmem:[%s843] sm:$0xff] %v842
        %vm845 = vcmask 154768
        %s846 = scalar_lea.vmem %s109, 18 [#allocation1]
        %v847 = vld [vmem:[%s846] ss:$0 sm:$0xff]
        %s848 = scalar_lea.vmem %s101, 18 [#allocation0]
        %v849 = vld [vmem:[%s848] ss:$0 sm:$0xff]
        %v850 = vmul.f32 %v847, %v847
        %851 = vadd.xlane.f32.xlu0 %v850
        %v852 = vpop.xlane.xlu0 %851
        %v853 = vsub.f32 %v849, %v852
        %v854 = vrsqrt.pop %v853
        %s855 = scalar_lea.vmem %s101, 16 [#allocation0]
        %v856 = vld [vmem:[%s855] sm:$0xff]
        %s857 = scalar_lea.vmem %s109, 16 [#allocation1]
        %v858 = vld [vmem:[%s857] sm:$0xff]
        %v859 = vmul.f32 %v858, %v847
        %860 = vadd.xlane.f32.xlu0 %v859
        %v861 = vpop.xlane.xlu0 %860
        %v862 = vsub.f32 %v856, %v861
        %v863 = vmul.f32 %v862, %v854
        %vm864 = vcmask 1047554
        %vm865 = vmand %vm845, %vm864
        %v866 = vsel %vm865, %v863, 0.0
        %v867 = vadd.f32 %v858, %v866
        %s868 = scalar_lea.vmem %s109, 16 [#allocation1]
        %869 = vst [vmem:[%s868] sm:$0xff] %v867
        %vm870 = vcmask 162968
        %s871 = scalar_lea.vmem %s109, 19 [#allocation1]
        %v872 = vld [vmem:[%s871] ss:$0 sm:$0xff]
        %s873 = scalar_lea.vmem %s101, 19 [#allocation0]
        %v874 = vld [vmem:[%s873] ss:$0 sm:$0xff]
        %v875 = vmul.f32 %v872, %v872
        %876 = vadd.xlane.f32.xlu0 %v875
        %v877 = vpop.xlane.xlu0 %876
        %v878 = vsub.f32 %v874, %v877
        %v879 = vrsqrt.pop %v878
        %s880 = scalar_lea.vmem %s101, 16 [#allocation0]
        %v881 = vld [vmem:[%s880] sm:$0xff]
        %s882 = scalar_lea.vmem %s109, 16 [#allocation1]
        %v883 = vld [vmem:[%s882] sm:$0xff]
        %v884 = vmul.f32 %v883, %v872
        %885 = vadd.xlane.f32.xlu0 %v884
        %v886 = vpop.xlane.xlu0 %885
        %v887 = vsub.f32 %v881, %v886
        %v888 = vmul.f32 %v887, %v879
        %vm889 = vcmask 1047555
        %vm890 = vmand %vm870, %vm889
        %v891 = vsel %vm890, %v888, 0.0
        %v892 = vadd.f32 %v883, %v891
        %s893 = scalar_lea.vmem %s109, 16 [#allocation1]
        %894 = vst [vmem:[%s893] sm:$0xff] %v892
        %vm895 = vcmask 171168
        %s896 = scalar_lea.vmem %s109, 20 [#allocation1]
        %v897 = vld [vmem:[%s896] ss:$0 sm:$0xff]
        %s898 = scalar_lea.vmem %s101, 20 [#allocation0]
        %v899 = vld [vmem:[%s898] ss:$0 sm:$0xff]
        %v900 = vmul.f32 %v897, %v897
        %901 = vadd.xlane.f32.xlu0 %v900
        %v902 = vpop.xlane.xlu0 %901
        %v903 = vsub.f32 %v899, %v902
        %v904 = vrsqrt.pop %v903
        %s905 = scalar_lea.vmem %s101, 16 [#allocation0]
        %v906 = vld [vmem:[%s905] sm:$0xff]
        %s907 = scalar_lea.vmem %s109, 16 [#allocation1]
        %v908 = vld [vmem:[%s907] sm:$0xff]
        %v909 = vmul.f32 %v908, %v897
        %910 = vadd.xlane.f32.xlu0 %v909
        %v911 = vpop.xlane.xlu0 %910
        %v912 = vsub.f32 %v906, %v911
        %v913 = vmul.f32 %v912, %v904
        %vm914 = vcmask 1047556
        %vm915 = vmand %vm895, %vm914
        %v916 = vsel %vm915, %v913, 0.0
        %v917 = vadd.f32 %v908, %v916
        %s918 = scalar_lea.vmem %s109, 16 [#allocation1]
        %919 = vst [vmem:[%s918] sm:$0xff] %v917
        %vm920 = vcmask 179368
        %s921 = scalar_lea.vmem %s109, 21 [#allocation1]
        %v922 = vld [vmem:[%s921] ss:$0 sm:$0xff]
        %s923 = scalar_lea.vmem %s101, 21 [#allocation0]
        %v924 = vld [vmem:[%s923] ss:$0 sm:$0xff]
        %v925 = vmul.f32 %v922, %v922
        %926 = vadd.xlane.f32.xlu0 %v925
        %v927 = vpop.xlane.xlu0 %926
        %v928 = vsub.f32 %v924, %v927
        %v929 = vrsqrt.pop %v928
        %s930 = scalar_lea.vmem %s101, 16 [#allocation0]
        %v931 = vld [vmem:[%s930] sm:$0xff]
        %s932 = scalar_lea.vmem %s109, 16 [#allocation1]
        %v933 = vld [vmem:[%s932] sm:$0xff]
        %v934 = vmul.f32 %v933, %v922
        %935 = vadd.xlane.f32.xlu0 %v934
        %v936 = vpop.xlane.xlu0 %935
        %v937 = vsub.f32 %v931, %v936
        %v938 = vmul.f32 %v937, %v929
        %vm939 = vcmask 1047557
        %vm940 = vmand %vm920, %vm939
        %v941 = vsel %vm940, %v938, 0.0
        %v942 = vadd.f32 %v933, %v941
        %s943 = scalar_lea.vmem %s109, 16 [#allocation1]
        %944 = vst [vmem:[%s943] sm:$0xff] %v942
        %vm945 = vcmask 187568
        %s946 = scalar_lea.vmem %s109, 22 [#allocation1]
        %v947 = vld [vmem:[%s946] ss:$0 sm:$0xff]
        %s948 = scalar_lea.vmem %s101, 22 [#allocation0]
        %v949 = vld [vmem:[%s948] ss:$0 sm:$0xff]
        %v950 = vmul.f32 %v947, %v947
        %951 = vadd.xlane.f32.xlu0 %v950
        %v952 = vpop.xlane.xlu0 %951
        %v953 = vsub.f32 %v949, %v952
        %v954 = vrsqrt.pop %v953
        %s955 = scalar_lea.vmem %s101, 16 [#allocation0]
        %v956 = vld [vmem:[%s955] sm:$0xff]
        %s957 = scalar_lea.vmem %s109, 16 [#allocation1]
        %v958 = vld [vmem:[%s957] sm:$0xff]
        %v959 = vmul.f32 %v958, %v947
        %960 = vadd.xlane.f32.xlu0 %v959
        %v961 = vpop.xlane.xlu0 %960
        %v962 = vsub.f32 %v956, %v961
        %v963 = vmul.f32 %v962, %v954
        %vm964 = vcmask 1047558
        %vm965 = vmand %vm945, %vm964
        %v966 = vsel %vm965, %v963, 0.0
        %v967 = vadd.f32 %v958, %v966
        %s968 = scalar_lea.vmem %s109, 16 [#allocation1]
        %969 = vst [vmem:[%s968] sm:$0xff] %v967
        %vm970 = vcmask 195768
        %s971 = scalar_lea.vmem %s109, 23 [#allocation1]
        %v972 = vld [vmem:[%s971] ss:$0 sm:$0xff]
        %s973 = scalar_lea.vmem %s101, 23 [#allocation0]
        %v974 = vld [vmem:[%s973] ss:$0 sm:$0xff]
        %v975 = vmul.f32 %v972, %v972
        %976 = vadd.xlane.f32.xlu0 %v975
        %v977 = vpop.xlane.xlu0 %976
        %v978 = vsub.f32 %v974, %v977
        %v979 = vrsqrt.pop %v978
        %s980 = scalar_lea.vmem %s101, 16 [#allocation0]
        %v981 = vld [vmem:[%s980] sm:$0xff]
        %s982 = scalar_lea.vmem %s109, 16 [#allocation1]
        %v983 = vld [vmem:[%s982] sm:$0xff]
        %v984 = vmul.f32 %v983, %v972
        %985 = vadd.xlane.f32.xlu0 %v984
        %v986 = vpop.xlane.xlu0 %985
        %v987 = vsub.f32 %v981, %v986
        %v988 = vmul.f32 %v987, %v979
        %vm989 = vcmask 1047559
        %vm990 = vmand %vm970, %vm989
        %v991 = vsel %vm990, %v988, 0.0
        %v992 = vadd.f32 %v983, %v991
        %s993 = scalar_lea.vmem %s109, 16 [#allocation1]
        %994 = vst [vmem:[%s993] sm:$0xff] %v992
        %s995 = sand.u32 %s8, 1
        %s996 = sand.u32 %s8, 1
        %s997 = smul.addr %s996, 24
        %s998 = scalar_lea.vmem [#allocation1], %s997
        %s999 = sadd.s32 %s15, %s14
        %s1000 = smul.addr %s13, 3
        %s1001 = sadd.s32 %s999, %s1000
        %s1002 = smul.addr %s1001, 8
        %s1003 = scalar_lea.vmem %s1, %s1002
        // Predicated region
        $region55: #{custom-call.45} parent=53 // pred_check
          _
        $region56: #{custom-call.45} parent=53 // pred_check_branch
          %1005 = sbr.rel (0) target = $region58
        $region57: #{custom-call.45} parent=53 // pred_region
          // Predicated region
          $region59: #{custom-call.45} parent=57 // pred_check
            _
          $region60: #{custom-call.45} parent=57 // pred_check_branch
            %1007 = sbr.rel (0) target = $region62
          $region61: #{custom-call.45} parent=57 // pred_region
            // Predicated region
            $region74: #{custom-call.45} parent=61 // pred_check
              _
            $region75: #{custom-call.45} parent=61 // pred_check_branch
              %1027 = sbr.rel (0) target = $region77
            $region76: #{custom-call.45} parent=61 // pred_region
              loop: start=0, step=1, limit=1
              $region78: #{custom-call.45} parent=76 // loop_pre_header
                _
              $region79: #{custom-call.45} parent=76 // loop_header
                %s1029 = sphi 0, %s1033
                %p1030 = scmp.ge.s32.totalorder %s1029, 1
                %s1034 = sphi %s998, %s998
                %s1035 = sphi %s1003, %s1003
              $region80: #{custom-call.45} parent=76 // loop_header_branch
                %1032 = sbr.rel (%p1030) target = $region84
              $region81: #{custom-call.45} parent=76 // loop_body
                %v1036 = vld [vmem:[%s1034] sm:$0xff]
                %1037 = vst [vmem:[%s1035] sm:$0xff] %v1036
                %v1038 = vld [vmem:[%s1034 + $0x8] sm:$0xff]
                %1039 = vst [vmem:[%s1035 + $0x8] sm:$0xff] %v1038
                %v1040 = vld [vmem:[%s1034 + $0x10] sm:$0xff]
                %1041 = vst [vmem:[%s1035 + $0x10] sm:$0xff] %v1040
              $region82: #{custom-call.45} parent=76 // loop_footer
                %s1033 = sadd.s32 1, %s1029
              $region83: #{custom-call.45} parent=76 // loop_footer_branch
                %1028 = sbr.rel target = $region79
              $region84: #{custom-call.45} parent=76 // loop_exit
                _
            $region77: #{custom-call.45} parent=61 // pred_fallthru
              _
            // Predicated region
            $region85: #{custom-call.45} parent=61 // pred_check
              _
            $region86: #{custom-call.45} parent=61 // pred_check_branch
              %1043 = sbr.rel target = $region88
            $region87: #{custom-call.45} parent=61 // pred_region
              _
            $region88: #{custom-call.45} parent=61 // pred_fallthru
              _
          $region62: #{custom-call.45} parent=57 // pred_fallthru
            _
          // Predicated region
          $region63: #{custom-call.45} parent=57 // pred_check
            _
          $region64: #{custom-call.45} parent=57 // pred_check_branch
            %1009 = sbr.rel target = $region66
          $region65: #{custom-call.45} parent=57 // pred_region
            %s1011 = ssub.s32 256, 1
            loop: start=0, step=1, limit=1
            $region67: #{custom-call.45} parent=65 // loop_pre_header
              _
            $region68: #{custom-call.45} parent=65 // loop_header
              %s1013 = sphi 0, %s1017
              %p1014 = scmp.ge.s32.totalorder %s1013, 1
              %s1018 = sphi %s998, %s998
              %s1019 = sphi %s1003, %s1003
            $region69: #{custom-call.45} parent=65 // loop_header_branch
              %1016 = sbr.rel (%p1014) target = $region73
            $region70: #{custom-call.45} parent=65 // loop_body
              %v1020 = vld [vmem:[%s1018] sm:%s1011]
              %1021 = vst [vmem:[%s1019] sm:%s1011] %v1020
              %v1022 = vld [vmem:[%s1018 + $0x8] sm:%s1011]
              %1023 = vst [vmem:[%s1019 + $0x8] sm:%s1011] %v1022
              %v1024 = vld [vmem:[%s1018 + $0x10] sm:%s1011]
              %1025 = vst [vmem:[%s1019 + $0x10] sm:%s1011] %v1024
            $region71: #{custom-call.45} parent=65 // loop_footer
              %s1017 = sadd.s32 1, %s1013
            $region72: #{custom-call.45} parent=65 // loop_footer_branch
              %1012 = sbr.rel target = $region68
            $region73: #{custom-call.45} parent=65 // loop_exit
              _
          $region66: #{custom-call.45} parent=57 // pred_fallthru
            _
        $region58: #{custom-call.45} parent=53 // pred_fallthru
          _
        %1044 = vnop
      $region54: #{custom-call.45} parent=5 // pred_fallthru
        _
      %p1045 = scmp.le.s32.totalorder 2, %s3
      // Predicated region
      $region89: #{custom-call.45} parent=5 // pred_check
        %p1046 = pneg %p1045
      $region90: #{custom-call.45} parent=5 // pred_check_branch
        %1048 = sbr.rel (%p1046) target = $region92
      $region91: #{custom-call.45} parent=5 // pred_region
        %s1049 = ssub.s32 %s3, 2
        %s1050 = sand.u32 %s9, 1
        %s1051 = sand.u32 %s9, 1
        %s1052 = smul.addr %s1051, 24
        %s1053 = scalar_lea.vmem [#allocation1], %s1052
      $region92: #{custom-call.45} parent=5 // pred_fallthru
        _
    $region6: #{custom-call.45} parent=1 // loop_footer
      %s7 = sadd.s32 1, %s3
    $region7: #{custom-call.45} parent=1 // loop_footer_branch
      %2 = sbr.rel target = $region3
    $region8: #{custom-call.45} parent=1 // loop_exit
      _

// kernel: custom-call.49
$region0: #{custom-call.49}
  %s0 = inlined_call_operand.vmem [shape: f32[2,1,24,24], index: 0, kind: input, shape index: {}]
  %s1 = inlined_call_operand.vmem [shape: f32[2,1,24,24], index: 1, kind: output, shape index: {}]
  $region1: #{custom-call.49} parent=0
    #allocation0 [shape = 'u8[24576]{0}', space=vmem, size = 0x6000, scoped, tag = 'operand span for operand 0']
    #allocation1 [shape = 'u8[24576]{0}', space=vmem, size = 0x6000, scoped, tag = 'operand span for operand 1']
    loop: start=0, step=1, limit=4
    $region2: #{custom-call.49} parent=1 // loop_pre_header
      _
    $region3: #{custom-call.49} parent=1 // loop_header
      %s3 = sphi 0, %s7
      %p4 = scmp.ge.s32.totalorder %s3, 4
      %s10 = sphi 0, %s36
      %s11 = sphi 0, %s32
      %s12 = sphi 0, %s28
      %s13 = sphi 0, %s24
      %s14 = sphi 0, %s10
      %s15 = sphi 0, %s11
      %s16 = sphi 0, %s12
      %s17 = sphi 0, %s13
      %s18 = sphi 0, %s14
      %s19 = sphi 0, %s15
      %s20 = sphi 0, %s16
      %s21 = sphi 0, %s17
    $region4: #{custom-call.49} parent=1 // loop_header_branch
      %6 = sbr.rel (%p4) target = $region8
    $region5: #{custom-call.49} parent=1 // loop_body
      %s8 = ssub.s32 %s3, 1
      %s9 = ssub.s32 %s3, 2
      %s22 = sadd.s32 1, %s13
      %p23 = scmp.ge.s32.totalorder %s22, 1
      %s24 = scalar_select %p23, 0, %s22
      %s25 = sadd.s32 1, %s12
      %s26 = scalar_select %p23, %s25, %s12
      %p27 = scmp.ge.s32.totalorder %s26, 1
      %s28 = scalar_select %p27, 0, %s26
      %s29 = sadd.s32 1, %s11
      %s30 = scalar_select %p27, %s29, %s11
      %p31 = scmp.ge.s32.totalorder %s30, 1
      %s32 = scalar_select %p31, 0, %s30
      %s33 = sadd.s32 1, %s10
      %s34 = scalar_select %p31, %s33, %s10
      %p35 = scmp.ge.s32.totalorder %s34, 2
      %s36 = scalar_select %p35, 0, %s34
      %p37 = scmp.le.s32.totalorder 1, %s3
      %p38 = scmp.lt.s32.totalorder %s3, 3
      %p39 = pnand %p37, %p38
      %p40 = pneg %p39
      // Predicated region
      $region9: #{custom-call.49} parent=5 // pred_check
        _
      $region10: #{custom-call.49} parent=5 // pred_check_branch
        %42 = sbr.rel (%p39) target = $region12
      $region11: #{custom-call.49} parent=5 // pred_region
        %s43 = ssub.s32 %s3, 1
      $region12: #{custom-call.49} parent=5 // pred_fallthru
        _
      %p44 = scmp.lt.s32.totalorder %s3, 2
      // Predicated region
      $region13: #{custom-call.49} parent=5 // pred_check
        %p45 = pneg %p44
      $region14: #{custom-call.49} parent=5 // pred_check_branch
        %47 = sbr.rel (%p45) target = $region16
      $region15: #{custom-call.49} parent=5 // pred_region
        %s48 = sand.u32 %s3, 1
        %s49 = sand.u32 %s3, 1
        %s50 = smul.addr %s49, 24
        %s51 = scalar_lea.vmem [#allocation0], %s50
        %s52 = sadd.s32 %s13, %s12
        %s53 = smul.addr %s11, 3
        %s54 = sadd.s32 %s52, %s53
        %s55 = smul.addr %s10, 3
        %s56 = sadd.s32 %s54, %s55
        %s57 = smul.addr %s56, 8
        %s58 = scalar_lea.vmem %s0, %s57
        // Predicated region
        $region17: #{custom-call.49} parent=15 // pred_check
          _
        $region18: #{custom-call.49} parent=15 // pred_check_branch
          %60 = sbr.rel (0) target = $region20
        $region19: #{custom-call.49} parent=15 // pred_region
          // Predicated region
          $region21: #{custom-call.49} parent=19 // pred_check
            _
          $region22: #{custom-call.49} parent=19 // pred_check_branch
            %62 = sbr.rel (0) target = $region24
          $region23: #{custom-call.49} parent=19 // pred_region
            // Predicated region
            $region36: #{custom-call.49} parent=23 // pred_check
              _
            $region37: #{custom-call.49} parent=23 // pred_check_branch
              %82 = sbr.rel (0) target = $region39
            $region38: #{custom-call.49} parent=23 // pred_region
              loop: start=0, step=1, limit=1
              $region40: #{custom-call.49} parent=38 // loop_pre_header
                _
              $region41: #{custom-call.49} parent=38 // loop_header
                %s84 = sphi 0, %s88
                %p85 = scmp.ge.s32.totalorder %s84, 1
                %s89 = sphi %s58, %s58
                %s90 = sphi %s51, %s51
              $region42: #{custom-call.49} parent=38 // loop_header_branch
                %87 = sbr.rel (%p85) target = $region46
              $region43: #{custom-call.49} parent=38 // loop_body
                %v91 = vld [vmem:[%s89] sm:$0xff]
                %92 = vst [vmem:[%s90] sm:$0xff] %v91
                %v93 = vld [vmem:[%s89 + $0x8] sm:$0xff]
                %94 = vst [vmem:[%s90 + $0x8] sm:$0xff] %v93
                %v95 = vld [vmem:[%s89 + $0x10] sm:$0xff]
                %96 = vst [vmem:[%s90 + $0x10] sm:$0xff] %v95
              $region44: #{custom-call.49} parent=38 // loop_footer
                %s88 = sadd.s32 1, %s84
              $region45: #{custom-call.49} parent=38 // loop_footer_branch
                %83 = sbr.rel target = $region41
              $region46: #{custom-call.49} parent=38 // loop_exit
                _
            $region39: #{custom-call.49} parent=23 // pred_fallthru
              _
            // Predicated region
            $region47: #{custom-call.49} parent=23 // pred_check
              _
            $region48: #{custom-call.49} parent=23 // pred_check_branch
              %98 = sbr.rel target = $region50
            $region49: #{custom-call.49} parent=23 // pred_region
              _
            $region50: #{custom-call.49} parent=23 // pred_fallthru
              _
          $region24: #{custom-call.49} parent=19 // pred_fallthru
            _
          // Predicated region
          $region25: #{custom-call.49} parent=19 // pred_check
            _
          $region26: #{custom-call.49} parent=19 // pred_check_branch
            %64 = sbr.rel target = $region28
          $region27: #{custom-call.49} parent=19 // pred_region
            %s66 = ssub.s32 256, 1
            loop: start=0, step=1, limit=1
            $region29: #{custom-call.49} parent=27 // loop_pre_header
              _
            $region30: #{custom-call.49} parent=27 // loop_header
              %s68 = sphi 0, %s72
              %p69 = scmp.ge.s32.totalorder %s68, 1
              %s73 = sphi %s58, %s58
              %s74 = sphi %s51, %s51
            $region31: #{custom-call.49} parent=27 // loop_header_branch
              %71 = sbr.rel (%p69) target = $region35
            $region32: #{custom-call.49} parent=27 // loop_body
              %v75 = vld [vmem:[%s73] sm:%s66]
              %76 = vst [vmem:[%s74] sm:%s66] %v75
              %v77 = vld [vmem:[%s73 + $0x8] sm:%s66]
              %78 = vst [vmem:[%s74 + $0x8] sm:%s66] %v77
              %v79 = vld [vmem:[%s73 + $0x10] sm:%s66]
              %80 = vst [vmem:[%s74 + $0x10] sm:%s66] %v79
            $region33: #{custom-call.49} parent=27 // loop_footer
              %s72 = sadd.s32 1, %s68
            $region34: #{custom-call.49} parent=27 // loop_footer_branch
              %67 = sbr.rel target = $region30
            $region35: #{custom-call.49} parent=27 // loop_exit
              _
          $region28: #{custom-call.49} parent=19 // pred_fallthru
            _
        $region20: #{custom-call.49} parent=15 // pred_fallthru
          _
        %99 = vnop
      $region16: #{custom-call.49} parent=5 // pred_fallthru
        _
      %p100 = scmp.le.s32.totalorder 1, %s3
      %p101 = scmp.lt.s32.totalorder %s3, 3
      %p102 = pnand %p100, %p101
      %p103 = pneg %p102
      // Predicated region
      $region51: #{custom-call.49} parent=5 // pred_check
        _
      $region52: #{custom-call.49} parent=5 // pred_check_branch
        %105 = sbr.rel (%p102) target = $region54
      $region53: #{custom-call.49} parent=5 // pred_region
        #allocation2 [shape = 'f32[24,24]{1,0}', space=vmem, size = 0x3000, scoped, tag = 'rescaled input a']
        %s106 = ssub.s32 %s3, 1
        %s107 = sand.u32 %s8, 1
        %s108 = sand.u32 %s8, 1
        %s109 = smul.addr %s108, 24
        %s110 = scalar_lea.vmem [#allocation0], %s109
        %s111 = sand.u32 %s8, 1
        %s112 = sand.u32 %s8, 1
        %s113 = smul.addr %s112, 24
        %s114 = scalar_lea.vmem [#allocation0], %s113
        %s115 = sand.u32 %s8, 1
        %s116 = sand.u32 %s8, 1
        %s117 = smul.addr %s116, 24
        %s118 = scalar_lea.vmem [#allocation1], %s117
        %v119 = vlaneseq
        %v120 = vand.u32 %v119, 127
        %vm121 = vcmp.lt.s32.totalorder %v120, 24
        %v122 = vlaneseq
        %v123 = vshrl.u32 %v122, 7
        %vm125 = vcmp.eq.s32.totalorder %v123, %v120
        %v126 = vld [vmem:[%s110] sm:$0xff]
        %v127 = vsel %vm125, %v126, 0.0
        %128 = vadd.xlane.f32.xlu0 %v127
        %v129 = vpop.xlane.xlu0 %128
        %vm130 = vcmp.ge.s32.totalorder %v123, %v120
        %vm131 = vmand %vm130, %vm121
        %v132 = vsel %vm131, %v126, 0.0
        %v133 = vrcp.pop %v129
        %v134 = vmul.f32 %v132, %v133
        %135 = vst [vmem:[#allocation2] sm:$0xff] %v134
        %s136 = scalar_lea.vmem %s110, 8 [#allocation0]
        %s137 = scalar_lea.vmem [#allocation2], 8
        %v138 = vlaneseq
        %v139 = vshrl.u32 %v138, 7
        %v140 = vadd.s32 %v139, 8
        %vm141 = vcmp.eq.s32.totalorder %v140, %v120
        %v142 = vld [vmem:[%s136] sm:$0xff]
        %v143 = vsel %vm141, %v142, 0.0
        %144 = vadd.xlane.f32.xlu0 %v143
        %v145 = vpop.xlane.xlu0 %144
        %vm146 = vcmp.ge.s32.totalorder %v140, %v120
        %vm147 = vmand %vm146, %vm121
        %v148 = vsel %vm147, %v142, 0.0
        %v149 = vrcp.pop %v145
        %v150 = vmul.f32 %v148, %v149
        %151 = vst [vmem:[%s137] sm:$0xff] %v150
        %s152 = scalar_lea.vmem %s110, 16 [#allocation0]
        %s153 = scalar_lea.vmem [#allocation2], 16
        %v154 = vlaneseq
        %v155 = vshrl.u32 %v154, 7
        %v156 = vadd.s32 %v155, 16
        %vm157 = vcmp.eq.s32.totalorder %v156, %v120
        %v158 = vld [vmem:[%s152] sm:$0xff]
        %v159 = vsel %vm157, %v158, 0.0
        %160 = vadd.xlane.f32.xlu0 %v159
        %v161 = vpop.xlane.xlu0 %160
        %vm162 = vcmp.ge.s32.totalorder %v156, %v120
        %vm163 = vmand %vm162, %vm121
        %v164 = vsel %vm163, %v158, 0.0
        %v165 = vrcp.pop %v161
        %v166 = vmul.f32 %v164, %v165
        %167 = vst [vmem:[%s153] sm:$0xff] %v166
        %v168 = vlaneseq
        %v169 = vand.u32 %v168, 127
        %v170 = vlaneseq
        %v171 = vshrl.u32 %v170, 7
        %vm173 = vcmp.eq.s32.totalorder %v169, %v171
        %v174 = vlaneseq
        %v175 = vand.u32 %v174, 127
        %vm176 = vcmp.eq.s32.totalorder %v175, 0
        %v177 = vsel %vm176, 1.0, -1.0
        %v178 = vsel %vm173, %v177, 0.0
        %v179 = vlaneseq
        %v180 = vand.u32 %v179, 127
        %v181 = vlaneseq
        %v182 = vshrl.u32 %v181, 7
        %v183 = vadd.s32 %v182, 8
        %vm184 = vcmp.eq.s32.totalorder %v180, %v183
        %v185 = vsel %vm184, -1.0, 0.0
        %v186 = vlaneseq
        %v187 = vand.u32 %v186, 127
        %v188 = vlaneseq
        %v189 = vshrl.u32 %v188, 7
        %v190 = vadd.s32 %v189, 16
        %vm191 = vcmp.eq.s32.totalorder %v187, %v190
        %v192 = vsel %vm191, -1.0, 0.0
        %s193 = scalar_lea.vmem [#allocation2], 1
        %v194 = vld [vmem:[%s193] ss:$0 sm:$0xff]
        %v195 = vxor.u32 %v194, 2147483648
        %v196 = vlaneseq
        %v197 = vand.u32 %v196, 127
        %vm198 = vcmp.eq.s32.totalorder %v197, 1
        %v199 = vmul.f32 %v195, %v178
        %200 = vadd.xlane.f32.xlu0 %v199
        %v201 = vpop.xlane.xlu0 %200
        %v202 = vsel %vm198, %v201, %v178
        %s203 = scalar_lea.vmem [#allocation2], 2
        %v204 = vld [vmem:[%s203] ss:$0 sm:$0xff]
        %v205 = vxor.u32 %v204, 2147483648
        %v206 = vlaneseq
        %v207 = vand.u32 %v206, 127
        %vm208 = vcmp.eq.s32.totalorder %v207, 2
        %v209 = vmul.f32 %v205, %v202
        %210 = vadd.xlane.f32.xlu0 %v209
        %v211 = vpop.xlane.xlu0 %210
        %v212 = vsel %vm208, %v211, %v202
        %s213 = scalar_lea.vmem [#allocation2], 3
        %v214 = vld [vmem:[%s213] ss:$0 sm:$0xff]
        %v215 = vxor.u32 %v214, 2147483648
        %v216 = vlaneseq
        %v217 = vand.u32 %v216, 127
        %vm218 = vcmp.eq.s32.totalorder %v217, 3
        %v219 = vmul.f32 %v215, %v212
        %220 = vadd.xlane.f32.xlu0 %v219
        %v221 = vpop.xlane.xlu0 %220
        %v222 = vsel %vm218, %v221, %v212
        %s223 = scalar_lea.vmem [#allocation2], 4
        %v224 = vld [vmem:[%s223] ss:$0 sm:$0xff]
        %v225 = vxor.u32 %v224, 2147483648
        %v226 = vlaneseq
        %v227 = vand.u32 %v226, 127
        %vm228 = vcmp.eq.s32.totalorder %v227, 4
        %v229 = vmul.f32 %v225, %v222
        %230 = vadd.xlane.f32.xlu0 %v229
        %v231 = vpop.xlane.xlu0 %230
        %v232 = vsel %vm228, %v231, %v222
        %s233 = scalar_lea.vmem [#allocation2], 5
        %v234 = vld [vmem:[%s233] ss:$0 sm:$0xff]
        %v235 = vxor.u32 %v234, 2147483648
        %v236 = vlaneseq
        %v237 = vand.u32 %v236, 127
        %vm238 = vcmp.eq.s32.totalorder %v237, 5
        %v239 = vmul.f32 %v235, %v232
        %240 = vadd.xlane.f32.xlu0 %v239
        %v241 = vpop.xlane.xlu0 %240
        %v242 = vsel %vm238, %v241, %v232
        %s243 = scalar_lea.vmem [#allocation2], 6
        %v244 = vld [vmem:[%s243] ss:$0 sm:$0xff]
        %v245 = vxor.u32 %v244, 2147483648
        %v246 = vlaneseq
        %v247 = vand.u32 %v246, 127
        %vm248 = vcmp.eq.s32.totalorder %v247, 6
        %v249 = vmul.f32 %v245, %v242
        %250 = vadd.xlane.f32.xlu0 %v249
        %v251 = vpop.xlane.xlu0 %250
        %v252 = vsel %vm248, %v251, %v242
        %s253 = scalar_lea.vmem [#allocation2], 7
        %v254 = vld [vmem:[%s253] ss:$0 sm:$0xff]
        %v255 = vxor.u32 %v254, 2147483648
        %v256 = vlaneseq
        %v257 = vand.u32 %v256, 127
        %vm258 = vcmp.eq.s32.totalorder %v257, 7
        %v259 = vmul.f32 %v255, %v252
        %260 = vadd.xlane.f32.xlu0 %v259
        %v261 = vpop.xlane.xlu0 %260
        %v262 = vsel %vm258, %v261, %v252
        %s263 = scalar_lea.vmem [#allocation2], 8
        %v264 = vld [vmem:[%s263] ss:$0 sm:$0xff]
        %v265 = vxor.u32 %v264, 2147483648
        %v266 = vlaneseq
        %v267 = vand.u32 %v266, 127
        %vm268 = vcmp.eq.s32.totalorder %v267, 8
        %v269 = vmul.f32 %v265, %v262
        %270 = vadd.xlane.f32.xlu0 %v269
        %v271 = vpop.xlane.xlu0 %270
        %v272 = vsel %vm268, %v271, %v262
        %v273 = vmul.f32 %v265, %v185
        %274 = vadd.xlane.f32.xlu0 %v273
        %v275 = vpop.xlane.xlu0 %274
        %v276 = vsel %vm268, %v275, %v185
        %s277 = scalar_lea.vmem [#allocation2], 9
        %v278 = vld [vmem:[%s277] ss:$0 sm:$0xff]
        %v279 = vxor.u32 %v278, 2147483648
        %v280 = vlaneseq
        %v281 = vand.u32 %v280, 127
        %vm282 = vcmp.eq.s32.totalorder %v281, 9
        %v283 = vmul.f32 %v279, %v272
        %284 = vadd.xlane.f32.xlu0 %v283
        %v285 = vpop.xlane.xlu0 %284
        %v286 = vsel %vm282, %v285, %v272
        %v287 = vmul.f32 %v279, %v276
        %288 = vadd.xlane.f32.xlu0 %v287
        %v289 = vpop.xlane.xlu0 %288
        %v290 = vsel %vm282, %v289, %v276
        %s291 = scalar_lea.vmem [#allocation2], 10
        %v292 = vld [vmem:[%s291] ss:$0 sm:$0xff]
        %v293 = vxor.u32 %v292, 2147483648
        %v294 = vlaneseq
        %v295 = vand.u32 %v294, 127
        %vm296 = vcmp.eq.s32.totalorder %v295, 10
        %v297 = vmul.f32 %v293, %v286
        %298 = vadd.xlane.f32.xlu0 %v297
        %v299 = vpop.xlane.xlu0 %298
        %v300 = vsel %vm296, %v299, %v286
        %v301 = vmul.f32 %v293, %v290
        %302 = vadd.xlane.f32.xlu0 %v301
        %v303 = vpop.xlane.xlu0 %302
        %v304 = vsel %vm296, %v303, %v290
        %s305 = scalar_lea.vmem [#allocation2], 11
        %v306 = vld [vmem:[%s305] ss:$0 sm:$0xff]
        %v307 = vxor.u32 %v306, 2147483648
        %v308 = vlaneseq
        %v309 = vand.u32 %v308, 127
        %vm310 = vcmp.eq.s32.totalorder %v309, 11
        %v311 = vmul.f32 %v307, %v300
        %312 = vadd.xlane.f32.xlu0 %v311
        %v313 = vpop.xlane.xlu0 %312
        %v314 = vsel %vm310, %v313, %v300
        %v315 = vmul.f32 %v307, %v304
        %316 = vadd.xlane.f32.xlu0 %v315
        %v317 = vpop.xlane.xlu0 %316
        %v318 = vsel %vm310, %v317, %v304
        %s319 = scalar_lea.vmem [#allocation2], 12
        %v320 = vld [vmem:[%s319] ss:$0 sm:$0xff]
        %v321 = vxor.u32 %v320, 2147483648
        %v322 = vlaneseq
        %v323 = vand.u32 %v322, 127
        %vm324 = vcmp.eq.s32.totalorder %v323, 12
        %v325 = vmul.f32 %v321, %v314
        %326 = vadd.xlane.f32.xlu0 %v325
        %v327 = vpop.xlane.xlu0 %326
        %v328 = vsel %vm324, %v327, %v314
        %v329 = vmul.f32 %v321, %v318
        %330 = vadd.xlane.f32.xlu0 %v329
        %v331 = vpop.xlane.xlu0 %330
        %v332 = vsel %vm324, %v331, %v318
        %s333 = scalar_lea.vmem [#allocation2], 13
        %v334 = vld [vmem:[%s333] ss:$0 sm:$0xff]
        %v335 = vxor.u32 %v334, 2147483648
        %v336 = vlaneseq
        %v337 = vand.u32 %v336, 127
        %vm338 = vcmp.eq.s32.totalorder %v337, 13
        %v339 = vmul.f32 %v335, %v328
        %340 = vadd.xlane.f32.xlu0 %v339
        %v341 = vpop.xlane.xlu0 %340
        %v342 = vsel %vm338, %v341, %v328
        %v343 = vmul.f32 %v335, %v332
        %344 = vadd.xlane.f32.xlu0 %v343
        %v345 = vpop.xlane.xlu0 %344
        %v346 = vsel %vm338, %v345, %v332
        %s347 = scalar_lea.vmem [#allocation2], 14
        %v348 = vld [vmem:[%s347] ss:$0 sm:$0xff]
        %v349 = vxor.u32 %v348, 2147483648
        %v350 = vlaneseq
        %v351 = vand.u32 %v350, 127
        %vm352 = vcmp.eq.s32.totalorder %v351, 14
        %v353 = vmul.f32 %v349, %v342
        %354 = vadd.xlane.f32.xlu0 %v353
        %v355 = vpop.xlane.xlu0 %354
        %v356 = vsel %vm352, %v355, %v342
        %v357 = vmul.f32 %v349, %v346
        %358 = vadd.xlane.f32.xlu0 %v357
        %v359 = vpop.xlane.xlu0 %358
        %v360 = vsel %vm352, %v359, %v346
        %s361 = scalar_lea.vmem [#allocation2], 15
        %v362 = vld [vmem:[%s361] ss:$0 sm:$0xff]
        %v363 = vxor.u32 %v362, 2147483648
        %v364 = vlaneseq
        %v365 = vand.u32 %v364, 127
        %vm366 = vcmp.eq.s32.totalorder %v365, 15
        %v367 = vmul.f32 %v363, %v356
        %368 = vadd.xlane.f32.xlu0 %v367
        %v369 = vpop.xlane.xlu0 %368
        %v370 = vsel %vm366, %v369, %v356
        %v371 = vmul.f32 %v363, %v360
        %372 = vadd.xlane.f32.xlu0 %v371
        %v373 = vpop.xlane.xlu0 %372
        %v374 = vsel %vm366, %v373, %v360
        %s375 = scalar_lea.vmem [#allocation2], 16
        %v376 = vld [vmem:[%s375] ss:$0 sm:$0xff]
        %v377 = vxor.u32 %v376, 2147483648
        %v378 = vlaneseq
        %v379 = vand.u32 %v378, 127
        %vm380 = vcmp.eq.s32.totalorder %v379, 16
        %v381 = vmul.f32 %v377, %v370
        %382 = vadd.xlane.f32.xlu0 %v381
        %v383 = vpop.xlane.xlu0 %382
        %v384 = vsel %vm380, %v383, %v370
        %v385 = vmul.f32 %v377, %v374
        %386 = vadd.xlane.f32.xlu0 %v385
        %v387 = vpop.xlane.xlu0 %386
        %v388 = vsel %vm380, %v387, %v374
        %v389 = vmul.f32 %v377, %v192
        %390 = vadd.xlane.f32.xlu0 %v389
        %v391 = vpop.xlane.xlu0 %390
        %v392 = vsel %vm380, %v391, %v192
        %s393 = scalar_lea.vmem [#allocation2], 17
        %v394 = vld [vmem:[%s393] ss:$0 sm:$0xff]
        %v395 = vxor.u32 %v394, 2147483648
        %v396 = vlaneseq
        %v397 = vand.u32 %v396, 127
        %vm398 = vcmp.eq.s32.totalorder %v397, 17
        %v399 = vmul.f32 %v395, %v384
        %400 = vadd.xlane.f32.xlu0 %v399
        %v401 = vpop.xlane.xlu0 %400
        %v402 = vsel %vm398, %v401, %v384
        %v403 = vmul.f32 %v395, %v388
        %404 = vadd.xlane.f32.xlu0 %v403
        %v405 = vpop.xlane.xlu0 %404
        %v406 = vsel %vm398, %v405, %v388
        %v407 = vmul.f32 %v395, %v392
        %408 = vadd.xlane.f32.xlu0 %v407
        %v409 = vpop.xlane.xlu0 %408
        %v410 = vsel %vm398, %v409, %v392
        %s411 = scalar_lea.vmem [#allocation2], 18
        %v412 = vld [vmem:[%s411] ss:$0 sm:$0xff]
        %v413 = vxor.u32 %v412, 2147483648
        %v414 = vlaneseq
        %v415 = vand.u32 %v414, 127
        %vm416 = vcmp.eq.s32.totalorder %v415, 18
        %v417 = vmul.f32 %v413, %v402
        %418 = vadd.xlane.f32.xlu0 %v417
        %v419 = vpop.xlane.xlu0 %418
        %v420 = vsel %vm416, %v419, %v402
        %v421 = vmul.f32 %v413, %v406
        %422 = vadd.xlane.f32.xlu0 %v421
        %v423 = vpop.xlane.xlu0 %422
        %v424 = vsel %vm416, %v423, %v406
        %v425 = vmul.f32 %v413, %v410
        %426 = vadd.xlane.f32.xlu0 %v425
        %v427 = vpop.xlane.xlu0 %426
        %v428 = vsel %vm416, %v427, %v410
        %s429 = scalar_lea.vmem [#allocation2], 19
        %v430 = vld [vmem:[%s429] ss:$0 sm:$0xff]
        %v431 = vxor.u32 %v430, 2147483648
        %v432 = vlaneseq
        %v433 = vand.u32 %v432, 127
        %vm434 = vcmp.eq.s32.totalorder %v433, 19
        %v435 = vmul.f32 %v431, %v420
        %436 = vadd.xlane.f32.xlu0 %v435
        %v437 = vpop.xlane.xlu0 %436
        %v438 = vsel %vm434, %v437, %v420
        %v439 = vmul.f32 %v431, %v424
        %440 = vadd.xlane.f32.xlu0 %v439
        %v441 = vpop.xlane.xlu0 %440
        %v442 = vsel %vm434, %v441, %v424
        %v443 = vmul.f32 %v431, %v428
        %444 = vadd.xlane.f32.xlu0 %v443
        %v445 = vpop.xlane.xlu0 %444
        %v446 = vsel %vm434, %v445, %v428
        %s447 = scalar_lea.vmem [#allocation2], 20
        %v448 = vld [vmem:[%s447] ss:$0 sm:$0xff]
        %v449 = vxor.u32 %v448, 2147483648
        %v450 = vlaneseq
        %v451 = vand.u32 %v450, 127
        %vm452 = vcmp.eq.s32.totalorder %v451, 20
        %v453 = vmul.f32 %v449, %v438
        %454 = vadd.xlane.f32.xlu0 %v453
        %v455 = vpop.xlane.xlu0 %454
        %v456 = vsel %vm452, %v455, %v438
        %v457 = vmul.f32 %v449, %v442
        %458 = vadd.xlane.f32.xlu0 %v457
        %v459 = vpop.xlane.xlu0 %458
        %v460 = vsel %vm452, %v459, %v442
        %v461 = vmul.f32 %v449, %v446
        %462 = vadd.xlane.f32.xlu0 %v461
        %v463 = vpop.xlane.xlu0 %462
        %v464 = vsel %vm452, %v463, %v446
        %s465 = scalar_lea.vmem [#allocation2], 21
        %v466 = vld [vmem:[%s465] ss:$0 sm:$0xff]
        %v467 = vxor.u32 %v466, 2147483648
        %v468 = vlaneseq
        %v469 = vand.u32 %v468, 127
        %vm470 = vcmp.eq.s32.totalorder %v469, 21
        %v471 = vmul.f32 %v467, %v456
        %472 = vadd.xlane.f32.xlu0 %v471
        %v473 = vpop.xlane.xlu0 %472
        %v474 = vsel %vm470, %v473, %v456
        %v475 = vmul.f32 %v467, %v460
        %476 = vadd.xlane.f32.xlu0 %v475
        %v477 = vpop.xlane.xlu0 %476
        %v478 = vsel %vm470, %v477, %v460
        %v479 = vmul.f32 %v467, %v464
        %480 = vadd.xlane.f32.xlu0 %v479
        %v481 = vpop.xlane.xlu0 %480
        %v482 = vsel %vm470, %v481, %v464
        %s483 = scalar_lea.vmem [#allocation2], 22
        %v484 = vld [vmem:[%s483] ss:$0 sm:$0xff]
        %v485 = vxor.u32 %v484, 2147483648
        %v486 = vlaneseq
        %v487 = vand.u32 %v486, 127
        %vm488 = vcmp.eq.s32.totalorder %v487, 22
        %v489 = vmul.f32 %v485, %v474
        %490 = vadd.xlane.f32.xlu0 %v489
        %v491 = vpop.xlane.xlu0 %490
        %v492 = vsel %vm488, %v491, %v474
        %v493 = vmul.f32 %v485, %v478
        %494 = vadd.xlane.f32.xlu0 %v493
        %v495 = vpop.xlane.xlu0 %494
        %v496 = vsel %vm488, %v495, %v478
        %v497 = vmul.f32 %v485, %v482
        %498 = vadd.xlane.f32.xlu0 %v497
        %v499 = vpop.xlane.xlu0 %498
        %v500 = vsel %vm488, %v499, %v482
        %s501 = scalar_lea.vmem [#allocation2], 23
        %v502 = vld [vmem:[%s501] ss:$0 sm:$0xff]
        %v503 = vxor.u32 %v502, 2147483648
        %v504 = vlaneseq
        %v505 = vand.u32 %v504, 127
        %vm506 = vcmp.eq.s32.totalorder %v505, 23
        %v507 = vmul.f32 %v503, %v492
        %508 = vadd.xlane.f32.xlu0 %v507
        %v509 = vpop.xlane.xlu0 %508
        %v510 = vsel %vm506, %v509, %v492
        %v511 = vmul.f32 %v503, %v496
        %512 = vadd.xlane.f32.xlu0 %v511
        %v513 = vpop.xlane.xlu0 %512
        %v514 = vsel %vm506, %v513, %v496
        %v515 = vmul.f32 %v503, %v500
        %516 = vadd.xlane.f32.xlu0 %v515
        %v517 = vpop.xlane.xlu0 %516
        %v518 = vsel %vm506, %v517, %v500
        %v519 = vrcp.pop %v129
        %v520 = vmul.f32 %v510, %v519
        %vm521 = vweird.f32 %v129
        %v522 = vsel %vm521, %v510, %v520
        %523 = vst [vmem:[%s118] sm:$0xff] %v522
        %v524 = vrcp.pop %v145
        %v525 = vmul.f32 %v514, %v524
        %vm526 = vweird.f32 %v145
        %v527 = vsel %vm526, %v514, %v525
        %s528 = scalar_lea.vmem %s118, 8 [#allocation1]
        %529 = vst [vmem:[%s528] sm:$0xff] %v527
        %v530 = vrcp.pop %v161
        %v531 = vmul.f32 %v518, %v530
        %vm532 = vweird.f32 %v161
        %v533 = vsel %vm532, %v518, %v531
        %s534 = scalar_lea.vmem %s118, 16 [#allocation1]
        %535 = vst [vmem:[%s534] sm:$0xff] %v533
        %s536 = sand.u32 %s8, 1
        %s537 = sand.u32 %s8, 1
        %s538 = smul.addr %s537, 24
        %s539 = scalar_lea.vmem [#allocation1], %s538
        %s540 = sadd.s32 %s17, %s16
        %s541 = smul.addr %s15, 3
        %s542 = sadd.s32 %s540, %s541
        %s543 = smul.addr %s14, 3
        %s544 = sadd.s32 %s542, %s543
        %s545 = smul.addr %s544, 8
        %s546 = scalar_lea.vmem %s1, %s545
        // Predicated region
        $region55: #{custom-call.49} parent=53 // pred_check
          _
        $region56: #{custom-call.49} parent=53 // pred_check_branch
          %548 = sbr.rel (0) target = $region58
        $region57: #{custom-call.49} parent=53 // pred_region
          // Predicated region
          $region59: #{custom-call.49} parent=57 // pred_check
            _
          $region60: #{custom-call.49} parent=57 // pred_check_branch
            %550 = sbr.rel (0) target = $region62
          $region61: #{custom-call.49} parent=57 // pred_region
            // Predicated region
            $region74: #{custom-call.49} parent=61 // pred_check
              _
            $region75: #{custom-call.49} parent=61 // pred_check_branch
              %570 = sbr.rel (0) target = $region77
            $region76: #{custom-call.49} parent=61 // pred_region
              loop: start=0, step=1, limit=1
              $region78: #{custom-call.49} parent=76 // loop_pre_header
                _
              $region79: #{custom-call.49} parent=76 // loop_header
                %s572 = sphi 0, %s576
                %p573 = scmp.ge.s32.totalorder %s572, 1
                %s577 = sphi %s539, %s539
                %s578 = sphi %s546, %s546
              $region80: #{custom-call.49} parent=76 // loop_header_branch
                %575 = sbr.rel (%p573) target = $region84
              $region81: #{custom-call.49} parent=76 // loop_body
                %v579 = vld [vmem:[%s577] sm:$0xff]
                %580 = vst [vmem:[%s578] sm:$0xff] %v579
                %v581 = vld [vmem:[%s577 + $0x8] sm:$0xff]
                %582 = vst [vmem:[%s578 + $0x8] sm:$0xff] %v581
                %v583 = vld [vmem:[%s577 + $0x10] sm:$0xff]
                %584 = vst [vmem:[%s578 + $0x10] sm:$0xff] %v583
              $region82: #{custom-call.49} parent=76 // loop_footer
                %s576 = sadd.s32 1, %s572
              $region83: #{custom-call.49} parent=76 // loop_footer_branch
                %571 = sbr.rel target = $region79
              $region84: #{custom-call.49} parent=76 // loop_exit
                _
            $region77: #{custom-call.49} parent=61 // pred_fallthru
              _
            // Predicated region
            $region85: #{custom-call.49} parent=61 // pred_check
              _
            $region86: #{custom-call.49} parent=61 // pred_check_branch
              %586 = sbr.rel target = $region88
            $region87: #{custom-call.49} parent=61 // pred_region
              _
            $region88: #{custom-call.49} parent=61 // pred_fallthru
              _
          $region62: #{custom-call.49} parent=57 // pred_fallthru
            _
          // Predicated region
          $region63: #{custom-call.49} parent=57 // pred_check
            _
          $region64: #{custom-call.49} parent=57 // pred_check_branch
            %552 = sbr.rel target = $region66
          $region65: #{custom-call.49} parent=57 // pred_region
            %s554 = ssub.s32 256, 1
            loop: start=0, step=1, limit=1
            $region67: #{custom-call.49} parent=65 // loop_pre_header
              _
            $region68: #{custom-call.49} parent=65 // loop_header
              %s556 = sphi 0, %s560
              %p557 = scmp.ge.s32.totalorder %s556, 1
              %s561 = sphi %s539, %s539
              %s562 = sphi %s546, %s546
            $region69: #{custom-call.49} parent=65 // loop_header_branch
              %559 = sbr.rel (%p557) target = $region73
            $region70: #{custom-call.49} parent=65 // loop_body
              %v563 = vld [vmem:[%s561] sm:%s554]
              %564 = vst [vmem:[%s562] sm:%s554] %v563
              %v565 = vld [vmem:[%s561 + $0x8] sm:%s554]
              %566 = vst [vmem:[%s562 + $0x8] sm:%s554] %v565
              %v567 = vld [vmem:[%s561 + $0x10] sm:%s554]
              %568 = vst [vmem:[%s562 + $0x10] sm:%s554] %v567
            $region71: #{custom-call.49} parent=65 // loop_footer
              %s560 = sadd.s32 1, %s556
            $region72: #{custom-call.49} parent=65 // loop_footer_branch
              %555 = sbr.rel target = $region68
            $region73: #{custom-call.49} parent=65 // loop_exit
              _
          $region66: #{custom-call.49} parent=57 // pred_fallthru
            _
        $region58: #{custom-call.49} parent=53 // pred_fallthru
          _
        %587 = vnop
      $region54: #{custom-call.49} parent=5 // pred_fallthru
        _
      %p588 = scmp.le.s32.totalorder 2, %s3
      // Predicated region
      $region89: #{custom-call.49} parent=5 // pred_check
        %p589 = pneg %p588
      $region90: #{custom-call.49} parent=5 // pred_check_branch
        %591 = sbr.rel (%p589) target = $region92
      $region91: #{custom-call.49} parent=5 // pred_region
        %s592 = ssub.s32 %s3, 2
        %s593 = sand.u32 %s9, 1
        %s594 = sand.u32 %s9, 1
        %s595 = smul.addr %s594, 24
        %s596 = scalar_lea.vmem [#allocation1], %s595
      $region92: #{custom-call.49} parent=5 // pred_fallthru
        _
    $region6: #{custom-call.49} parent=1 // loop_footer
      %s7 = sadd.s32 1, %s3
    $region7: #{custom-call.49} parent=1 // loop_footer_branch
      %2 = sbr.rel target = $region3
    $region8: #{custom-call.49} parent=1 // loop_exit
      _

// kernel: metaopt_head_forward.3
$region0: #{metaopt_head_forward.3}
  #allocation0 [shape = 'u32[]', space=smem, size = 0x4, offset = 0x4, fixed_abs, tag = 'smem constant byte address 0x4 - core index']
  #allocation1 [shape = 'u32[144,128]{1,0:T(1,128)}', space=vmem, size = 0x12000, scoped, tag = 'internal scratch']
  %s0 = inlined_call_operand.vmem [shape: f32[2,8,16], index: 0, kind: input, shape index: {}]
  %s1 = inlined_call_operand.vmem [shape: f32[2,6,16], index: 1, kind: input, shape index: {}]
  %s2 = inlined_call_operand.vmem [shape: f32[2,3,6], index: 2, kind: input, shape index: {}]
  %s3 = inlined_call_operand.vmem [shape: f32[2,3,8], index: 3, kind: output, shape index: {}]
  %s4 = sld [smem:[#allocation0]]
  $region45: #{metaopt_head_forward.3} parent=0
    _
  %s6 = ssub.s32 1, %s4
  %s7 = scalar_select 0, %s6, %s4
  loop: start=0, step=1, limit=4
  $region2: #{metaopt_head_forward.3} parent=0 // loop_pre_header
    _
  $region3: #{metaopt_head_forward.3} parent=0 // loop_header
    %s9 = sphi 0, %s13
    %p10 = scmp.ge.s32.totalorder %s9, 4
    %s19 = sphi 0, %s21
    %s22 = sphi 0, %s19
    %s23 = sphi 0, %s22
    %s39 = sphi 0, %s23
    %s45 = sphi 0, %s47
    %s48 = sphi 0, %s45
    %s49 = sphi 0, %s48
    %s65 = sphi 0, %s49
    %s71 = sphi 0, %s73
    %s74 = sphi 0, %s71
    %s75 = sphi 0, %s74
    %s91 = sphi 0, %s75
    %s97 = sphi 0, %s99
    %s100 = sphi 0, %s97
    %s101 = sphi 0, %s100
    %s117 = sphi 0, %s101
  $region4: #{metaopt_head_forward.3} parent=0 // loop_header_branch
    %12 = sbr.rel (%p10) target = $region8
  $region5: #{metaopt_head_forward.3} parent=0 // loop_body
    %s14 = ssub.s32 %s9, 1
    %s15 = ssub.s32 %s9, 2
    %s16 = sadd.s32 %s9, 1
    %s17 = ssub.s32 %s9, %s16
    %p18 = scmp.eq.s32.totalorder %s17, 0
    %s20 = sadd.s32 %s19, 1
    %s21 = scalar_select %p18, %s19, %s20
    %p24 = pneg %p18
    %p25 = scmp.eq.s32.totalorder %s9, 1
    %p26 = por %p24, %p25
    %p27 = scmp.ne.s32.totalorder %s19, %s22
    %p28 = scmp.eq.s32.totalorder %s9, 0
    %p29 = por %p27, %p28
    %p30 = scmp.ne.s32.totalorder %s19, %s22
    %p31 = scmp.eq.s32.totalorder %s14, 1
    %p32 = por %p30, %p31
    %p33 = scmp.ne.s32.totalorder %s22, %s23
    %p34 = scmp.eq.s32.totalorder %s14, 0
    %p35 = por %p33, %p34
    %p36 = scmp.ne.s32.totalorder %s22, %s23
    %p37 = scmp.eq.s32.totalorder %s15, 1
    %p38 = por %p36, %p37
    %p40 = scmp.ne.s32.totalorder %s23, %s39
    %p41 = scmp.eq.s32.totalorder %s15, 0
    %p42 = por %p40, %p41
    %s43 = ssub.s32 %s9, %s16
    %p44 = scmp.eq.s32.totalorder %s43, 0
    %s46 = sadd.s32 %s45, 1
    %s47 = scalar_select %p44, %s45, %s46
    %p50 = pneg %p44
    %p51 = scmp.eq.s32.totalorder %s9, 1
    %p52 = por %p50, %p51
    %p53 = scmp.ne.s32.totalorder %s45, %s48
    %p54 = scmp.eq.s32.totalorder %s9, 0
    %p55 = por %p53, %p54
    %p56 = scmp.ne.s32.totalorder %s45, %s48
    %p57 = scmp.eq.s32.totalorder %s14, 1
    %p58 = por %p56, %p57
    %p59 = scmp.ne.s32.totalorder %s48, %s49
    %p60 = scmp.eq.s32.totalorder %s14, 0
    %p61 = por %p59, %p60
    %p62 = scmp.ne.s32.totalorder %s48, %s49
    %p63 = scmp.eq.s32.totalorder %s15, 1
    %p64 = por %p62, %p63
    %p66 = scmp.ne.s32.totalorder %s49, %s65
    %p67 = scmp.eq.s32.totalorder %s15, 0
    %p68 = por %p66, %p67
    %s69 = ssub.s32 %s9, %s16
    %p70 = scmp.eq.s32.totalorder %s69, 0
    %s72 = sadd.s32 %s71, 1
    %s73 = scalar_select %p70, %s71, %s72
    %p76 = pneg %p70
    %p77 = scmp.eq.s32.totalorder %s9, 1
    %p78 = por %p76, %p77
    %p79 = scmp.ne.s32.totalorder %s71, %s74
    %p80 = scmp.eq.s32.totalorder %s9, 0
    %p81 = por %p79, %p80
    %p82 = scmp.ne.s32.totalorder %s71, %s74
    %p83 = scmp.eq.s32.totalorder %s14, 1
    %p84 = por %p82, %p83
    %p85 = scmp.ne.s32.totalorder %s74, %s75
    %p86 = scmp.eq.s32.totalorder %s14, 0
    %p87 = por %p85, %p86
    %p88 = scmp.ne.s32.totalorder %s74, %s75
    %p89 = scmp.eq.s32.totalorder %s15, 1
    %p90 = por %p88, %p89
    %p92 = scmp.ne.s32.totalorder %s75, %s91
    %p93 = scmp.eq.s32.totalorder %s15, 0
    %p94 = por %p92, %p93
    %s95 = ssub.s32 %s9, %s16
    %p96 = scmp.eq.s32.totalorder %s95, 0
    %s98 = sadd.s32 %s97, 1
    %s99 = scalar_select %p96, %s97, %s98
    %p102 = pneg %p96
    %p103 = scmp.eq.s32.totalorder %s9, 1
    %p104 = por %p102, %p103
    %p105 = scmp.ne.s32.totalorder %s97, %s100
    %p106 = scmp.eq.s32.totalorder %s9, 0
    %p107 = por %p105, %p106
    %p108 = scmp.ne.s32.totalorder %s97, %s100
    %p109 = scmp.eq.s32.totalorder %s14, 1
    %p110 = por %p108, %p109
    %p111 = scmp.ne.s32.totalorder %s100, %s101
    %p112 = scmp.eq.s32.totalorder %s14, 0
    %p113 = por %p111, %p112
    %p114 = scmp.ne.s32.totalorder %s100, %s101
    %p115 = scmp.eq.s32.totalorder %s15, 1
    %p116 = por %p114, %p115
    %p118 = scmp.ne.s32.totalorder %s101, %s117
    %p119 = scmp.eq.s32.totalorder %s15, 0
    %p120 = por %p118, %p119
    %p121 = scmp.le.s32.totalorder 1, %s9
    %p122 = scmp.lt.s32.totalorder %s9, 3
    %p123 = pnand %p121, %p122
    %p124 = pneg %p123
    // Predicated region
    $region9: #{metaopt_head_forward.3} parent=5 // pred_check
      _
    $region10: #{metaopt_head_forward.3} parent=5 // pred_check_branch
      %126 = sbr.rel (%p123) target = $region12
    $region11: #{metaopt_head_forward.3} parent=5 // pred_region
      %s127 = ssub.s32 %s9, 1
    $region12: #{metaopt_head_forward.3} parent=5 // pred_fallthru
      _
    %p128 = scmp.lt.s32.totalorder %s9, 2
    // Predicated region
    $region13: #{metaopt_head_forward.3} parent=5 // pred_check
      %p129 = pneg %p128
    $region14: #{metaopt_head_forward.3} parent=5 // pred_check_branch
      %131 = sbr.rel (%p129) target = $region16
    $region15: #{metaopt_head_forward.3} parent=5 // pred_region
      // Predicated region
      $region17: #{metaopt_head_forward.3} parent=15 // pred_check
        %p132 = pneg %p29
      $region18: #{metaopt_head_forward.3} parent=15 // pred_check_branch
        %134 = sbr.rel (%p132) target = $region20
      $region19: #{metaopt_head_forward.3} parent=15 // pred_region
        %p135 = scmp.lt.s32.totalorder %s9, 1
        %s136 = scalar_select %p135, %s9, 1
        %s137 = smul.addr %s136, 8
        %s138 = scalar_lea.vmem %s0, %s137
      $region20: #{metaopt_head_forward.3} parent=15 // pred_fallthru
        _
      // Predicated region
      $region21: #{metaopt_head_forward.3} parent=15 // pred_check
        %p139 = pneg %p55
      $region22: #{metaopt_head_forward.3} parent=15 // pred_check_branch
        %141 = sbr.rel (%p139) target = $region24
      $region23: #{metaopt_head_forward.3} parent=15 // pred_region
        %p142 = scmp.lt.s32.totalorder %s9, 1
        %s143 = scalar_select %p142, %s9, 1
        %s144 = smul.addr %s143, 8
        %s145 = scalar_lea.vmem %s1, %s144
      $region24: #{metaopt_head_forward.3} parent=15 // pred_fallthru
        _
      // Predicated region
      $region25: #{metaopt_head_forward.3} parent=15 // pred_check
        %p146 = pneg %p81
      $region26: #{metaopt_head_forward.3} parent=15 // pred_check_branch
        %148 = sbr.rel (%p146) target = $region28
      $region27: #{metaopt_head_forward.3} parent=15 // pred_region
        %p149 = scmp.lt.s32.totalorder %s9, 1
        %s150 = scalar_select %p149, %s9, 1
        %s151 = smul.addr %s150, 4
        %s152 = scalar_lea.vmem %s2, %s151
      $region28: #{metaopt_head_forward.3} parent=15 // pred_fallthru
        _
    $region16: #{metaopt_head_forward.3} parent=5 // pred_fallthru
      _
    %p153 = scmp.le.s32.totalorder 1, %s9
    %p154 = scmp.lt.s32.totalorder %s9, 3
    %p155 = pnand %p153, %p154
    %p156 = pneg %p155
    // Predicated region
    $region29: #{metaopt_head_forward.3} parent=5 // pred_check
      _
    $region30: #{metaopt_head_forward.3} parent=5 // pred_check_branch
      %158 = sbr.rel (%p155) target = $region32
    $region31: #{metaopt_head_forward.3} parent=5 // pred_region
      %s159 = ssub.s32 %s9, 1
      %p160 = scmp.lt.s32.totalorder %s14, 1
      %s161 = scalar_select %p160, %s14, 1
      %s162 = smul.addr %s161, 8
      %s163 = scalar_lea.vmem %s0, %s162
      %p164 = pneg %p35
      %p165 = pneg %p32
      %p166 = scmp.lt.s32.totalorder %s14, 1
      %s167 = scalar_select %p166, %s14, 1
      %s168 = smul.addr %s167, 8
      %s169 = scalar_lea.vmem %s1, %s168
      %p170 = pneg %p61
      %p171 = pneg %p58
      %p172 = scmp.lt.s32.totalorder %s14, 1
      %s173 = scalar_select %p172, %s14, 1
      %s174 = smul.addr %s173, 4
      %s175 = scalar_lea.vmem %s2, %s174
      %p176 = pneg %p87
      %p177 = pneg %p84
      %p178 = pneg %p113
      %p179 = pneg %p110
      %p180 = scmp.lt.s32.totalorder %s14, 1
      %s181 = scalar_select %p180, %s14, 1
      %s182 = smul.addr %s181, 4
      %s183 = scalar_lea.vmem %s3, %s182
      %p184 = scmp.lt.s32.totalorder %s14, 1
      %s185 = scalar_select %p184, %s14, 1
      %s186 = smul.addr %s185, 8
      %s187 = scalar_lea.vmem %s0, %s186
      %p188 = scmp.lt.s32.totalorder %s14, 1
      %s189 = scalar_select %p188, %s14, 1
      %s190 = smul.addr %s189, 8
      %s191 = scalar_lea.vmem %s1, %s190
      %p192 = scmp.lt.s32.totalorder %s14, 1
      %s193 = scalar_select %p192, %s14, 1
      %s194 = smul.addr %s193, 4
      %s195 = scalar_lea.vmem %s2, %s194
      %p196 = scmp.lt.s32.totalorder %s14, 1
      %s197 = scalar_select %p196, %s14, 1
      %s198 = smul.addr %s197, 4
      %s199 = scalar_lea.vmem %s3, %s198
      %v201 = vld [vmem:[%s187] sm:$0xff]
      %v202 = vpack.c.bf16 %v201, %v201
      %v203 = vld [vmem:[%s191] sm:$0x3f]
      %v204 = vpack.c.bf16 %v203, %v203
      %vm205 = vcmask 130048
      %v207 = vsel %vm205, %v204, 0
      %v210 = vsel %vm205, %v202, 0
      %212 = vmatprep.subr.bf16.mxu0 0
      %213 = vmatpush1.bf16.xpose.msra.mxu0 0
      %214 = vmatprep.subr.bf16.mxu0 0
      %215 = vmatpush1.bf16.xpose.msra.mxu0 0
      %216 = vmatprep.subr.bf16.mxu0 0
      %217 = vmatpush1.bf16.xpose.msra.mxu0 0
      %218 = vmatprep.subr.bf16.mxu0 0
      %219 = vmatpush1.bf16.xpose.msra.mxu0 0
      %220 = vmatprep.subr.bf16.mxu0 0
      %221 = vmatpush1.bf16.xpose.msra.mxu0 0
      %222 = vmatprep.subr.bf16.mxu0 0
      %223 = vmatpush1.bf16.xpose.msra.mxu0 0
      %224 = vmatprep.subr.bf16.mxu0 0
      %225 = vmatpush1.bf16.xpose.msra.mxu0 0
      %226 = vmatprep.subr.bf16.mxu0 0
      %227 = vmatpush1.bf16.xpose.msra.mxu0 %v210
      %228 = vmatprep.subr.bf16.mxu0 0
      %229 = vmatpush2.bf16.xpose.msra.mxu0 0
      %230 = vmatprep.subr.bf16.mxu0 0
      %231 = vmatpush2.bf16.xpose.msra.mxu0 0
      %232 = vmatprep.subr.bf16.mxu0 0
      %233 = vmatpush2.bf16.xpose.msra.mxu0 0
      %234 = vmatprep.subr.bf16.mxu0 0
      %235 = vmatpush2.bf16.xpose.msra.mxu0 0
      %236 = vmatprep.subr.bf16.mxu0 0
      %237 = vmatpush2.bf16.xpose.msra.mxu0 0
      %238 = vmatprep.subr.bf16.mxu0 0
      %239 = vmatpush2.bf16.xpose.msra.mxu0 0
      %240 = vmatprep.subr.bf16.mxu0 0
      %241 = vmatpush2.bf16.xpose.msra.mxu0 0
      %242 = vmatprep.subr.bf16.mxu0 0
      %243 = vmatpush2.bf16.xpose.msra.mxu0 0
      %244 = vmatprep.mubr.bf16.mxu0 0
      %245 = vmatmul.mubr.bf16.gmra.mxu0 %v207
      %v246 = vpop.f32.mrf.mxu0
      %v247 = vadd.f32 0.0, %v246
      %v248 = vpop.f32.mrf.mxu0
      %v249 = vpop.f32.mrf.mxu0
      %v250 = vpop.f32.mrf.mxu0
      %251 = vdwg.mxu0
      %v252 = vld [vmem:[%s195] sm:$0x7]
      %vm253 = vcmask 48128
      %v255 = vsel %vm253, %v252, 0
      %vm257 = vcmask 1045504
      %v259 = vsel %vm257, %v247, 0
      %261 = vmatprep.subr.mxu0 0.0
      %262 = vmatpush1.msra.mxu0 0.0
      %263 = vmatprep.subr.mxu0 0.0
      %264 = vmatpush1.msra.mxu0 0.0
      %265 = vmatprep.subr.mxu0 0.0
      %266 = vmatpush1.msra.mxu0 0.0
      %267 = vmatprep.subr.mxu0 0.0
      %268 = vmatpush1.msra.mxu0 0.0
      %269 = vmatprep.subr.mxu0 0.0
      %270 = vmatpush1.msra.mxu0 0.0
      %271 = vmatprep.subr.mxu0 0.0
      %272 = vmatpush1.msra.mxu0 0.0
      %273 = vmatprep.subr.mxu0 0.0
      %274 = vmatpush1.msra.mxu0 0.0
      %275 = vmatprep.subr.mxu0 0.0
      %276 = vmatpush1.msra.mxu0 0.0
      %277 = vmatprep.subr.mxu0 0.0
      %278 = vmatpush1.msra.mxu0 0.0
      %279 = vmatprep.subr.mxu0 0.0
      %280 = vmatpush1.msra.mxu0 0.0
      %281 = vmatprep.subr.mxu0 0.0
      %282 = vmatpush1.msra.mxu0 0.0
      %283 = vmatprep.subr.mxu0 0.0
      %284 = vmatpush1.msra.mxu0 0.0
      %285 = vmatprep.subr.mxu0 0.0
      %286 = vmatpush1.msra.mxu0 0.0
      %287 = vmatprep.subr.mxu0 0.0
      %288 = vmatpush1.msra.mxu0 0.0
      %289 = vmatprep.subr.mxu0 0.0
      %290 = vmatpush1.msra.mxu0 0.0
      %291 = vmatprep.subr.mxu0 0.0
      %292 = vmatpush1.msra.mxu0 %v259
      %293 = vmatprep.subr.mxu0 0.0
      %294 = vmatpush2.msra.mxu0 0.0
      %295 = vmatprep.subr.mxu0 0.0
      %296 = vmatpush2.msra.mxu0 0.0
      %297 = vmatprep.subr.mxu0 0.0
      %298 = vmatpush2.msra.mxu0 0.0
      %299 = vmatprep.subr.mxu0 0.0
      %300 = vmatpush2.msra.mxu0 0.0
      %301 = vmatprep.subr.mxu0 0.0
      %302 = vmatpush2.msra.mxu0 0.0
      %303 = vmatprep.subr.mxu0 0.0
      %304 = vmatpush2.msra.mxu0 0.0
      %305 = vmatprep.subr.mxu0 0.0
      %306 = vmatpush2.msra.mxu0 0.0
      %307 = vmatprep.subr.mxu0 0.0
      %308 = vmatpush2.msra.mxu0 0.0
      %309 = vmatprep.subr.mxu0 0.0
      %310 = vmatpush2.msra.mxu0 0.0
      %311 = vmatprep.subr.mxu0 0.0
      %312 = vmatpush2.msra.mxu0 0.0
      %313 = vmatprep.subr.mxu0 0.0
      %314 = vmatpush2.msra.mxu0 0.0
      %315 = vmatprep.subr.mxu0 0.0
      %316 = vmatpush2.msra.mxu0 0.0
      %317 = vmatprep.subr.mxu0 0.0
      %318 = vmatpush2.msra.mxu0 0.0
      %319 = vmatprep.subr.mxu0 0.0
      %320 = vmatpush2.msra.mxu0 0.0
      %321 = vmatprep.subr.mxu0 0.0
      %322 = vmatpush2.msra.mxu0 0.0
      %323 = vmatprep.subr.mxu0 0.0
      %324 = vmatpush2.msra.mxu0 0.0
      %325 = vmatprep.mubr.f32.mxu0 0.0
      %326 = vmatmul.mubr.f32.gmra.mxu0 %v255
      %v327 = vpop.f32.mrf.mxu0
      %v328 = vadd.f32 0.0, %v327
      %v329 = vpop.f32.mrf.mxu0
      %330 = vdwg.mxu0
      %vm331 = vcmask 59392
      %332 = vst.msk [vmem:[%s199] sm:$0x7] %vm331, %v328
      %p333 = scmp.lt.s32.totalorder %s14, 1
      %s334 = scalar_select %p333, %s14, 1
      %s335 = smul.addr %s334, 4
      %s336 = scalar_lea.vmem %s3, %s335
      // Predicated region
      $region33: #{metaopt_head_forward.3} parent=31 // pred_check
        %p337 = pneg %p110
      $region34: #{metaopt_head_forward.3} parent=31 // pred_check_branch
        %339 = sbr.rel (%p337) target = $region36
      $region35: #{metaopt_head_forward.3} parent=31 // pred_region
        _
      $region36: #{metaopt_head_forward.3} parent=31 // pred_fallthru
        _
    $region32: #{metaopt_head_forward.3} parent=5 // pred_fallthru
      _
    %p340 = scmp.le.s32.totalorder 2, %s9
    // Predicated region
    $region37: #{metaopt_head_forward.3} parent=5 // pred_check
      %p341 = pneg %p340
    $region38: #{metaopt_head_forward.3} parent=5 // pred_check_branch
      %343 = sbr.rel (%p341) target = $region40
    $region39: #{metaopt_head_forward.3} parent=5 // pred_region
      %s344 = ssub.s32 %s9, 2
      // Predicated region
      $region41: #{metaopt_head_forward.3} parent=39 // pred_check
        %p345 = pneg %p116
      $region42: #{metaopt_head_forward.3} parent=39 // pred_check_branch
        %347 = sbr.rel (%p345) target = $region44
      $region43: #{metaopt_head_forward.3} parent=39 // pred_region
        %p348 = scmp.lt.s32.totalorder %s15, 1
        %s349 = scalar_select %p348, %s15, 1
        %s350 = smul.addr %s349, 4
        %s351 = scalar_lea.vmem %s3, %s350
      $region44: #{metaopt_head_forward.3} parent=39 // pred_fallthru
        _
    $region40: #{metaopt_head_forward.3} parent=5 // pred_fallthru
      _
  $region6: #{metaopt_head_forward.3} parent=0 // loop_footer
    %s13 = sadd.s32 1, %s9
  $region7: #{metaopt_head_forward.3} parent=0 // loop_footer_branch
    %8 = sbr.rel target = $region3
  $region8: #{metaopt_head_forward.3} parent=0 // loop_exit
    _

</llo_original>
